<compile_context>
chip_gen: v7x
topology: tpu7x:2x2x1
jax: 0.10.0
libtpu: 0.0.40
codegen_flags: <defaults>
</compile_context>

<pallas_src>
import functools
import math

import jax
import jax.numpy as jnp
from jax.experimental import pallas as pl
from jax.experimental.pallas import tpu as pltpu

# ----------------------------- model config (small, synthetic) --------------
BATCH = 2
SEQ = 8
HIDDEN = 32
NUM_HEADS = 2
HEAD_DIM = HIDDEN // NUM_HEADS
INTERMEDIATE = 64
NUM_LAYERS = 2
VOCAB = 100
MAX_POS = 16
TYPE_VOCAB = 2
N_LABEL = 2
LOGIT_PAD = 128          # lane-dense padded logits; sliced to N_LABEL outside
LN_EPS = 1e-12


# ----------------------------- fused Pallas kernel --------------------------
def _fused_bert_kernel(
    ids_ref, mask_ref, word_emb_ref, pos_type_ref, emb_g_ref, emb_b_ref,
    qkv_w_ref, qkv_b_ref, ao_w_ref, ao_b_ref, aln_g_ref, aln_b_ref,
    i_w_ref, i_b_ref, o_w_ref, o_b_ref, oln_g_ref, oln_b_ref,
    fc1_w_ref, fc1_b_ref, fc2_w_ref, fc2_b_ref,
    out_ref, *, batch, seq,
):
    B, S, H, nH, dH = batch, seq, HIDDEN, NUM_HEADS, HEAD_DIM
    f32, bf16 = jnp.float32, jnp.bfloat16

    def layernorm(xv, g, b):
        mu = jnp.mean(xv, axis=-1, keepdims=True)
        var = jnp.mean(jnp.square(xv - mu), axis=-1, keepdims=True)
        return (xv - mu) * jax.lax.rsqrt(var + LN_EPS) * g + b

    def gelu(y):
        # tanh-approx GELU (EUP tanh; elementwise math kept in f32).
        # TODO(synk): exact erf-based GELU if bit-exactness vs HF BERT is needed.
        return 0.5 * y * (1.0 + jnp.tanh(0.7978845608028654 * (y + 0.044715 * y * y * y)))

    def mm(a, w_bf16):
        # bf16 MXU operands, f32 accumulation.
        return jnp.dot(a.astype(bf16), w_bf16, preferred_element_type=f32)

    # ---- Embeddings fused in-kernel: row gather == one-hot @ table on MXU ----
    tok_iota = jax.lax.broadcasted_iota(jnp.int32, (B * S, VOCAB), 1)
    onehot = jnp.where(ids_ref[...] == tok_iota, 1.0, 0.0).astype(bf16)      # [B*S, V]
    x = jnp.dot(onehot, word_emb_ref[...], preferred_element_type=f32)       # [B*S, H]
    x = layernorm(x + pos_type_ref[...], emb_g_ref[...], emb_b_ref[...])

    # ---- Attention-mask bias: built and fully broadcast ONCE (hoisted) -------
    bias = jnp.broadcast_to(((1.0 - mask_ref[...]) * -1e9)[:, None, :], (B, S, S))
    scale = 1.0 / math.sqrt(dH)

    # ---- Transformer layers: statically unrolled, weights resident in VMEM ---
    for l in range(NUM_LAYERS):
        attn = None
        for h in range(nH):
            base = (l * nH + h) * 3
            # Per-head Q/K/V from pre-split weights: every matmul output is born
            # at lane offset 0 (no unaligned lane slicing of a fused QKV slab).
            q = (mm(x, qkv_w_ref[base + 0]) + qkv_b_ref[base + 0]).reshape(B, S, dH)
            k = (mm(x, qkv_w_ref[base + 1]) + qkv_b_ref[base + 1]).reshape(B, S, dH)
            v = (mm(x, qkv_w_ref[base + 2]) + qkv_b_ref[base + 2]).reshape(B, S, dH)

            s = jnp.einsum("bqd,bkd->bqk", q.astype(bf16), k.astype(bf16),
                           preferred_element_type=f32) * scale + bias
            s = s - jnp.max(s, axis=-1, keepdims=True)
            p = jnp.exp(s)
            p = p * pl.reciprocal(jnp.sum(p, axis=-1, keepdims=True), approx=True)
            ctx = jnp.einsum("bqk,bkd->bqd", p.astype(bf16), v.astype(bf16),
                             preferred_element_type=f32).reshape(B * S, dH)

            # Apply this head's slice of W_O and sum: mathematically identical
            # to concat(heads) @ W_O, but heads never leave vregs (no scratch
            # round-trip, no lane concat).
            h_out = mm(ctx, ao_w_ref[l * nH + h])                             # [B*S, H]
            attn = h_out if attn is None else attn + h_out

        attn = attn + ao_b_ref[l]
        x = layernorm(attn + x, aln_g_ref[l], aln_b_ref[l])

        # Feed-forward (GELU) + residual + LayerNorm.
        inter = gelu(mm(x, i_w_ref[l]) + i_b_ref[l])
        ffn = mm(inter, o_w_ref[l]) + o_b_ref[l]
        x = layernorm(ffn + x, oln_g_ref[l], oln_b_ref[l])

    # ---- Classifier head on the CLS token: relu -> fc1 -> relu -> fc2 --------
    cls = x.reshape(B, S, H)[:, 0, :]                                          # [B, H]
    hdd = jnp.maximum(cls, 0.0)
    hdd = jnp.maximum(mm(hdd, fc1_w_ref[...]) + fc1_b_ref[...], 0.0)
    logit = mm(hdd, fc2_w_ref[...]) + fc2_b_ref[...]                           # [B, 128]
    out_ref[...] = logit.astype(out_ref.dtype)


# ----------------------------- forward (one gridless pallas_call) -----------
def bert_binary_classifier_forward(packed, ids, mask):
    B, S = ids.shape

    inputs = (
        ids.reshape(B * S, 1).astype(jnp.int32),
        mask.astype(jnp.float32),
        packed["word_emb"], packed["pos_type_emb"],
        packed["emb_ln_g"], packed["emb_ln_b"],
        packed["qkv_w"], packed["qkv_b"], packed["ao_w"], packed["ao_b"],
        packed["attn_ln_g"], packed["attn_ln_b"],
        packed["i_w"], packed["i_b"], packed["o_w"], packed["o_b"],
        packed["out_ln_g"], packed["out_ln_b"],
        packed["fc1_w"], packed["fc1_b"], packed["fc2_w"], packed["fc2_b"],
    )

    kernel = functools.partial(_fused_bert_kernel, batch=B, seq=S)
    vmem = pl.BlockSpec(memory_space=pltpu.MemorySpace.VMEM)
    padded_logits = pl.pallas_call(
        kernel,
        out_shape=jax.ShapeDtypeStruct((B, LOGIT_PAD), jnp.float32),
        in_specs=[vmem] * len(inputs),
        out_specs=vmem,
    )(*inputs)
    return padded_logits[:, :N_LABEL]


# ----------------------------- deterministic parameter init -----------------
def init_params(key):
    keys = iter(jax.random.split(key, 128))

    def w(shape, std=0.02):
        return jax.random.normal(next(keys), shape, jnp.float32) * std

    params = {
        "word_emb": w((VOCAB, HIDDEN)),
        "pos_emb": w((MAX_POS, HIDDEN)),
        "type_emb": w((TYPE_VOCAB, HIDDEN)),
        "emb_ln_g": jnp.ones((HIDDEN,), jnp.float32),
        "emb_ln_b": jnp.zeros((HIDDEN,), jnp.float32),
        "layers": [],
        "fc1_w": w((HIDDEN, HIDDEN)),
        "fc1_b": jnp.zeros((HIDDEN,), jnp.float32),
        "fc2_w": w((HIDDEN, N_LABEL)),
        "fc2_b": jnp.zeros((N_LABEL,), jnp.float32),
    }
    for _ in range(NUM_LAYERS):
        params["layers"].append(
            {
                "q_w": w((HIDDEN, HIDDEN)), "q_b": jnp.zeros((HIDDEN,), jnp.float32),
                "k_w": w((HIDDEN, HIDDEN)), "k_b": jnp.zeros((HIDDEN,), jnp.float32),
                "v_w": w((HIDDEN, HIDDEN)), "v_b": jnp.zeros((HIDDEN,), jnp.float32),
                "ao_w": w((HIDDEN, HIDDEN)), "ao_b": jnp.zeros((HIDDEN,), jnp.float32),
                "attn_ln_g": jnp.ones((HIDDEN,), jnp.float32),
                "attn_ln_b": jnp.zeros((HIDDEN,), jnp.float32),
                "i_w": w((HIDDEN, INTERMEDIATE)),
                "i_b": jnp.zeros((INTERMEDIATE,), jnp.float32),
                "o_w": w((INTERMEDIATE, HIDDEN)),
                "o_b": jnp.zeros((HIDDEN,), jnp.float32),
                "out_ln_g": jnp.ones((HIDDEN,), jnp.float32),
                "out_ln_b": jnp.zeros((HIDDEN,), jnp.float32),
            }
        )
    return params


def pack_params(params):
    """One-time repack: per-head pre-split bf16 matmul weights, padded fc2,
    pre-tiled position+type embeddings, [L, 1, H] LayerNorm/bias slabs."""
    L, H, dH, nH, I = NUM_LAYERS, HIDDEN, HEAD_DIM, NUM_HEADS, INTERMEDIATE
    bf16 = jnp.bfloat16
    layers = params["layers"]

    qkv_w, qkv_b, ao_w = [], [], []
    for p in layers:
        for h in range(nH):
            sl = slice(h * dH, (h + 1) * dH)
            for name in ("q", "k", "v"):
                qkv_w.append(p[f"{name}_w"][:, sl])              # [H, dH]
                qkv_b.append(p[f"{name}_b"][sl].reshape(1, dH))
            ao_w.append(p["ao_w"][sl, :])                        # [dH, H]

    fc2_w_pad = jnp.zeros((H, LOGIT_PAD), jnp.float32).at[:, :N_LABEL].set(params["fc2_w"])
    fc2_b_pad = jnp.zeros((1, LOGIT_PAD), jnp.float32).at[0, :N_LABEL].set(params["fc2_b"])
    # token_type_ids assumed all zero (matches the reference call signature).
    pos_type = jnp.tile(params["pos_emb"][:SEQ] + params["type_emb"][0:1], (BATCH, 1))

    return {
        "word_emb": params["word_emb"].astype(bf16),             # [V, H]
        "pos_type_emb": pos_type,                                # [B*S, H] f32
        "emb_ln_g": params["emb_ln_g"].reshape(1, H),
        "emb_ln_b": params["emb_ln_b"].reshape(1, H),
        "qkv_w": jnp.stack(qkv_w).astype(bf16),                  # [L*nH*3, H, dH]
        "qkv_b": jnp.stack(qkv_b),                               # [L*nH*3, 1, dH]
        "ao_w": jnp.stack(ao_w).astype(bf16),                    # [L*nH, dH, H]
        "ao_b": jnp.stack([p["ao_b"].reshape(1, H) for p in layers]),
        "attn_ln_g": jnp.stack([p["attn_ln_g"].reshape(1, H) for p in layers]),
        "attn_ln_b": jnp.stack([p["attn_ln_b"].reshape(1, H) for p in layers]),
        "i_w": jnp.stack([p["i_w"] for p in layers]).astype(bf16),
        "i_b": jnp.stack([p["i_b"].reshape(1, I) for p in layers]),
        "o_w": jnp.stack([p["o_w"] for p in layers]).astype(bf16),
        "o_b": jnp.stack([p["o_b"].reshape(1, H) for p in layers]),
        "out_ln_g": jnp.stack([p["out_ln_g"].reshape(1, H) for p in layers]),
        "out_ln_b": jnp.stack([p["out_ln_b"].reshape(1, H) for p in layers]),
        "fc1_w": params["fc1_w"].astype(bf16),
        "fc1_b": params["fc1_b"].reshape(1, H),
        "fc2_w": fc2_w_pad.astype(bf16),                         # [H, 128] padded
        "fc2_b": fc2_b_pad,                                      # [1, 128] padded
    }


# ----------------------------- main ------------------------------------------
if __name__ == "__main__":
    root = jax.random.PRNGKey(0)
    k_param, k_ids = jax.random.split(root)

    params = init_params(k_param)
    packed = pack_params(params)

    ids = jax.random.randint(k_ids, (BATCH, SEQ), 0, VOCAB, dtype=jnp.int32)
    # attention mask: batch 0 fully attended, batch 1 has last 2 tokens padded.
    mask = jnp.ones((BATCH, SEQ), jnp.int32).at[1, SEQ - 2:].set(0)

    logits = jax.jit(bert_binary_classifier_forward)(packed, ids, mask)
    jax.block_until_ready(logits)
    assert logits.shape == (BATCH, N_LABEL)
    print("KERNEL_OK")
</pallas_src>

<mosaic_0001>
module attributes {stable_mosaic.version = 11 : i64} {
  func.func @_fused_bert_kernel(%arg0: memref<16x1xi32, #tpu.memory_space<vmem>>, %arg1: memref<2x8xf32, #tpu.memory_space<vmem>>, %arg2: memref<100x32xbf16, #tpu.memory_space<vmem>>, %arg3: memref<16x32xf32, #tpu.memory_space<vmem>>, %arg4: memref<1x32xf32, #tpu.memory_space<vmem>>, %arg5: memref<1x32xf32, #tpu.memory_space<vmem>>, %arg6: memref<12x32x16xbf16, #tpu.memory_space<vmem>>, %arg7: memref<12x1x16xf32, #tpu.memory_space<vmem>>, %arg8: memref<4x16x32xbf16, #tpu.memory_space<vmem>>, %arg9: memref<2x1x32xf32, #tpu.memory_space<vmem>>, %arg10: memref<2x1x32xf32, #tpu.memory_space<vmem>>, %arg11: memref<2x1x32xf32, #tpu.memory_space<vmem>>, %arg12: memref<2x32x64xbf16, #tpu.memory_space<vmem>>, %arg13: memref<2x1x64xf32, #tpu.memory_space<vmem>>, %arg14: memref<2x64x32xbf16, #tpu.memory_space<vmem>>, %arg15: memref<2x1x32xf32, #tpu.memory_space<vmem>>, %arg16: memref<2x1x32xf32, #tpu.memory_space<vmem>>, %arg17: memref<2x1x32xf32, #tpu.memory_space<vmem>>, %arg18: memref<32x32xbf16, #tpu.memory_space<vmem>>, %arg19: memref<1x32xf32, #tpu.memory_space<vmem>>, %arg20: memref<32x128xbf16, #tpu.memory_space<vmem>>, %arg21: memref<1x128xf32, #tpu.memory_space<vmem>>, %arg22: memref<2x128xf32, #tpu.memory_space<vmem>>) attributes {dimension_semantics = [], scalar_prefetch = 0 : i64, scratch_operands = 0 : i64, tpu.core_type = #tpu.core_type<tc>} {
    %0 = tpu.iota {dimensions = array<i32: 1>} : vector<16x100xi32>
    %c0 = arith.constant 0 : index
    %c0_0 = arith.constant 0 : index
    %1 = vector.load %arg0[%c0, %c0_0] : memref<16x1xi32, #tpu.memory_space<vmem>>, vector<16x1xi32>
    %2 = vector.broadcast %1 : vector<16x1xi32> to vector<16x100xi32>
    %3 = arith.cmpi eq, %2, %0 : vector<16x100xi32>
    %cst = arith.constant 1.000000e+00 : f32
    %cst_1 = arith.constant 0.000000e+00 : f32
    %4 = vector.broadcast %cst : f32 to vector<16x100xf32>
    %5 = vector.broadcast %cst_1 : f32 to vector<16x100xf32>
    %6 = arith.select %3, %4, %5 : vector<16x100xi1>, vector<16x100xf32>
    %7 = arith.truncf %6 : vector<16x100xf32> to vector<16x100xbf16>
    %c0_2 = arith.constant 0 : index
    %c0_3 = arith.constant 0 : index
    %8 = vector.load %arg2[%c0_2, %c0_3] : memref<100x32xbf16, #tpu.memory_space<vmem>>, vector<100x32xbf16>
    %cst_4 = arith.constant dense<0.000000e+00> : vector<16x32xf32>
    %9 = tpu.matmul %7, %8, %cst_4 {dimension_numbers = #tpu.dot_dimension_numbers<[1], [0], [0], [1], [0, 0, 1, 1], [], []>} : vector<16x100xbf16>, vector<100x32xbf16>, vector<16x32xf32> -> vector<16x32xf32>
    %c0_5 = arith.constant 0 : index
    %c0_6 = arith.constant 0 : index
    %10 = vector.load %arg3[%c0_5, %c0_6] : memref<16x32xf32, #tpu.memory_space<vmem>>, vector<16x32xf32>
    %11 = arith.addf %9, %10 : vector<16x32xf32>
    %c0_7 = arith.constant 0 : index
    %c0_8 = arith.constant 0 : index
    %12 = vector.load %arg4[%c0_7, %c0_8] : memref<1x32xf32, #tpu.memory_space<vmem>>, vector<1x32xf32>
    %c0_9 = arith.constant 0 : index
    %c0_10 = arith.constant 0 : index
    %13 = vector.load %arg5[%c0_9, %c0_10] : memref<1x32xf32, #tpu.memory_space<vmem>>, vector<1x32xf32>
    %cst_11 = arith.constant dense<0.000000e+00> : vector<16xf32>
    %14 = vector.multi_reduction <add>, %11, %cst_11 [1] : vector<16x32xf32> to vector<16xf32>
    %15 = vector.shape_cast %14 : vector<16xf32> to vector<16x1xf32>
    %cst_12 = arith.constant 3.200000e+01 : f32
    %16 = vector.broadcast %cst_12 : f32 to vector<16x1xf32>
    %17 = arith.divf %15, %16 : vector<16x1xf32>
    %18 = vector.broadcast %17 : vector<16x1xf32> to vector<16x32xf32>
    %19 = arith.subf %11, %18 : vector<16x32xf32>
    %20 = arith.mulf %19, %19 : vector<16x32xf32>
    %cst_13 = arith.constant dense<0.000000e+00> : vector<16xf32>
    %21 = vector.multi_reduction <add>, %20, %cst_13 [1] : vector<16x32xf32> to vector<16xf32>
    %22 = vector.shape_cast %21 : vector<16xf32> to vector<16x1xf32>
    %cst_14 = arith.constant 3.200000e+01 : f32
    %23 = vector.broadcast %cst_14 : f32 to vector<16x1xf32>
    %24 = arith.divf %22, %23 : vector<16x1xf32>
    %25 = vector.broadcast %17 : vector<16x1xf32> to vector<16x32xf32>
    %26 = arith.subf %11, %25 : vector<16x32xf32>
    %cst_15 = arith.constant 9.99999996E-13 : f32
    %27 = vector.broadcast %cst_15 : f32 to vector<16x1xf32>
    %28 = arith.addf %24, %27 : vector<16x1xf32>
    %29 = math.rsqrt %28 : vector<16x1xf32>
    %30 = vector.broadcast %29 : vector<16x1xf32> to vector<16x32xf32>
    %31 = arith.mulf %26, %30 : vector<16x32xf32>
    %32 = vector.broadcast %12 : vector<1x32xf32> to vector<16x32xf32>
    %33 = arith.mulf %31, %32 : vector<16x32xf32>
    %34 = vector.broadcast %13 : vector<1x32xf32> to vector<16x32xf32>
    %35 = arith.addf %33, %34 : vector<16x32xf32>
    %c0_16 = arith.constant 0 : index
    %c0_17 = arith.constant 0 : index
    %36 = vector.load %arg1[%c0_16, %c0_17] : memref<2x8xf32, #tpu.memory_space<vmem>>, vector<2x8xf32>
    %cst_18 = arith.constant 1.000000e+00 : f32
    %37 = vector.broadcast %cst_18 : f32 to vector<2x8xf32>
    %38 = arith.subf %37, %36 : vector<2x8xf32>
    %cst_19 = arith.constant -1.000000e+09 : f32
    %39 = vector.broadcast %cst_19 : f32 to vector<2x8xf32>
    %40 = arith.mulf %38, %39 : vector<2x8xf32>
    %41 = vector.shape_cast %40 : vector<2x8xf32> to vector<2x1x8xf32>
    %42 = vector.shape_cast %41 : vector<2x1x8xf32> to vector<2x1x8xf32>
    %43 = vector.broadcast %42 : vector<2x1x8xf32> to vector<2x8x8xf32>
    %c0_20 = arith.constant 0 : index
    %c0_21 = arith.constant 0 : index
    %c0_22 = arith.constant 0 : index
    %44 = vector.load %arg6[%c0_20, %c0_21, %c0_22] : memref<12x32x16xbf16, #tpu.memory_space<vmem>>, vector<1x32x16xbf16>
    %45 = vector.shape_cast %44 : vector<1x32x16xbf16> to vector<32x16xbf16>
    %46 = arith.truncf %35 : vector<16x32xf32> to vector<16x32xbf16>
    %cst_23 = arith.constant dense<0.000000e+00> : vector<16x16xf32>
    %47 = tpu.matmul %46, %45, %cst_23 {dimension_numbers = #tpu.dot_dimension_numbers<[1], [0], [0], [1], [0, 0, 1, 1], [], []>} : vector<16x32xbf16>, vector<32x16xbf16>, vector<16x16xf32> -> vector<16x16xf32>
    %c0_24 = arith.constant 0 : index
    %c0_25 = arith.constant 0 : index
    %c0_26 = arith.constant 0 : index
    %48 = vector.load %arg7[%c0_24, %c0_25, %c0_26] : memref<12x1x16xf32, #tpu.memory_space<vmem>>, vector<1x1x16xf32>
    %49 = vector.shape_cast %48 : vector<1x1x16xf32> to vector<1x16xf32>
    %50 = vector.broadcast %49 : vector<1x16xf32> to vector<16x16xf32>
    %51 = arith.addf %47, %50 : vector<16x16xf32>
    %52 = vector.shape_cast %51 : vector<16x16xf32> to vector<2x8x16xf32>
    %c1 = arith.constant 1 : index
    %c0_27 = arith.constant 0 : index
    %c0_28 = arith.constant 0 : index
    %53 = vector.load %arg6[%c1, %c0_27, %c0_28] : memref<12x32x16xbf16, #tpu.memory_space<vmem>>, vector<1x32x16xbf16>
    %54 = vector.shape_cast %53 : vector<1x32x16xbf16> to vector<32x16xbf16>
    %55 = arith.truncf %35 : vector<16x32xf32> to vector<16x32xbf16>
    %cst_29 = arith.constant dense<0.000000e+00> : vector<16x16xf32>
    %56 = tpu.matmul %55, %54, %cst_29 {dimension_numbers = #tpu.dot_dimension_numbers<[1], [0], [0], [1], [0, 0, 1, 1], [], []>} : vector<16x32xbf16>, vector<32x16xbf16>, vector<16x16xf32> -> vector<16x16xf32>
    %c1_30 = arith.constant 1 : index
    %c0_31 = arith.constant 0 : index
    %c0_32 = arith.constant 0 : index
    %57 = vector.load %arg7[%c1_30, %c0_31, %c0_32] : memref<12x1x16xf32, #tpu.memory_space<vmem>>, vector<1x1x16xf32>
    %58 = vector.shape_cast %57 : vector<1x1x16xf32> to vector<1x16xf32>
    %59 = vector.broadcast %58 : vector<1x16xf32> to vector<16x16xf32>
    %60 = arith.addf %56, %59 : vector<16x16xf32>
    %61 = vector.shape_cast %60 : vector<16x16xf32> to vector<2x8x16xf32>
    %c2 = arith.constant 2 : index
    %c0_33 = arith.constant 0 : index
    %c0_34 = arith.constant 0 : index
    %62 = vector.load %arg6[%c2, %c0_33, %c0_34] : memref<12x32x16xbf16, #tpu.memory_space<vmem>>, vector<1x32x16xbf16>
    %63 = vector.shape_cast %62 : vector<1x32x16xbf16> to vector<32x16xbf16>
    %64 = arith.truncf %35 : vector<16x32xf32> to vector<16x32xbf16>
    %cst_35 = arith.constant dense<0.000000e+00> : vector<16x16xf32>
    %65 = tpu.matmul %64, %63, %cst_35 {dimension_numbers = #tpu.dot_dimension_numbers<[1], [0], [0], [1], [0, 0, 1, 1], [], []>} : vector<16x32xbf16>, vector<32x16xbf16>, vector<16x16xf32> -> vector<16x16xf32>
    %c2_36 = arith.constant 2 : index
    %c0_37 = arith.constant 0 : index
    %c0_38 = arith.constant 0 : index
    %66 = vector.load %arg7[%c2_36, %c0_37, %c0_38] : memref<12x1x16xf32, #tpu.memory_space<vmem>>, vector<1x1x16xf32>
    %67 = vector.shape_cast %66 : vector<1x1x16xf32> to vector<1x16xf32>
    %68 = vector.broadcast %67 : vector<1x16xf32> to vector<16x16xf32>
    %69 = arith.addf %65, %68 : vector<16x16xf32>
    %70 = vector.shape_cast %69 : vector<16x16xf32> to vector<2x8x16xf32>
    %71 = arith.truncf %52 : vector<2x8x16xf32> to vector<2x8x16xbf16>
    %72 = arith.truncf %61 : vector<2x8x16xf32> to vector<2x8x16xbf16>
    "tpu.trace_start"() <{level = 10 : i32, message = "bqd,bkd->bqk"}> : () -> ()
    %cst_39 = arith.constant dense<0.000000e+00> : vector<2x8x8xf32>
    %73 = tpu.matmul %71, %72, %cst_39 {dimension_numbers = #tpu.dot_dimension_numbers<[2], [2], [1], [1], [0, 0, 0, 1, 1, 1], [0], [0]>} : vector<2x8x16xbf16>, vector<2x8x16xbf16>, vector<2x8x8xf32> -> vector<2x8x8xf32>
    "tpu.trace_stop"() : () -> ()
    %cst_40 = arith.constant 2.500000e-01 : f32
    %74 = vector.broadcast %cst_40 : f32 to vector<2x8x8xf32>
    %75 = arith.mulf %73, %74 : vector<2x8x8xf32>
    %76 = arith.addf %75, %43 : vector<2x8x8xf32>
    %cst_41 = arith.constant dense<0xFF800000> : vector<2x8xf32>
    %77 = vector.multi_reduction <maximumf>, %76, %cst_41 [2] : vector<2x8x8xf32> to vector<2x8xf32>
    %78 = vector.shape_cast %77 : vector<2x8xf32> to vector<2x8x1xf32>
    %79 = vector.broadcast %78 : vector<2x8x1xf32> to vector<2x8x8xf32>
    %80 = arith.subf %76, %79 : vector<2x8x8xf32>
    %81 = math.exp %80 : vector<2x8x8xf32>
    %cst_42 = arith.constant dense<0.000000e+00> : vector<2x8xf32>
    %82 = vector.multi_reduction <add>, %81, %cst_42 [2] : vector<2x8x8xf32> to vector<2x8xf32>
    %83 = vector.shape_cast %82 : vector<2x8xf32> to vector<2x8x1xf32>
    %84 = tpu.reciprocal %83 {approx = true} : vector<2x8x1xf32> -> vector<2x8x1xf32>
    %85 = vector.broadcast %84 : vector<2x8x1xf32> to vector<2x8x8xf32>
    %86 = arith.mulf %81, %85 : vector<2x8x8xf32>
    %87 = arith.truncf %86 : vector<2x8x8xf32> to vector<2x8x8xbf16>
    %88 = arith.truncf %70 : vector<2x8x16xf32> to vector<2x8x16xbf16>
    "tpu.trace_start"() <{level = 10 : i32, message = "bqk,bkd->bqd"}> : () -> ()
    %cst_43 = arith.constant dense<0.000000e+00> : vector<2x8x16xf32>
    %89 = tpu.matmul %87, %88, %cst_43 {dimension_numbers = #tpu.dot_dimension_numbers<[2], [1], [1], [2], [0, 0, 0, 1, 1, 2], [0], [0]>} : vector<2x8x8xbf16>, vector<2x8x16xbf16>, vector<2x8x16xf32> -> vector<2x8x16xf32>
    "tpu.trace_stop"() : () -> ()
    %90 = vector.shape_cast %89 : vector<2x8x16xf32> to vector<16x16xf32>
    %c0_44 = arith.constant 0 : index
    %c0_45 = arith.constant 0 : index
    %c0_46 = arith.constant 0 : index
    %91 = vector.load %arg8[%c0_44, %c0_45, %c0_46] : memref<4x16x32xbf16, #tpu.memory_space<vmem>>, vector<1x16x32xbf16>
    %92 = vector.shape_cast %91 : vector<1x16x32xbf16> to vector<16x32xbf16>
    %93 = arith.truncf %90 : vector<16x16xf32> to vector<16x16xbf16>
    %cst_47 = arith.constant dense<0.000000e+00> : vector<16x32xf32>
    %94 = tpu.matmul %93, %92, %cst_47 {dimension_numbers = #tpu.dot_dimension_numbers<[1], [0], [0], [1], [0, 0, 1, 1], [], []>} : vector<16x16xbf16>, vector<16x32xbf16>, vector<16x32xf32> -> vector<16x32xf32>
    %c3 = arith.constant 3 : index
    %c0_48 = arith.constant 0 : index
    %c0_49 = arith.constant 0 : index
    %95 = vector.load %arg6[%c3, %c0_48, %c0_49] : memref<12x32x16xbf16, #tpu.memory_space<vmem>>, vector<1x32x16xbf16>
    %96 = vector.shape_cast %95 : vector<1x32x16xbf16> to vector<32x16xbf16>
    %97 = arith.truncf %35 : vector<16x32xf32> to vector<16x32xbf16>
    %cst_50 = arith.constant dense<0.000000e+00> : vector<16x16xf32>
    %98 = tpu.matmul %97, %96, %cst_50 {dimension_numbers = #tpu.dot_dimension_numbers<[1], [0], [0], [1], [0, 0, 1, 1], [], []>} : vector<16x32xbf16>, vector<32x16xbf16>, vector<16x16xf32> -> vector<16x16xf32>
    %c3_51 = arith.constant 3 : index
    %c0_52 = arith.constant 0 : index
    %c0_53 = arith.constant 0 : index
    %99 = vector.load %arg7[%c3_51, %c0_52, %c0_53] : memref<12x1x16xf32, #tpu.memory_space<vmem>>, vector<1x1x16xf32>
    %100 = vector.shape_cast %99 : vector<1x1x16xf32> to vector<1x16xf32>
    %101 = vector.broadcast %100 : vector<1x16xf32> to vector<16x16xf32>
    %102 = arith.addf %98, %101 : vector<16x16xf32>
    %103 = vector.shape_cast %102 : vector<16x16xf32> to vector<2x8x16xf32>
    %c4 = arith.constant 4 : index
    %c0_54 = arith.constant 0 : index
    %c0_55 = arith.constant 0 : index
    %104 = vector.load %arg6[%c4, %c0_54, %c0_55] : memref<12x32x16xbf16, #tpu.memory_space<vmem>>, vector<1x32x16xbf16>
    %105 = vector.shape_cast %104 : vector<1x32x16xbf16> to vector<32x16xbf16>
    %106 = arith.truncf %35 : vector<16x32xf32> to vector<16x32xbf16>
    %cst_56 = arith.constant dense<0.000000e+00> : vector<16x16xf32>
    %107 = tpu.matmul %106, %105, %cst_56 {dimension_numbers = #tpu.dot_dimension_numbers<[1], [0], [0], [1], [0, 0, 1, 1], [], []>} : vector<16x32xbf16>, vector<32x16xbf16>, vector<16x16xf32> -> vector<16x16xf32>
    %c4_57 = arith.constant 4 : index
    %c0_58 = arith.constant 0 : index
    %c0_59 = arith.constant 0 : index
    %108 = vector.load %arg7[%c4_57, %c0_58, %c0_59] : memref<12x1x16xf32, #tpu.memory_space<vmem>>, vector<1x1x16xf32>
    %109 = vector.shape_cast %108 : vector<1x1x16xf32> to vector<1x16xf32>
    %110 = vector.broadcast %109 : vector<1x16xf32> to vector<16x16xf32>
    %111 = arith.addf %107, %110 : vector<16x16xf32>
    %112 = vector.shape_cast %111 : vector<16x16xf32> to vector<2x8x16xf32>
    %c5 = arith.constant 5 : index
    %c0_60 = arith.constant 0 : index
    %c0_61 = arith.constant 0 : index
    %113 = vector.load %arg6[%c5, %c0_60, %c0_61] : memref<12x32x16xbf16, #tpu.memory_space<vmem>>, vector<1x32x16xbf16>
    %114 = vector.shape_cast %113 : vector<1x32x16xbf16> to vector<32x16xbf16>
    %115 = arith.truncf %35 : vector<16x32xf32> to vector<16x32xbf16>
    %cst_62 = arith.constant dense<0.000000e+00> : vector<16x16xf32>
    %116 = tpu.matmul %115, %114, %cst_62 {dimension_numbers = #tpu.dot_dimension_numbers<[1], [0], [0], [1], [0, 0, 1, 1], [], []>} : vector<16x32xbf16>, vector<32x16xbf16>, vector<16x16xf32> -> vector<16x16xf32>
    %c5_63 = arith.constant 5 : index
    %c0_64 = arith.constant 0 : index
    %c0_65 = arith.constant 0 : index
    %117 = vector.load %arg7[%c5_63, %c0_64, %c0_65] : memref<12x1x16xf32, #tpu.memory_space<vmem>>, vector<1x1x16xf32>
    %118 = vector.shape_cast %117 : vector<1x1x16xf32> to vector<1x16xf32>
    %119 = vector.broadcast %118 : vector<1x16xf32> to vector<16x16xf32>
    %120 = arith.addf %116, %119 : vector<16x16xf32>
    %121 = vector.shape_cast %120 : vector<16x16xf32> to vector<2x8x16xf32>
    %122 = arith.truncf %103 : vector<2x8x16xf32> to vector<2x8x16xbf16>
    %123 = arith.truncf %112 : vector<2x8x16xf32> to vector<2x8x16xbf16>
    "tpu.trace_start"() <{level = 10 : i32, message = "bqd,bkd->bqk"}> : () -> ()
    %cst_66 = arith.constant dense<0.000000e+00> : vector<2x8x8xf32>
    %124 = tpu.matmul %122, %123, %cst_66 {dimension_numbers = #tpu.dot_dimension_numbers<[2], [2], [1], [1], [0, 0, 0, 1, 1, 1], [0], [0]>} : vector<2x8x16xbf16>, vector<2x8x16xbf16>, vector<2x8x8xf32> -> vector<2x8x8xf32>
    "tpu.trace_stop"() : () -> ()
    %cst_67 = arith.constant 2.500000e-01 : f32
    %125 = vector.broadcast %cst_67 : f32 to vector<2x8x8xf32>
    %126 = arith.mulf %124, %125 : vector<2x8x8xf32>
    %127 = arith.addf %126, %43 : vector<2x8x8xf32>
    %cst_68 = arith.constant dense<0xFF800000> : vector<2x8xf32>
    %128 = vector.multi_reduction <maximumf>, %127, %cst_68 [2] : vector<2x8x8xf32> to vector<2x8xf32>
    %129 = vector.shape_cast %128 : vector<2x8xf32> to vector<2x8x1xf32>
    %130 = vector.broadcast %129 : vector<2x8x1xf32> to vector<2x8x8xf32>
    %131 = arith.subf %127, %130 : vector<2x8x8xf32>
    %132 = math.exp %131 : vector<2x8x8xf32>
    %cst_69 = arith.constant dense<0.000000e+00> : vector<2x8xf32>
    %133 = vector.multi_reduction <add>, %132, %cst_69 [2] : vector<2x8x8xf32> to vector<2x8xf32>
    %134 = vector.shape_cast %133 : vector<2x8xf32> to vector<2x8x1xf32>
    %135 = tpu.reciprocal %134 {approx = true} : vector<2x8x1xf32> -> vector<2x8x1xf32>
    %136 = vector.broadcast %135 : vector<2x8x1xf32> to vector<2x8x8xf32>
    %137 = arith.mulf %132, %136 : vector<2x8x8xf32>
    %138 = arith.truncf %137 : vector<2x8x8xf32> to vector<2x8x8xbf16>
    %139 = arith.truncf %121 : vector<2x8x16xf32> to vector<2x8x16xbf16>
    "tpu.trace_start"() <{level = 10 : i32, message = "bqk,bkd->bqd"}> : () -> ()
    %cst_70 = arith.constant dense<0.000000e+00> : vector<2x8x16xf32>
    %140 = tpu.matmul %138, %139, %cst_70 {dimension_numbers = #tpu.dot_dimension_numbers<[2], [1], [1], [2], [0, 0, 0, 1, 1, 2], [0], [0]>} : vector<2x8x8xbf16>, vector<2x8x16xbf16>, vector<2x8x16xf32> -> vector<2x8x16xf32>
    "tpu.trace_stop"() : () -> ()
    %141 = vector.shape_cast %140 : vector<2x8x16xf32> to vector<16x16xf32>
    %c1_71 = arith.constant 1 : index
    %c0_72 = arith.constant 0 : index
    %c0_73 = arith.constant 0 : index
    %142 = vector.load %arg8[%c1_71, %c0_72, %c0_73] : memref<4x16x32xbf16, #tpu.memory_space<vmem>>, vector<1x16x32xbf16>
    %143 = vector.shape_cast %142 : vector<1x16x32xbf16> to vector<16x32xbf16>
    %144 = arith.truncf %141 : vector<16x16xf32> to vector<16x16xbf16>
    %cst_74 = arith.constant dense<0.000000e+00> : vector<16x32xf32>
    %145 = tpu.matmul %144, %143, %cst_74 {dimension_numbers = #tpu.dot_dimension_numbers<[1], [0], [0], [1], [0, 0, 1, 1], [], []>} : vector<16x16xbf16>, vector<16x32xbf16>, vector<16x32xf32> -> vector<16x32xf32>
    %146 = arith.addf %94, %145 : vector<16x32xf32>
    %c0_75 = arith.constant 0 : index
    %c0_76 = arith.constant 0 : index
    %c0_77 = arith.constant 0 : index
    %147 = vector.load %arg9[%c0_75, %c0_76, %c0_77] : memref<2x1x32xf32, #tpu.memory_space<vmem>>, vector<1x1x32xf32>
    %148 = vector.shape_cast %147 : vector<1x1x32xf32> to vector<1x32xf32>
    %149 = vector.broadcast %148 : vector<1x32xf32> to vector<16x32xf32>
    %150 = arith.addf %146, %149 : vector<16x32xf32>
    %151 = arith.addf %150, %35 : vector<16x32xf32>
    %c0_78 = arith.constant 0 : index
    %c0_79 = arith.constant 0 : index
    %c0_80 = arith.constant 0 : index
    %152 = vector.load %arg10[%c0_78, %c0_79, %c0_80] : memref<2x1x32xf32, #tpu.memory_space<vmem>>, vector<1x1x32xf32>
    %153 = vector.shape_cast %152 : vector<1x1x32xf32> to vector<1x32xf32>
    %c0_81 = arith.constant 0 : index
    %c0_82 = arith.constant 0 : index
    %c0_83 = arith.constant 0 : index
    %154 = vector.load %arg11[%c0_81, %c0_82, %c0_83] : memref<2x1x32xf32, #tpu.memory_space<vmem>>, vector<1x1x32xf32>
    %155 = vector.shape_cast %154 : vector<1x1x32xf32> to vector<1x32xf32>
    %cst_84 = arith.constant dense<0.000000e+00> : vector<16xf32>
    %156 = vector.multi_reduction <add>, %151, %cst_84 [1] : vector<16x32xf32> to vector<16xf32>
    %157 = vector.shape_cast %156 : vector<16xf32> to vector<16x1xf32>
    %cst_85 = arith.constant 3.200000e+01 : f32
    %158 = vector.broadcast %cst_85 : f32 to vector<16x1xf32>
    %159 = arith.divf %157, %158 : vector<16x1xf32>
    %160 = vector.broadcast %159 : vector<16x1xf32> to vector<16x32xf32>
    %161 = arith.subf %151, %160 : vector<16x32xf32>
    %162 = arith.mulf %161, %161 : vector<16x32xf32>
    %cst_86 = arith.constant dense<0.000000e+00> : vector<16xf32>
    %163 = vector.multi_reduction <add>, %162, %cst_86 [1] : vector<16x32xf32> to vector<16xf32>
    %164 = vector.shape_cast %163 : vector<16xf32> to vector<16x1xf32>
    %cst_87 = arith.constant 3.200000e+01 : f32
    %165 = vector.broadcast %cst_87 : f32 to vector<16x1xf32>
    %166 = arith.divf %164, %165 : vector<16x1xf32>
    %167 = vector.broadcast %159 : vector<16x1xf32> to vector<16x32xf32>
    %168 = arith.subf %151, %167 : vector<16x32xf32>
    %cst_88 = arith.constant 9.99999996E-13 : f32
    %169 = vector.broadcast %cst_88 : f32 to vector<16x1xf32>
    %170 = arith.addf %166, %169 : vector<16x1xf32>
    %171 = math.rsqrt %170 : vector<16x1xf32>
    %172 = vector.broadcast %171 : vector<16x1xf32> to vector<16x32xf32>
    %173 = arith.mulf %168, %172 : vector<16x32xf32>
    %174 = vector.broadcast %153 : vector<1x32xf32> to vector<16x32xf32>
    %175 = arith.mulf %173, %174 : vector<16x32xf32>
    %176 = vector.broadcast %155 : vector<1x32xf32> to vector<16x32xf32>
    %177 = arith.addf %175, %176 : vector<16x32xf32>
    %c0_89 = arith.constant 0 : index
    %c0_90 = arith.constant 0 : index
    %c0_91 = arith.constant 0 : index
    %178 = vector.load %arg12[%c0_89, %c0_90, %c0_91] : memref<2x32x64xbf16, #tpu.memory_space<vmem>>, vector<1x32x64xbf16>
    %179 = vector.shape_cast %178 : vector<1x32x64xbf16> to vector<32x64xbf16>
    %180 = arith.truncf %177 : vector<16x32xf32> to vector<16x32xbf16>
    %cst_92 = arith.constant dense<0.000000e+00> : vector<16x64xf32>
    %181 = tpu.matmul %180, %179, %cst_92 {dimension_numbers = #tpu.dot_dimension_numbers<[1], [0], [0], [1], [0, 0, 1, 1], [], []>} : vector<16x32xbf16>, vector<32x64xbf16>, vector<16x64xf32> -> vector<16x64xf32>
    %c0_93 = arith.constant 0 : index
    %c0_94 = arith.constant 0 : index
    %c0_95 = arith.constant 0 : index
    %182 = vector.load %arg13[%c0_93, %c0_94, %c0_95] : memref<2x1x64xf32, #tpu.memory_space<vmem>>, vector<1x1x64xf32>
    %183 = vector.shape_cast %182 : vector<1x1x64xf32> to vector<1x64xf32>
    %184 = vector.broadcast %183 : vector<1x64xf32> to vector<16x64xf32>
    %185 = arith.addf %181, %184 : vector<16x64xf32>
    %cst_96 = arith.constant 5.000000e-01 : f32
    %186 = vector.broadcast %cst_96 : f32 to vector<16x64xf32>
    %187 = arith.mulf %186, %185 : vector<16x64xf32>
    %cst_97 = arith.constant 4.471500e-02 : f32
    %188 = vector.broadcast %cst_97 : f32 to vector<16x64xf32>
    %189 = arith.mulf %188, %185 : vector<16x64xf32>
    %190 = arith.mulf %189, %185 : vector<16x64xf32>
    %191 = arith.mulf %190, %185 : vector<16x64xf32>
    %192 = arith.addf %185, %191 : vector<16x64xf32>
    %cst_98 = arith.constant 0.797884583 : f32
    %193 = vector.broadcast %cst_98 : f32 to vector<16x64xf32>
    %194 = arith.mulf %193, %192 : vector<16x64xf32>
    %195 = math.tanh %194 : vector<16x64xf32>
    %cst_99 = arith.constant 1.000000e+00 : f32
    %196 = vector.broadcast %cst_99 : f32 to vector<16x64xf32>
    %197 = arith.addf %196, %195 : vector<16x64xf32>
    %198 = arith.mulf %187, %197 : vector<16x64xf32>
    %c0_100 = arith.constant 0 : index
    %c0_101 = arith.constant 0 : index
    %c0_102 = arith.constant 0 : index
    %199 = vector.load %arg14[%c0_100, %c0_101, %c0_102] : memref<2x64x32xbf16, #tpu.memory_space<vmem>>, vector<1x64x32xbf16>
    %200 = vector.shape_cast %199 : vector<1x64x32xbf16> to vector<64x32xbf16>
    %201 = arith.truncf %198 : vector<16x64xf32> to vector<16x64xbf16>
    %cst_103 = arith.constant dense<0.000000e+00> : vector<16x32xf32>
    %202 = tpu.matmul %201, %200, %cst_103 {dimension_numbers = #tpu.dot_dimension_numbers<[1], [0], [0], [1], [0, 0, 1, 1], [], []>} : vector<16x64xbf16>, vector<64x32xbf16>, vector<16x32xf32> -> vector<16x32xf32>
    %c0_104 = arith.constant 0 : index
    %c0_105 = arith.constant 0 : index
    %c0_106 = arith.constant 0 : index
    %203 = vector.load %arg15[%c0_104, %c0_105, %c0_106] : memref<2x1x32xf32, #tpu.memory_space<vmem>>, vector<1x1x32xf32>
    %204 = vector.shape_cast %203 : vector<1x1x32xf32> to vector<1x32xf32>
    %205 = vector.broadcast %204 : vector<1x32xf32> to vector<16x32xf32>
    %206 = arith.addf %202, %205 : vector<16x32xf32>
    %207 = arith.addf %206, %177 : vector<16x32xf32>
    %c0_107 = arith.constant 0 : index
    %c0_108 = arith.constant 0 : index
    %c0_109 = arith.constant 0 : index
    %208 = vector.load %arg16[%c0_107, %c0_108, %c0_109] : memref<2x1x32xf32, #tpu.memory_space<vmem>>, vector<1x1x32xf32>
    %209 = vector.shape_cast %208 : vector<1x1x32xf32> to vector<1x32xf32>
    %c0_110 = arith.constant 0 : index
    %c0_111 = arith.constant 0 : index
    %c0_112 = arith.constant 0 : index
    %210 = vector.load %arg17[%c0_110, %c0_111, %c0_112] : memref<2x1x32xf32, #tpu.memory_space<vmem>>, vector<1x1x32xf32>
    %211 = vector.shape_cast %210 : vector<1x1x32xf32> to vector<1x32xf32>
    %cst_113 = arith.constant dense<0.000000e+00> : vector<16xf32>
    %212 = vector.multi_reduction <add>, %207, %cst_113 [1] : vector<16x32xf32> to vector<16xf32>
    %213 = vector.shape_cast %212 : vector<16xf32> to vector<16x1xf32>
    %cst_114 = arith.constant 3.200000e+01 : f32
    %214 = vector.broadcast %cst_114 : f32 to vector<16x1xf32>
    %215 = arith.divf %213, %214 : vector<16x1xf32>
    %216 = vector.broadcast %215 : vector<16x1xf32> to vector<16x32xf32>
    %217 = arith.subf %207, %216 : vector<16x32xf32>
    %218 = arith.mulf %217, %217 : vector<16x32xf32>
    %cst_115 = arith.constant dense<0.000000e+00> : vector<16xf32>
    %219 = vector.multi_reduction <add>, %218, %cst_115 [1] : vector<16x32xf32> to vector<16xf32>
    %220 = vector.shape_cast %219 : vector<16xf32> to vector<16x1xf32>
    %cst_116 = arith.constant 3.200000e+01 : f32
    %221 = vector.broadcast %cst_116 : f32 to vector<16x1xf32>
    %222 = arith.divf %220, %221 : vector<16x1xf32>
    %223 = vector.broadcast %215 : vector<16x1xf32> to vector<16x32xf32>
    %224 = arith.subf %207, %223 : vector<16x32xf32>
    %cst_117 = arith.constant 9.99999996E-13 : f32
    %225 = vector.broadcast %cst_117 : f32 to vector<16x1xf32>
    %226 = arith.addf %222, %225 : vector<16x1xf32>
    %227 = math.rsqrt %226 : vector<16x1xf32>
    %228 = vector.broadcast %227 : vector<16x1xf32> to vector<16x32xf32>
    %229 = arith.mulf %224, %228 : vector<16x32xf32>
    %230 = vector.broadcast %209 : vector<1x32xf32> to vector<16x32xf32>
    %231 = arith.mulf %229, %230 : vector<16x32xf32>
    %232 = vector.broadcast %211 : vector<1x32xf32> to vector<16x32xf32>
    %233 = arith.addf %231, %232 : vector<16x32xf32>
    %c6 = arith.constant 6 : index
    %c0_118 = arith.constant 0 : index
    %c0_119 = arith.constant 0 : index
    %234 = vector.load %arg6[%c6, %c0_118, %c0_119] : memref<12x32x16xbf16, #tpu.memory_space<vmem>>, vector<1x32x16xbf16>
    %235 = vector.shape_cast %234 : vector<1x32x16xbf16> to vector<32x16xbf16>
    %236 = arith.truncf %233 : vector<16x32xf32> to vector<16x32xbf16>
    %cst_120 = arith.constant dense<0.000000e+00> : vector<16x16xf32>
    %237 = tpu.matmul %236, %235, %cst_120 {dimension_numbers = #tpu.dot_dimension_numbers<[1], [0], [0], [1], [0, 0, 1, 1], [], []>} : vector<16x32xbf16>, vector<32x16xbf16>, vector<16x16xf32> -> vector<16x16xf32>
    %c6_121 = arith.constant 6 : index
    %c0_122 = arith.constant 0 : index
    %c0_123 = arith.constant 0 : index
    %238 = vector.load %arg7[%c6_121, %c0_122, %c0_123] : memref<12x1x16xf32, #tpu.memory_space<vmem>>, vector<1x1x16xf32>
    %239 = vector.shape_cast %238 : vector<1x1x16xf32> to vector<1x16xf32>
    %240 = vector.broadcast %239 : vector<1x16xf32> to vector<16x16xf32>
    %241 = arith.addf %237, %240 : vector<16x16xf32>
    %242 = vector.shape_cast %241 : vector<16x16xf32> to vector<2x8x16xf32>
    %c7 = arith.constant 7 : index
    %c0_124 = arith.constant 0 : index
    %c0_125 = arith.constant 0 : index
    %243 = vector.load %arg6[%c7, %c0_124, %c0_125] : memref<12x32x16xbf16, #tpu.memory_space<vmem>>, vector<1x32x16xbf16>
    %244 = vector.shape_cast %243 : vector<1x32x16xbf16> to vector<32x16xbf16>
    %245 = arith.truncf %233 : vector<16x32xf32> to vector<16x32xbf16>
    %cst_126 = arith.constant dense<0.000000e+00> : vector<16x16xf32>
    %246 = tpu.matmul %245, %244, %cst_126 {dimension_numbers = #tpu.dot_dimension_numbers<[1], [0], [0], [1], [0, 0, 1, 1], [], []>} : vector<16x32xbf16>, vector<32x16xbf16>, vector<16x16xf32> -> vector<16x16xf32>
    %c7_127 = arith.constant 7 : index
    %c0_128 = arith.constant 0 : index
    %c0_129 = arith.constant 0 : index
    %247 = vector.load %arg7[%c7_127, %c0_128, %c0_129] : memref<12x1x16xf32, #tpu.memory_space<vmem>>, vector<1x1x16xf32>
    %248 = vector.shape_cast %247 : vector<1x1x16xf32> to vector<1x16xf32>
    %249 = vector.broadcast %248 : vector<1x16xf32> to vector<16x16xf32>
    %250 = arith.addf %246, %249 : vector<16x16xf32>
    %251 = vector.shape_cast %250 : vector<16x16xf32> to vector<2x8x16xf32>
    %c8 = arith.constant 8 : index
    %c0_130 = arith.constant 0 : index
    %c0_131 = arith.constant 0 : index
    %252 = vector.load %arg6[%c8, %c0_130, %c0_131] : memref<12x32x16xbf16, #tpu.memory_space<vmem>>, vector<1x32x16xbf16>
    %253 = vector.shape_cast %252 : vector<1x32x16xbf16> to vector<32x16xbf16>
    %254 = arith.truncf %233 : vector<16x32xf32> to vector<16x32xbf16>
    %cst_132 = arith.constant dense<0.000000e+00> : vector<16x16xf32>
    %255 = tpu.matmul %254, %253, %cst_132 {dimension_numbers = #tpu.dot_dimension_numbers<[1], [0], [0], [1], [0, 0, 1, 1], [], []>} : vector<16x32xbf16>, vector<32x16xbf16>, vector<16x16xf32> -> vector<16x16xf32>
    %c8_133 = arith.constant 8 : index
    %c0_134 = arith.constant 0 : index
    %c0_135 = arith.constant 0 : index
    %256 = vector.load %arg7[%c8_133, %c0_134, %c0_135] : memref<12x1x16xf32, #tpu.memory_space<vmem>>, vector<1x1x16xf32>
    %257 = vector.shape_cast %256 : vector<1x1x16xf32> to vector<1x16xf32>
    %258 = vector.broadcast %257 : vector<1x16xf32> to vector<16x16xf32>
    %259 = arith.addf %255, %258 : vector<16x16xf32>
    %260 = vector.shape_cast %259 : vector<16x16xf32> to vector<2x8x16xf32>
    %261 = arith.truncf %242 : vector<2x8x16xf32> to vector<2x8x16xbf16>
    %262 = arith.truncf %251 : vector<2x8x16xf32> to vector<2x8x16xbf16>
    "tpu.trace_start"() <{level = 10 : i32, message = "bqd,bkd->bqk"}> : () -> ()
    %cst_136 = arith.constant dense<0.000000e+00> : vector<2x8x8xf32>
    %263 = tpu.matmul %261, %262, %cst_136 {dimension_numbers = #tpu.dot_dimension_numbers<[2], [2], [1], [1], [0, 0, 0, 1, 1, 1], [0], [0]>} : vector<2x8x16xbf16>, vector<2x8x16xbf16>, vector<2x8x8xf32> -> vector<2x8x8xf32>
    "tpu.trace_stop"() : () -> ()
    %cst_137 = arith.constant 2.500000e-01 : f32
    %264 = vector.broadcast %cst_137 : f32 to vector<2x8x8xf32>
    %265 = arith.mulf %263, %264 : vector<2x8x8xf32>
    %266 = arith.addf %265, %43 : vector<2x8x8xf32>
    %cst_138 = arith.constant dense<0xFF800000> : vector<2x8xf32>
    %267 = vector.multi_reduction <maximumf>, %266, %cst_138 [2] : vector<2x8x8xf32> to vector<2x8xf32>
    %268 = vector.shape_cast %267 : vector<2x8xf32> to vector<2x8x1xf32>
    %269 = vector.broadcast %268 : vector<2x8x1xf32> to vector<2x8x8xf32>
    %270 = arith.subf %266, %269 : vector<2x8x8xf32>
    %271 = math.exp %270 : vector<2x8x8xf32>
    %cst_139 = arith.constant dense<0.000000e+00> : vector<2x8xf32>
    %272 = vector.multi_reduction <add>, %271, %cst_139 [2] : vector<2x8x8xf32> to vector<2x8xf32>
    %273 = vector.shape_cast %272 : vector<2x8xf32> to vector<2x8x1xf32>
    %274 = tpu.reciprocal %273 {approx = true} : vector<2x8x1xf32> -> vector<2x8x1xf32>
    %275 = vector.broadcast %274 : vector<2x8x1xf32> to vector<2x8x8xf32>
    %276 = arith.mulf %271, %275 : vector<2x8x8xf32>
    %277 = arith.truncf %276 : vector<2x8x8xf32> to vector<2x8x8xbf16>
    %278 = arith.truncf %260 : vector<2x8x16xf32> to vector<2x8x16xbf16>
    "tpu.trace_start"() <{level = 10 : i32, message = "bqk,bkd->bqd"}> : () -> ()
    %cst_140 = arith.constant dense<0.000000e+00> : vector<2x8x16xf32>
    %279 = tpu.matmul %277, %278, %cst_140 {dimension_numbers = #tpu.dot_dimension_numbers<[2], [1], [1], [2], [0, 0, 0, 1, 1, 2], [0], [0]>} : vector<2x8x8xbf16>, vector<2x8x16xbf16>, vector<2x8x16xf32> -> vector<2x8x16xf32>
    "tpu.trace_stop"() : () -> ()
    %280 = vector.shape_cast %279 : vector<2x8x16xf32> to vector<16x16xf32>
    %c2_141 = arith.constant 2 : index
    %c0_142 = arith.constant 0 : index
    %c0_143 = arith.constant 0 : index
    %281 = vector.load %arg8[%c2_141, %c0_142, %c0_143] : memref<4x16x32xbf16, #tpu.memory_space<vmem>>, vector<1x16x32xbf16>
    %282 = vector.shape_cast %281 : vector<1x16x32xbf16> to vector<16x32xbf16>
    %283 = arith.truncf %280 : vector<16x16xf32> to vector<16x16xbf16>
    %cst_144 = arith.constant dense<0.000000e+00> : vector<16x32xf32>
    %284 = tpu.matmul %283, %282, %cst_144 {dimension_numbers = #tpu.dot_dimension_numbers<[1], [0], [0], [1], [0, 0, 1, 1], [], []>} : vector<16x16xbf16>, vector<16x32xbf16>, vector<16x32xf32> -> vector<16x32xf32>
    %c9 = arith.constant 9 : index
    %c0_145 = arith.constant 0 : index
    %c0_146 = arith.constant 0 : index
    %285 = vector.load %arg6[%c9, %c0_145, %c0_146] : memref<12x32x16xbf16, #tpu.memory_space<vmem>>, vector<1x32x16xbf16>
    %286 = vector.shape_cast %285 : vector<1x32x16xbf16> to vector<32x16xbf16>
    %287 = arith.truncf %233 : vector<16x32xf32> to vector<16x32xbf16>
    %cst_147 = arith.constant dense<0.000000e+00> : vector<16x16xf32>
    %288 = tpu.matmul %287, %286, %cst_147 {dimension_numbers = #tpu.dot_dimension_numbers<[1], [0], [0], [1], [0, 0, 1, 1], [], []>} : vector<16x32xbf16>, vector<32x16xbf16>, vector<16x16xf32> -> vector<16x16xf32>
    %c9_148 = arith.constant 9 : index
    %c0_149 = arith.constant 0 : index
    %c0_150 = arith.constant 0 : index
    %289 = vector.load %arg7[%c9_148, %c0_149, %c0_150] : memref<12x1x16xf32, #tpu.memory_space<vmem>>, vector<1x1x16xf32>
    %290 = vector.shape_cast %289 : vector<1x1x16xf32> to vector<1x16xf32>
    %291 = vector.broadcast %290 : vector<1x16xf32> to vector<16x16xf32>
    %292 = arith.addf %288, %291 : vector<16x16xf32>
    %293 = vector.shape_cast %292 : vector<16x16xf32> to vector<2x8x16xf32>
    %c10 = arith.constant 10 : index
    %c0_151 = arith.constant 0 : index
    %c0_152 = arith.constant 0 : index
    %294 = vector.load %arg6[%c10, %c0_151, %c0_152] : memref<12x32x16xbf16, #tpu.memory_space<vmem>>, vector<1x32x16xbf16>
    %295 = vector.shape_cast %294 : vector<1x32x16xbf16> to vector<32x16xbf16>
    %296 = arith.truncf %233 : vector<16x32xf32> to vector<16x32xbf16>
    %cst_153 = arith.constant dense<0.000000e+00> : vector<16x16xf32>
    %297 = tpu.matmul %296, %295, %cst_153 {dimension_numbers = #tpu.dot_dimension_numbers<[1], [0], [0], [1], [0, 0, 1, 1], [], []>} : vector<16x32xbf16>, vector<32x16xbf16>, vector<16x16xf32> -> vector<16x16xf32>
    %c10_154 = arith.constant 10 : index
    %c0_155 = arith.constant 0 : index
    %c0_156 = arith.constant 0 : index
    %298 = vector.load %arg7[%c10_154, %c0_155, %c0_156] : memref<12x1x16xf32, #tpu.memory_space<vmem>>, vector<1x1x16xf32>
    %299 = vector.shape_cast %298 : vector<1x1x16xf32> to vector<1x16xf32>
    %300 = vector.broadcast %299 : vector<1x16xf32> to vector<16x16xf32>
    %301 = arith.addf %297, %300 : vector<16x16xf32>
    %302 = vector.shape_cast %301 : vector<16x16xf32> to vector<2x8x16xf32>
    %c11 = arith.constant 11 : index
    %c0_157 = arith.constant 0 : index
    %c0_158 = arith.constant 0 : index
    %303 = vector.load %arg6[%c11, %c0_157, %c0_158] : memref<12x32x16xbf16, #tpu.memory_space<vmem>>, vector<1x32x16xbf16>
    %304 = vector.shape_cast %303 : vector<1x32x16xbf16> to vector<32x16xbf16>
    %305 = arith.truncf %233 : vector<16x32xf32> to vector<16x32xbf16>
    %cst_159 = arith.constant dense<0.000000e+00> : vector<16x16xf32>
    %306 = tpu.matmul %305, %304, %cst_159 {dimension_numbers = #tpu.dot_dimension_numbers<[1], [0], [0], [1], [0, 0, 1, 1], [], []>} : vector<16x32xbf16>, vector<32x16xbf16>, vector<16x16xf32> -> vector<16x16xf32>
    %c11_160 = arith.constant 11 : index
    %c0_161 = arith.constant 0 : index
    %c0_162 = arith.constant 0 : index
    %307 = vector.load %arg7[%c11_160, %c0_161, %c0_162] : memref<12x1x16xf32, #tpu.memory_space<vmem>>, vector<1x1x16xf32>
    %308 = vector.shape_cast %307 : vector<1x1x16xf32> to vector<1x16xf32>
    %309 = vector.broadcast %308 : vector<1x16xf32> to vector<16x16xf32>
    %310 = arith.addf %306, %309 : vector<16x16xf32>
    %311 = vector.shape_cast %310 : vector<16x16xf32> to vector<2x8x16xf32>
    %312 = arith.truncf %293 : vector<2x8x16xf32> to vector<2x8x16xbf16>
    %313 = arith.truncf %302 : vector<2x8x16xf32> to vector<2x8x16xbf16>
    "tpu.trace_start"() <{level = 10 : i32, message = "bqd,bkd->bqk"}> : () -> ()
    %cst_163 = arith.constant dense<0.000000e+00> : vector<2x8x8xf32>
    %314 = tpu.matmul %312, %313, %cst_163 {dimension_numbers = #tpu.dot_dimension_numbers<[2], [2], [1], [1], [0, 0, 0, 1, 1, 1], [0], [0]>} : vector<2x8x16xbf16>, vector<2x8x16xbf16>, vector<2x8x8xf32> -> vector<2x8x8xf32>
    "tpu.trace_stop"() : () -> ()
    %cst_164 = arith.constant 2.500000e-01 : f32
    %315 = vector.broadcast %cst_164 : f32 to vector<2x8x8xf32>
    %316 = arith.mulf %314, %315 : vector<2x8x8xf32>
    %317 = arith.addf %316, %43 : vector<2x8x8xf32>
    %cst_165 = arith.constant dense<0xFF800000> : vector<2x8xf32>
    %318 = vector.multi_reduction <maximumf>, %317, %cst_165 [2] : vector<2x8x8xf32> to vector<2x8xf32>
    %319 = vector.shape_cast %318 : vector<2x8xf32> to vector<2x8x1xf32>
    %320 = vector.broadcast %319 : vector<2x8x1xf32> to vector<2x8x8xf32>
    %321 = arith.subf %317, %320 : vector<2x8x8xf32>
    %322 = math.exp %321 : vector<2x8x8xf32>
    %cst_166 = arith.constant dense<0.000000e+00> : vector<2x8xf32>
    %323 = vector.multi_reduction <add>, %322, %cst_166 [2] : vector<2x8x8xf32> to vector<2x8xf32>
    %324 = vector.shape_cast %323 : vector<2x8xf32> to vector<2x8x1xf32>
    %325 = tpu.reciprocal %324 {approx = true} : vector<2x8x1xf32> -> vector<2x8x1xf32>
    %326 = vector.broadcast %325 : vector<2x8x1xf32> to vector<2x8x8xf32>
    %327 = arith.mulf %322, %326 : vector<2x8x8xf32>
    %328 = arith.truncf %327 : vector<2x8x8xf32> to vector<2x8x8xbf16>
    %329 = arith.truncf %311 : vector<2x8x16xf32> to vector<2x8x16xbf16>
    "tpu.trace_start"() <{level = 10 : i32, message = "bqk,bkd->bqd"}> : () -> ()
    %cst_167 = arith.constant dense<0.000000e+00> : vector<2x8x16xf32>
    %330 = tpu.matmul %328, %329, %cst_167 {dimension_numbers = #tpu.dot_dimension_numbers<[2], [1], [1], [2], [0, 0, 0, 1, 1, 2], [0], [0]>} : vector<2x8x8xbf16>, vector<2x8x16xbf16>, vector<2x8x16xf32> -> vector<2x8x16xf32>
    "tpu.trace_stop"() : () -> ()
    %331 = vector.shape_cast %330 : vector<2x8x16xf32> to vector<16x16xf32>
    %c3_168 = arith.constant 3 : index
    %c0_169 = arith.constant 0 : index
    %c0_170 = arith.constant 0 : index
    %332 = vector.load %arg8[%c3_168, %c0_169, %c0_170] : memref<4x16x32xbf16, #tpu.memory_space<vmem>>, vector<1x16x32xbf16>
    %333 = vector.shape_cast %332 : vector<1x16x32xbf16> to vector<16x32xbf16>
    %334 = arith.truncf %331 : vector<16x16xf32> to vector<16x16xbf16>
    %cst_171 = arith.constant dense<0.000000e+00> : vector<16x32xf32>
    %335 = tpu.matmul %334, %333, %cst_171 {dimension_numbers = #tpu.dot_dimension_numbers<[1], [0], [0], [1], [0, 0, 1, 1], [], []>} : vector<16x16xbf16>, vector<16x32xbf16>, vector<16x32xf32> -> vector<16x32xf32>
    %336 = arith.addf %284, %335 : vector<16x32xf32>
    %c1_172 = arith.constant 1 : index
    %c0_173 = arith.constant 0 : index
    %c0_174 = arith.constant 0 : index
    %337 = vector.load %arg9[%c1_172, %c0_173, %c0_174] : memref<2x1x32xf32, #tpu.memory_space<vmem>>, vector<1x1x32xf32>
    %338 = vector.shape_cast %337 : vector<1x1x32xf32> to vector<1x32xf32>
    %339 = vector.broadcast %338 : vector<1x32xf32> to vector<16x32xf32>
    %340 = arith.addf %336, %339 : vector<16x32xf32>
    %341 = arith.addf %340, %233 : vector<16x32xf32>
    %c1_175 = arith.constant 1 : index
    %c0_176 = arith.constant 0 : index
    %c0_177 = arith.constant 0 : index
    %342 = vector.load %arg10[%c1_175, %c0_176, %c0_177] : memref<2x1x32xf32, #tpu.memory_space<vmem>>, vector<1x1x32xf32>
    %343 = vector.shape_cast %342 : vector<1x1x32xf32> to vector<1x32xf32>
    %c1_178 = arith.constant 1 : index
    %c0_179 = arith.constant 0 : index
    %c0_180 = arith.constant 0 : index
    %344 = vector.load %arg11[%c1_178, %c0_179, %c0_180] : memref<2x1x32xf32, #tpu.memory_space<vmem>>, vector<1x1x32xf32>
    %345 = vector.shape_cast %344 : vector<1x1x32xf32> to vector<1x32xf32>
    %cst_181 = arith.constant dense<0.000000e+00> : vector<16xf32>
    %346 = vector.multi_reduction <add>, %341, %cst_181 [1] : vector<16x32xf32> to vector<16xf32>
    %347 = vector.shape_cast %346 : vector<16xf32> to vector<16x1xf32>
    %cst_182 = arith.constant 3.200000e+01 : f32
    %348 = vector.broadcast %cst_182 : f32 to vector<16x1xf32>
    %349 = arith.divf %347, %348 : vector<16x1xf32>
    %350 = vector.broadcast %349 : vector<16x1xf32> to vector<16x32xf32>
    %351 = arith.subf %341, %350 : vector<16x32xf32>
    %352 = arith.mulf %351, %351 : vector<16x32xf32>
    %cst_183 = arith.constant dense<0.000000e+00> : vector<16xf32>
    %353 = vector.multi_reduction <add>, %352, %cst_183 [1] : vector<16x32xf32> to vector<16xf32>
    %354 = vector.shape_cast %353 : vector<16xf32> to vector<16x1xf32>
    %cst_184 = arith.constant 3.200000e+01 : f32
    %355 = vector.broadcast %cst_184 : f32 to vector<16x1xf32>
    %356 = arith.divf %354, %355 : vector<16x1xf32>
    %357 = vector.broadcast %349 : vector<16x1xf32> to vector<16x32xf32>
    %358 = arith.subf %341, %357 : vector<16x32xf32>
    %cst_185 = arith.constant 9.99999996E-13 : f32
    %359 = vector.broadcast %cst_185 : f32 to vector<16x1xf32>
    %360 = arith.addf %356, %359 : vector<16x1xf32>
    %361 = math.rsqrt %360 : vector<16x1xf32>
    %362 = vector.broadcast %361 : vector<16x1xf32> to vector<16x32xf32>
    %363 = arith.mulf %358, %362 : vector<16x32xf32>
    %364 = vector.broadcast %343 : vector<1x32xf32> to vector<16x32xf32>
    %365 = arith.mulf %363, %364 : vector<16x32xf32>
    %366 = vector.broadcast %345 : vector<1x32xf32> to vector<16x32xf32>
    %367 = arith.addf %365, %366 : vector<16x32xf32>
    %c1_186 = arith.constant 1 : index
    %c0_187 = arith.constant 0 : index
    %c0_188 = arith.constant 0 : index
    %368 = vector.load %arg12[%c1_186, %c0_187, %c0_188] : memref<2x32x64xbf16, #tpu.memory_space<vmem>>, vector<1x32x64xbf16>
    %369 = vector.shape_cast %368 : vector<1x32x64xbf16> to vector<32x64xbf16>
    %370 = arith.truncf %367 : vector<16x32xf32> to vector<16x32xbf16>
    %cst_189 = arith.constant dense<0.000000e+00> : vector<16x64xf32>
    %371 = tpu.matmul %370, %369, %cst_189 {dimension_numbers = #tpu.dot_dimension_numbers<[1], [0], [0], [1], [0, 0, 1, 1], [], []>} : vector<16x32xbf16>, vector<32x64xbf16>, vector<16x64xf32> -> vector<16x64xf32>
    %c1_190 = arith.constant 1 : index
    %c0_191 = arith.constant 0 : index
    %c0_192 = arith.constant 0 : index
    %372 = vector.load %arg13[%c1_190, %c0_191, %c0_192] : memref<2x1x64xf32, #tpu.memory_space<vmem>>, vector<1x1x64xf32>
    %373 = vector.shape_cast %372 : vector<1x1x64xf32> to vector<1x64xf32>
    %374 = vector.broadcast %373 : vector<1x64xf32> to vector<16x64xf32>
    %375 = arith.addf %371, %374 : vector<16x64xf32>
    %cst_193 = arith.constant 5.000000e-01 : f32
    %376 = vector.broadcast %cst_193 : f32 to vector<16x64xf32>
    %377 = arith.mulf %376, %375 : vector<16x64xf32>
    %cst_194 = arith.constant 4.471500e-02 : f32
    %378 = vector.broadcast %cst_194 : f32 to vector<16x64xf32>
    %379 = arith.mulf %378, %375 : vector<16x64xf32>
    %380 = arith.mulf %379, %375 : vector<16x64xf32>
    %381 = arith.mulf %380, %375 : vector<16x64xf32>
    %382 = arith.addf %375, %381 : vector<16x64xf32>
    %cst_195 = arith.constant 0.797884583 : f32
    %383 = vector.broadcast %cst_195 : f32 to vector<16x64xf32>
    %384 = arith.mulf %383, %382 : vector<16x64xf32>
    %385 = math.tanh %384 : vector<16x64xf32>
    %cst_196 = arith.constant 1.000000e+00 : f32
    %386 = vector.broadcast %cst_196 : f32 to vector<16x64xf32>
    %387 = arith.addf %386, %385 : vector<16x64xf32>
    %388 = arith.mulf %377, %387 : vector<16x64xf32>
    %c1_197 = arith.constant 1 : index
    %c0_198 = arith.constant 0 : index
    %c0_199 = arith.constant 0 : index
    %389 = vector.load %arg14[%c1_197, %c0_198, %c0_199] : memref<2x64x32xbf16, #tpu.memory_space<vmem>>, vector<1x64x32xbf16>
    %390 = vector.shape_cast %389 : vector<1x64x32xbf16> to vector<64x32xbf16>
    %391 = arith.truncf %388 : vector<16x64xf32> to vector<16x64xbf16>
    %cst_200 = arith.constant dense<0.000000e+00> : vector<16x32xf32>
    %392 = tpu.matmul %391, %390, %cst_200 {dimension_numbers = #tpu.dot_dimension_numbers<[1], [0], [0], [1], [0, 0, 1, 1], [], []>} : vector<16x64xbf16>, vector<64x32xbf16>, vector<16x32xf32> -> vector<16x32xf32>
    %c1_201 = arith.constant 1 : index
    %c0_202 = arith.constant 0 : index
    %c0_203 = arith.constant 0 : index
    %393 = vector.load %arg15[%c1_201, %c0_202, %c0_203] : memref<2x1x32xf32, #tpu.memory_space<vmem>>, vector<1x1x32xf32>
    %394 = vector.shape_cast %393 : vector<1x1x32xf32> to vector<1x32xf32>
    %395 = vector.broadcast %394 : vector<1x32xf32> to vector<16x32xf32>
    %396 = arith.addf %392, %395 : vector<16x32xf32>
    %397 = arith.addf %396, %367 : vector<16x32xf32>
    %c1_204 = arith.constant 1 : index
    %c0_205 = arith.constant 0 : index
    %c0_206 = arith.constant 0 : index
    %398 = vector.load %arg16[%c1_204, %c0_205, %c0_206] : memref<2x1x32xf32, #tpu.memory_space<vmem>>, vector<1x1x32xf32>
    %399 = vector.shape_cast %398 : vector<1x1x32xf32> to vector<1x32xf32>
    %c1_207 = arith.constant 1 : index
    %c0_208 = arith.constant 0 : index
    %c0_209 = arith.constant 0 : index
    %400 = vector.load %arg17[%c1_207, %c0_208, %c0_209] : memref<2x1x32xf32, #tpu.memory_space<vmem>>, vector<1x1x32xf32>
    %401 = vector.shape_cast %400 : vector<1x1x32xf32> to vector<1x32xf32>
    %cst_210 = arith.constant dense<0.000000e+00> : vector<16xf32>
    %402 = vector.multi_reduction <add>, %397, %cst_210 [1] : vector<16x32xf32> to vector<16xf32>
    %403 = vector.shape_cast %402 : vector<16xf32> to vector<16x1xf32>
    %cst_211 = arith.constant 3.200000e+01 : f32
    %404 = vector.broadcast %cst_211 : f32 to vector<16x1xf32>
    %405 = arith.divf %403, %404 : vector<16x1xf32>
    %406 = vector.broadcast %405 : vector<16x1xf32> to vector<16x32xf32>
    %407 = arith.subf %397, %406 : vector<16x32xf32>
    %408 = arith.mulf %407, %407 : vector<16x32xf32>
    %cst_212 = arith.constant dense<0.000000e+00> : vector<16xf32>
    %409 = vector.multi_reduction <add>, %408, %cst_212 [1] : vector<16x32xf32> to vector<16xf32>
    %410 = vector.shape_cast %409 : vector<16xf32> to vector<16x1xf32>
    %cst_213 = arith.constant 3.200000e+01 : f32
    %411 = vector.broadcast %cst_213 : f32 to vector<16x1xf32>
    %412 = arith.divf %410, %411 : vector<16x1xf32>
    %413 = vector.broadcast %405 : vector<16x1xf32> to vector<16x32xf32>
    %414 = arith.subf %397, %413 : vector<16x32xf32>
    %cst_214 = arith.constant 9.99999996E-13 : f32
    %415 = vector.broadcast %cst_214 : f32 to vector<16x1xf32>
    %416 = arith.addf %412, %415 : vector<16x1xf32>
    %417 = math.rsqrt %416 : vector<16x1xf32>
    %418 = vector.broadcast %417 : vector<16x1xf32> to vector<16x32xf32>
    %419 = arith.mulf %414, %418 : vector<16x32xf32>
    %420 = vector.broadcast %399 : vector<1x32xf32> to vector<16x32xf32>
    %421 = arith.mulf %419, %420 : vector<16x32xf32>
    %422 = vector.broadcast %401 : vector<1x32xf32> to vector<16x32xf32>
    %423 = arith.addf %421, %422 : vector<16x32xf32>
    %424 = vector.shape_cast %423 : vector<16x32xf32> to vector<2x8x32xf32>
    %425 = vector.extract_strided_slice %424 {offsets = [0, 0, 0], sizes = [2, 1, 32], strides = [1, 1, 1]} : vector<2x8x32xf32> to vector<2x1x32xf32>
    %426 = vector.shape_cast %425 : vector<2x1x32xf32> to vector<2x32xf32>
    %cst_215 = arith.constant 0.000000e+00 : f32
    %427 = vector.broadcast %cst_215 : f32 to vector<2x32xf32>
    %428 = arith.maximumf %426, %427 : vector<2x32xf32>
    %c0_216 = arith.constant 0 : index
    %c0_217 = arith.constant 0 : index
    %429 = vector.load %arg18[%c0_216, %c0_217] : memref<32x32xbf16, #tpu.memory_space<vmem>>, vector<32x32xbf16>
    %430 = arith.truncf %428 : vector<2x32xf32> to vector<2x32xbf16>
    %cst_218 = arith.constant dense<0.000000e+00> : vector<2x32xf32>
    %431 = tpu.matmul %430, %429, %cst_218 {dimension_numbers = #tpu.dot_dimension_numbers<[1], [0], [0], [1], [0, 0, 1, 1], [], []>} : vector<2x32xbf16>, vector<32x32xbf16>, vector<2x32xf32> -> vector<2x32xf32>
    %c0_219 = arith.constant 0 : index
    %c0_220 = arith.constant 0 : index
    %432 = vector.load %arg19[%c0_219, %c0_220] : memref<1x32xf32, #tpu.memory_space<vmem>>, vector<1x32xf32>
    %433 = vector.broadcast %432 : vector<1x32xf32> to vector<2x32xf32>
    %434 = arith.addf %431, %433 : vector<2x32xf32>
    %cst_221 = arith.constant 0.000000e+00 : f32
    %435 = vector.broadcast %cst_221 : f32 to vector<2x32xf32>
    %436 = arith.maximumf %434, %435 : vector<2x32xf32>
    %c0_222 = arith.constant 0 : index
    %c0_223 = arith.constant 0 : index
    %437 = vector.load %arg20[%c0_222, %c0_223] : memref<32x128xbf16, #tpu.memory_space<vmem>>, vector<32x128xbf16>
    %438 = arith.truncf %436 : vector<2x32xf32> to vector<2x32xbf16>
    %cst_224 = arith.constant dense<0.000000e+00> : vector<2x128xf32>
    %439 = tpu.matmul %438, %437, %cst_224 {dimension_numbers = #tpu.dot_dimension_numbers<[1], [0], [0], [1], [0, 0, 1, 1], [], []>} : vector<2x32xbf16>, vector<32x128xbf16>, vector<2x128xf32> -> vector<2x128xf32>
    %c0_225 = arith.constant 0 : index
    %c0_226 = arith.constant 0 : index
    %440 = vector.load %arg21[%c0_225, %c0_226] : memref<1x128xf32, #tpu.memory_space<vmem>>, vector<1x128xf32>
    %441 = vector.broadcast %440 : vector<1x128xf32> to vector<2x128xf32>
    %442 = arith.addf %439, %441 : vector<2x128xf32>
    %c0_227 = arith.constant 0 : index
    %c0_228 = arith.constant 0 : index
    %443 = vector.load %arg22[%c0_227, %c0_228] : memref<2x128xf32, #tpu.memory_space<vmem>>, vector<2x128xf32>
    tpu.vector_store %arg22[%c0_227, %c0_228], %442 {strides = array<i32>} : memref<2x128xf32, #tpu.memory_space<vmem>>, vector<2x128xf32>,
    return
  }
}

</mosaic_0001>

<llo_original>
// kernel: bert_binary_classifier_forward.1
$region0: #{bert_binary_classifier_forward.1}
  #allocation0 [shape = 'u32[]', space=smem, size = 0x4, offset = 0x4, fixed_abs, tag = 'smem constant byte address 0x4 - core index']
  #allocation1 [shape = 'u32[144,128]{1,0:T(1,128)}', space=vmem, size = 0x12000, scoped, tag = 'internal scratch']
  %s0 = inlined_call_operand.vmem [shape: s32[16,1], index: 0, kind: input, shape index: {}]
  %s1 = inlined_call_operand.vmem [shape: f32[2,8], index: 1, kind: input, shape index: {}]
  %s2 = inlined_call_operand.vmem [shape: bf16[100,32], index: 2, kind: input, shape index: {}]
  %s3 = inlined_call_operand.vmem [shape: f32[16,32], index: 3, kind: input, shape index: {}]
  %s4 = inlined_call_operand.vmem [shape: f32[1,32], index: 4, kind: input, shape index: {}]
  %s5 = inlined_call_operand.vmem [shape: f32[1,32], index: 5, kind: input, shape index: {}]
  %s6 = inlined_call_operand.vmem [shape: bf16[12,32,16], index: 6, kind: input, shape index: {}]
  %s7 = inlined_call_operand.vmem [shape: f32[12,1,16], index: 7, kind: input, shape index: {}]
  %s8 = inlined_call_operand.vmem [shape: bf16[4,16,32], index: 8, kind: input, shape index: {}]
  %s9 = inlined_call_operand.vmem [shape: f32[2,1,32], index: 9, kind: input, shape index: {}]
  %s10 = inlined_call_operand.vmem [shape: f32[2,1,32], index: 10, kind: input, shape index: {}]
  %s11 = inlined_call_operand.vmem [shape: f32[2,1,32], index: 11, kind: input, shape index: {}]
  %s12 = inlined_call_operand.vmem [shape: bf16[2,32,64], index: 12, kind: input, shape index: {}]
  %s13 = inlined_call_operand.vmem [shape: f32[2,1,64], index: 13, kind: input, shape index: {}]
  %s14 = inlined_call_operand.vmem [shape: bf16[2,64,32], index: 14, kind: input, shape index: {}]
  %s15 = inlined_call_operand.vmem [shape: f32[2,1,32], index: 15, kind: input, shape index: {}]
  %s16 = inlined_call_operand.vmem [shape: f32[2,1,32], index: 16, kind: input, shape index: {}]
  %s17 = inlined_call_operand.vmem [shape: f32[2,1,32], index: 17, kind: input, shape index: {}]
  %s18 = inlined_call_operand.vmem [shape: bf16[32,32], index: 18, kind: input, shape index: {}]
  %s19 = inlined_call_operand.vmem [shape: f32[1,32], index: 19, kind: input, shape index: {}]
  %s20 = inlined_call_operand.vmem [shape: bf16[32,128], index: 20, kind: input, shape index: {}]
  %s21 = inlined_call_operand.vmem [shape: f32[1,128], index: 21, kind: input, shape index: {}]
  %s22 = inlined_call_operand.hbm [shape: f32[2,128], index: 22, kind: output, shape index: {}]
  %s23 = sld [smem:[#allocation0]]
  $region98: #{bert_binary_classifier_forward.1} parent=0
    _
  %s25 = ssub.s32 1, %s23
  %s26 = scalar_select 0, %s25, %s23
  $region1: #{bert_binary_classifier_forward.1} parent=0
    #allocation2 [shape = 'u8[1024]{0}', space=vmem, size = 0x400, scoped, tag = 'output window, operand 0, single buffered']
    #allocation3 [shape = 's32[1]{0}', space=sflag, size = 0x4, scoped, tag = 'scoped memory for bert_binary_classifier_forward.1']
    %27 = vsyncpa [#allocation3], 0
    // Predicated region
    $region2: #{bert_binary_classifier_forward.1} parent=1 // pred_check
      _
    $region3: #{bert_binary_classifier_forward.1} parent=1 // pred_check_branch
      %29 = sbr.rel (0) target = $region5
    $region4: #{bert_binary_classifier_forward.1} parent=1 // pred_region
      _
    $region5: #{bert_binary_classifier_forward.1} parent=1 // pred_fallthru
      _
    // Predicated region
    $region6: #{bert_binary_classifier_forward.1} parent=1 // pred_check
      _
    $region7: #{bert_binary_classifier_forward.1} parent=1 // pred_check_branch
      %31 = sbr.rel (0) target = $region9
    $region8: #{bert_binary_classifier_forward.1} parent=1 // pred_region
      _
    $region9: #{bert_binary_classifier_forward.1} parent=1 // pred_fallthru
      _
    // Predicated region
    $region10: #{bert_binary_classifier_forward.1} parent=1 // pred_check
      _
    $region11: #{bert_binary_classifier_forward.1} parent=1 // pred_check_branch
      %33 = sbr.rel (0) target = $region13
    $region12: #{bert_binary_classifier_forward.1} parent=1 // pred_region
      _
    $region13: #{bert_binary_classifier_forward.1} parent=1 // pred_fallthru
      _
    // Predicated region
    $region14: #{bert_binary_classifier_forward.1} parent=1 // pred_check
      _
    $region15: #{bert_binary_classifier_forward.1} parent=1 // pred_check_branch
      %35 = sbr.rel (0) target = $region17
    $region16: #{bert_binary_classifier_forward.1} parent=1 // pred_region
      _
    $region17: #{bert_binary_classifier_forward.1} parent=1 // pred_fallthru
      _
    // Predicated region
    $region18: #{bert_binary_classifier_forward.1} parent=1 // pred_check
      _
    $region19: #{bert_binary_classifier_forward.1} parent=1 // pred_check_branch
      %37 = sbr.rel (0) target = $region21
    $region20: #{bert_binary_classifier_forward.1} parent=1 // pred_region
      _
    $region21: #{bert_binary_classifier_forward.1} parent=1 // pred_fallthru
      _
    // Predicated region
    $region22: #{bert_binary_classifier_forward.1} parent=1 // pred_check
      _
    $region23: #{bert_binary_classifier_forward.1} parent=1 // pred_check_branch
      %39 = sbr.rel (0) target = $region25
    $region24: #{bert_binary_classifier_forward.1} parent=1 // pred_region
      _
    $region25: #{bert_binary_classifier_forward.1} parent=1 // pred_fallthru
      _
    // Predicated region
    $region26: #{bert_binary_classifier_forward.1} parent=1 // pred_check
      _
    $region27: #{bert_binary_classifier_forward.1} parent=1 // pred_check_branch
      %41 = sbr.rel (0) target = $region29
    $region28: #{bert_binary_classifier_forward.1} parent=1 // pred_region
      _
    $region29: #{bert_binary_classifier_forward.1} parent=1 // pred_fallthru
      _
    // Predicated region
    $region30: #{bert_binary_classifier_forward.1} parent=1 // pred_check
      _
    $region31: #{bert_binary_classifier_forward.1} parent=1 // pred_check_branch
      %43 = sbr.rel (0) target = $region33
    $region32: #{bert_binary_classifier_forward.1} parent=1 // pred_region
      _
    $region33: #{bert_binary_classifier_forward.1} parent=1 // pred_fallthru
      _
    // Predicated region
    $region34: #{bert_binary_classifier_forward.1} parent=1 // pred_check
      _
    $region35: #{bert_binary_classifier_forward.1} parent=1 // pred_check_branch
      %45 = sbr.rel (0) target = $region37
    $region36: #{bert_binary_classifier_forward.1} parent=1 // pred_region
      _
    $region37: #{bert_binary_classifier_forward.1} parent=1 // pred_fallthru
      _
    // Predicated region
    $region38: #{bert_binary_classifier_forward.1} parent=1 // pred_check
      _
    $region39: #{bert_binary_classifier_forward.1} parent=1 // pred_check_branch
      %47 = sbr.rel (0) target = $region41
    $region40: #{bert_binary_classifier_forward.1} parent=1 // pred_region
      _
    $region41: #{bert_binary_classifier_forward.1} parent=1 // pred_fallthru
      _
    // Predicated region
    $region42: #{bert_binary_classifier_forward.1} parent=1 // pred_check
      _
    $region43: #{bert_binary_classifier_forward.1} parent=1 // pred_check_branch
      %49 = sbr.rel (0) target = $region45
    $region44: #{bert_binary_classifier_forward.1} parent=1 // pred_region
      _
    $region45: #{bert_binary_classifier_forward.1} parent=1 // pred_fallthru
      _
    // Predicated region
    $region46: #{bert_binary_classifier_forward.1} parent=1 // pred_check
      _
    $region47: #{bert_binary_classifier_forward.1} parent=1 // pred_check_branch
      %51 = sbr.rel (0) target = $region49
    $region48: #{bert_binary_classifier_forward.1} parent=1 // pred_region
      _
    $region49: #{bert_binary_classifier_forward.1} parent=1 // pred_fallthru
      _
    // Predicated region
    $region50: #{bert_binary_classifier_forward.1} parent=1 // pred_check
      _
    $region51: #{bert_binary_classifier_forward.1} parent=1 // pred_check_branch
      %53 = sbr.rel (0) target = $region53
    $region52: #{bert_binary_classifier_forward.1} parent=1 // pred_region
      _
    $region53: #{bert_binary_classifier_forward.1} parent=1 // pred_fallthru
      _
    // Predicated region
    $region54: #{bert_binary_classifier_forward.1} parent=1 // pred_check
      _
    $region55: #{bert_binary_classifier_forward.1} parent=1 // pred_check_branch
      %55 = sbr.rel (0) target = $region57
    $region56: #{bert_binary_classifier_forward.1} parent=1 // pred_region
      _
    $region57: #{bert_binary_classifier_forward.1} parent=1 // pred_fallthru
      _
    // Predicated region
    $region58: #{bert_binary_classifier_forward.1} parent=1 // pred_check
      _
    $region59: #{bert_binary_classifier_forward.1} parent=1 // pred_check_branch
      %57 = sbr.rel (0) target = $region61
    $region60: #{bert_binary_classifier_forward.1} parent=1 // pred_region
      _
    $region61: #{bert_binary_classifier_forward.1} parent=1 // pred_fallthru
      _
    // Predicated region
    $region62: #{bert_binary_classifier_forward.1} parent=1 // pred_check
      _
    $region63: #{bert_binary_classifier_forward.1} parent=1 // pred_check_branch
      %59 = sbr.rel (0) target = $region65
    $region64: #{bert_binary_classifier_forward.1} parent=1 // pred_region
      _
    $region65: #{bert_binary_classifier_forward.1} parent=1 // pred_fallthru
      _
    // Predicated region
    $region66: #{bert_binary_classifier_forward.1} parent=1 // pred_check
      _
    $region67: #{bert_binary_classifier_forward.1} parent=1 // pred_check_branch
      %61 = sbr.rel (0) target = $region69
    $region68: #{bert_binary_classifier_forward.1} parent=1 // pred_region
      _
    $region69: #{bert_binary_classifier_forward.1} parent=1 // pred_fallthru
      _
    // Predicated region
    $region70: #{bert_binary_classifier_forward.1} parent=1 // pred_check
      _
    $region71: #{bert_binary_classifier_forward.1} parent=1 // pred_check_branch
      %63 = sbr.rel (0) target = $region73
    $region72: #{bert_binary_classifier_forward.1} parent=1 // pred_region
      _
    $region73: #{bert_binary_classifier_forward.1} parent=1 // pred_fallthru
      _
    // Predicated region
    $region74: #{bert_binary_classifier_forward.1} parent=1 // pred_check
      _
    $region75: #{bert_binary_classifier_forward.1} parent=1 // pred_check_branch
      %65 = sbr.rel (0) target = $region77
    $region76: #{bert_binary_classifier_forward.1} parent=1 // pred_region
      _
    $region77: #{bert_binary_classifier_forward.1} parent=1 // pred_fallthru
      _
    // Predicated region
    $region78: #{bert_binary_classifier_forward.1} parent=1 // pred_check
      _
    $region79: #{bert_binary_classifier_forward.1} parent=1 // pred_check_branch
      %67 = sbr.rel (0) target = $region81
    $region80: #{bert_binary_classifier_forward.1} parent=1 // pred_region
      _
    $region81: #{bert_binary_classifier_forward.1} parent=1 // pred_fallthru
      _
    // Predicated region
    $region82: #{bert_binary_classifier_forward.1} parent=1 // pred_check
      _
    $region83: #{bert_binary_classifier_forward.1} parent=1 // pred_check_branch
      %69 = sbr.rel (0) target = $region85
    $region84: #{bert_binary_classifier_forward.1} parent=1 // pred_region
      _
    $region85: #{bert_binary_classifier_forward.1} parent=1 // pred_fallthru
      _
    // Predicated region
    $region86: #{bert_binary_classifier_forward.1} parent=1 // pred_check
      _
    $region87: #{bert_binary_classifier_forward.1} parent=1 // pred_check_branch
      %71 = sbr.rel (0) target = $region89
    $region88: #{bert_binary_classifier_forward.1} parent=1 // pred_region
      _
    $region89: #{bert_binary_classifier_forward.1} parent=1 // pred_fallthru
      _
    %v73 = vlaneseq
    %v74 = vand.u32 %v73, 127
    %v75 = vld [vmem:[%s0] sm:$0xff]
    %v76 = vld [vmem:[%s0 + $0x8] sm:$0xff]
    %77 = vset.pattern.permute.xlu0 0
    %78 = vperm.xlu0 %77, %v75
    %v79 = vpop.permute.xlu0 %78
    %80 = vset.pattern.permute.xlu0 0
    %81 = vperm.xlu0 %80, %v76
    %v82 = vpop.permute.xlu0 %81
    %vm83 = vcmp.eq.s32.totalorder %v79, %v74
    %vm84 = vcmp.eq.s32.totalorder %v82, %v74
    %v85 = vsel %vm83, 1.0, 0.0
    %v86 = vsel %vm84, 1.0, 0.0
    %v87 = vpack.c.bf16 %v86, %v85
    %v88 = vld [vmem:[%s2] sm:$0xf]
    %v89 = vld [vmem:[%s2 + $0x4] sm:$0xf]
    %v90 = vld [vmem:[%s2 + $0x8] sm:$0xf]
    %v91 = vld [vmem:[%s2 + $0xc] sm:$0xf]
    %v92 = vld [vmem:[%s2 + $0x10] sm:$0xf]
    %v93 = vld [vmem:[%s2 + $0x14] sm:$0xf]
    %v94 = vld [vmem:[%s2 + $0x18] sm:$0xf]
    %v95 = vld [vmem:[%s2 + $0x1c] sm:$0xf]
    %v96 = vld [vmem:[%s2 + $0x20] sm:$0xf]
    %v97 = vld [vmem:[%s2 + $0x24] sm:$0xf]
    %v98 = vld [vmem:[%s2 + $0x28] sm:$0xf]
    %v99 = vld [vmem:[%s2 + $0x2c] sm:$0xf]
    %v100 = vld [vmem:[%s2 + $0x30] sm:$0x3]
    %v101 = vld [vmem:[%s3] sm:$0xff]
    %v102 = vld [vmem:[%s3 + $0x8] sm:$0xff]
    %v116 = vunpack.c.l.b16 %v88
    %v117 = vunpack.c.l.b16 %v89
    %v118 = vunpack.c.l.b16 %v90
    %v119 = vunpack.c.l.b16 %v91
    %v120 = vunpack.c.l.b16 %v92
    %v121 = vunpack.c.l.b16 %v93
    %v122 = vunpack.c.l.b16 %v94
    %v123 = vunpack.c.l.b16 %v95
    %v124 = vunpack.c.l.b16 %v96
    %v125 = vunpack.c.l.b16 %v97
    %v126 = vunpack.c.l.b16 %v98
    %v127 = vunpack.c.l.b16 %v99
    %v128 = vunpack.c.l.b16 %v100
    %v129 = vpack.c.b16 %v117, %v116
    %v130 = vpack.c.b16 %v119, %v118
    %v131 = vpack.c.b16 %v121, %v120
    %v132 = vpack.c.b16 %v123, %v122
    %v133 = vpack.c.b16 %v125, %v124
    %v134 = vpack.c.b16 %v127, %v126
    %v135 = vpack.c.b16 %v128, %v128
    %vm142 = vcmask 818176
    %v144 = vsel %vm142, %v87, 0
    %vm146 = vcmask 1041408
    %v148 = vsel %vm146, %v135, 0
    %150 = vmatprep.subr.bf16.mxu0 0
    %151 = vmatpush1.bf16.msra.mxu0 %v129
    %152 = vmatprep.subr.bf16.mxu0 0
    %153 = vmatpush1.bf16.msra.mxu0 %v130
    %154 = vmatprep.subr.bf16.mxu0 0
    %155 = vmatpush1.bf16.msra.mxu0 %v131
    %156 = vmatprep.subr.bf16.mxu0 0
    %157 = vmatpush1.bf16.msra.mxu0 %v132
    %158 = vmatprep.subr.bf16.mxu0 0
    %159 = vmatpush1.bf16.msra.mxu0 %v133
    %160 = vmatprep.subr.bf16.mxu0 0
    %161 = vmatpush1.bf16.msra.mxu0 %v134
    %162 = vmatprep.subr.bf16.mxu0 0
    %163 = vmatpush1.bf16.msra.mxu0 %v148
    %164 = vmatprep.subr.bf16.mxu0 0
    %165 = vmatpush1.bf16.msra.mxu0 0
    %166 = vmatprep.subr.bf16.mxu0 0
    %167 = vmatpush1.bf16.msra.mxu0 0
    %168 = vmatprep.subr.bf16.mxu0 0
    %169 = vmatpush1.bf16.msra.mxu0 0
    %170 = vmatprep.subr.bf16.mxu0 0
    %171 = vmatpush1.bf16.msra.mxu0 0
    %172 = vmatprep.subr.bf16.mxu0 0
    %173 = vmatpush1.bf16.msra.mxu0 0
    %174 = vmatprep.subr.bf16.mxu0 0
    %175 = vmatpush1.bf16.msra.mxu0 0
    %176 = vmatprep.subr.bf16.mxu0 0
    %177 = vmatpush1.bf16.msra.mxu0 0
    %178 = vmatprep.subr.bf16.mxu0 0
    %179 = vmatpush1.bf16.msra.mxu0 0
    %180 = vmatprep.subr.bf16.mxu0 0
    %181 = vmatpush1.bf16.msra.mxu0 0
    %182 = vmatprep.mubr.bf16.mxu0 0
    %183 = vmatmul.mubr.bf16.gmra.mrb[0].mxu0 %v144
    %v184 = vpop.f32.mrb[0].mxu0
    %v185 = vadd.f32 %v101, %v184
    %v186 = vpop.f32.mrb[0].mxu0
    %v187 = vpop.f32.mrb[0].mxu0
    %v188 = vadd.f32 %v102, %v187
    %v189 = vpop.f32.mrb[0].mxu0
    %190 = vdwg.mxu0
    %v191 = vld [vmem:[%s4] sm:$0x1]
    %v192 = vld [vmem:[%s5] sm:$0x1]
    %vm193 = vcmask 261120
    %v194 = vsel %vm193, %v185, 0.0
    %195 = vadd.xlane.f32.xlu0 %v194
    %v196 = vpop.xlane.xlu0 %195
    %v197 = vsel %vm193, %v188, 0.0
    %198 = vadd.xlane.f32.xlu0 %v197
    %v199 = vpop.xlane.xlu0 %198
    %v200 = vrcp.pop 32.0
    %v201 = vmul.f32 %v196, %v200
    %v202 = vmul.f32 %v199, %v200
    %v203 = vsub.f32 %v185, %v201
    %v204 = vsub.f32 %v188, %v202
    %v205 = vmul.f32 %v203, %v203
    %v206 = vmul.f32 %v204, %v204
    %v207 = vsel %vm193, %v205, 0.0
    %208 = vadd.xlane.f32.xlu0 %v207
    %v209 = vpop.xlane.xlu0 %208
    %v210 = vsel %vm193, %v206, 0.0
    %211 = vadd.xlane.f32.xlu0 %v210
    %v212 = vpop.xlane.xlu0 %211
    %v213 = vmul.f32 %v209, %v200
    %v214 = vmul.f32 %v212, %v200
    %v215 = vadd.f32 %v213, 1e-12
    %v216 = vadd.f32 %v214, 1e-12
    %v217 = vrsqrt.pop %v215
    %v218 = vrsqrt.pop %v216
    %v219 = vmul.f32 %v203, %v217
    %v220 = vmul.f32 %v204, %v218
    %v222 = vlaneseq
    %v223 = vshrl.u32 %v222, 7
    %v224 = vsub.s32 0, %v223
    %v225 = vrot.slane %v191, %v224
    %v227 = vmul.f32 %v219, %v225
    %v228 = vmul.f32 %v220, %v225
    %v230 = vlaneseq
    %v231 = vshrl.u32 %v230, 7
    %v232 = vsub.s32 0, %v231
    %v233 = vrot.slane %v192, %v232
    %v235 = vadd.f32 %v227, %v233
    %v236 = vadd.f32 %v228, %v233
    %v237 = vld [vmem:[%s1] sm:$0x3]
    %v238 = vsub.f32 1.0, %v237
    %v239 = vmul.f32 %v238, -1e+09
    %v242 = vunpack.c.l.s4 1966171168
    %v243 = vunpack.c.0.s8 %v242
    %v244 = vlaneseq
    %v245 = vshrl.u32 %v244, 7
    %v246 = vsub.s32 %v243, %v245
    %v247 = vrot.slane %v239, %v246
    %v248 = vcombine.high %v247, %v247
    %v250 = vunpack.c.l.s4 1966171168
    %v251 = vunpack.c.0.s8 %v250
    %v252 = vlaneseq
    %v253 = vshrl.u32 %v252, 7
    %v254 = vsub.s32 %v251, %v253
    %v255 = vrot.slane %v247, %v254
    %v257 = vunpack.c.l.s4 1966171168
    %v258 = vunpack.c.0.s8 %v257
    %v259 = vlaneseq
    %v260 = vshrl.u32 %v259, 7
    %v261 = vsub.s32 %v258, %v260
    %v262 = vrot.slane %v248, %v261
    %v263 = vlaneseq
    %v264 = vshrl.u32 %v263, 7
    %v265 = vsub.s32 0, %v264
    %v266 = vrot.slane %v255, %v265
    %v267 = vlaneseq
    %v268 = vshrl.u32 %v267, 7
    %v269 = vsub.s32 0, %v268
    %v270 = vrot.slane %v262, %v269
    %v273 = vld [vmem:[%s6] sm:$0xf]
    %v274 = vld [vmem:[%s6 + $0x4] sm:$0xf]
    %v275 = vld [vmem:[%s6 + $0x8] sm:$0xf]
    %v276 = vld [vmem:[%s6 + $0xc] sm:$0xf]
    %v277 = vpack.c.bf16 %v236, %v235
    %v278 = vld [vmem:[%s7] sm:$0x1]
    %v280 = vlaneseq
    %v281 = vshrl.u32 %v280, 7
    %v282 = vsub.s32 0, %v281
    %v283 = vrot.slane %v278, %v282
    %v289 = vunpack.c.l.b16 %v273
    %v290 = vunpack.c.l.b16 %v274
    %v291 = vunpack.c.l.b16 %v275
    %v292 = vunpack.c.l.b16 %v276
    %v293 = vpack.c.b16 %v290, %v289
    %v294 = vpack.c.b16 %v292, %v291
    %v298 = vsel %vm193, %v277, 0
    %300 = vmatprep.subr.bf16.mxu0 0
    %301 = vmatpush1.bf16.msra.mxu0 %v293
    %302 = vmatprep.subr.bf16.mxu0 0
    %303 = vmatpush1.bf16.msra.mxu0 %v294
    %304 = vmatprep.subr.bf16.mxu0 0
    %305 = vmatpush1.bf16.msra.mxu0 0
    %306 = vmatprep.subr.bf16.mxu0 0
    %307 = vmatpush1.bf16.msra.mxu0 0
    %308 = vmatprep.subr.bf16.mxu0 0
    %309 = vmatpush1.bf16.msra.mxu0 0
    %310 = vmatprep.subr.bf16.mxu0 0
    %311 = vmatpush1.bf16.msra.mxu0 0
    %312 = vmatprep.subr.bf16.mxu0 0
    %313 = vmatpush1.bf16.msra.mxu0 0
    %314 = vmatprep.subr.bf16.mxu0 0
    %315 = vmatpush1.bf16.msra.mxu0 0
    %316 = vmatprep.subr.bf16.mxu0 0
    %317 = vmatpush1.bf16.msra.mxu0 0
    %318 = vmatprep.subr.bf16.mxu0 0
    %319 = vmatpush1.bf16.msra.mxu0 0
    %320 = vmatprep.subr.bf16.mxu0 0
    %321 = vmatpush1.bf16.msra.mxu0 0
    %322 = vmatprep.subr.bf16.mxu0 0
    %323 = vmatpush1.bf16.msra.mxu0 0
    %324 = vmatprep.subr.bf16.mxu0 0
    %325 = vmatpush1.bf16.msra.mxu0 0
    %326 = vmatprep.subr.bf16.mxu0 0
    %327 = vmatpush1.bf16.msra.mxu0 0
    %328 = vmatprep.subr.bf16.mxu0 0
    %329 = vmatpush1.bf16.msra.mxu0 0
    %330 = vmatprep.subr.bf16.mxu0 0
    %331 = vmatpush1.bf16.msra.mxu0 0
    %332 = vmatprep.mubr.bf16.mxu0 0
    %333 = vmatmul.mubr.bf16.gmra.mrb[0].mxu0 %v298
    %v334 = vpop.f32.mrb[0].mxu0
    %v335 = vadd.f32 %v283, %v334
    %v336 = vpop.f32.mrb[0].mxu0
    %v337 = vpop.f32.mrb[0].mxu0
    %v338 = vadd.f32 %v283, %v337
    %v339 = vpop.f32.mrb[0].mxu0
    %340 = vdwg.mxu0
    %s341 = scalar_lea.vmem %s6, 16
    %v342 = vld [vmem:[%s341] sm:$0xf]
    %v343 = vld [vmem:[%s341 + $0x4] sm:$0xf]
    %v344 = vld [vmem:[%s341 + $0x8] sm:$0xf]
    %v345 = vld [vmem:[%s341 + $0xc] sm:$0xf]
    %s346 = scalar_lea.vmem %s7, 1
    %v347 = vld [vmem:[%s346] sm:$0x1]
    %v349 = vlaneseq
    %v350 = vshrl.u32 %v349, 7
    %v351 = vsub.s32 0, %v350
    %v352 = vrot.slane %v347, %v351
    %v358 = vunpack.c.l.b16 %v342
    %v359 = vunpack.c.l.b16 %v343
    %v360 = vunpack.c.l.b16 %v344
    %v361 = vunpack.c.l.b16 %v345
    %v362 = vpack.c.b16 %v359, %v358
    %v363 = vpack.c.b16 %v361, %v360
    %366 = vmatprep.subr.bf16.mxu0 0
    %367 = vmatpush1.bf16.msra.mxu0 %v362
    %368 = vmatprep.subr.bf16.mxu0 0
    %369 = vmatpush1.bf16.msra.mxu0 %v363
    %370 = vmatprep.subr.bf16.mxu0 0
    %371 = vmatpush1.bf16.msra.mxu0 0
    %372 = vmatprep.subr.bf16.mxu0 0
    %373 = vmatpush1.bf16.msra.mxu0 0
    %374 = vmatprep.subr.bf16.mxu0 0
    %375 = vmatpush1.bf16.msra.mxu0 0
    %376 = vmatprep.subr.bf16.mxu0 0
    %377 = vmatpush1.bf16.msra.mxu0 0
    %378 = vmatprep.subr.bf16.mxu0 0
    %379 = vmatpush1.bf16.msra.mxu0 0
    %380 = vmatprep.subr.bf16.mxu0 0
    %381 = vmatpush1.bf16.msra.mxu0 0
    %382 = vmatprep.subr.bf16.mxu0 0
    %383 = vmatpush1.bf16.msra.mxu0 0
    %384 = vmatprep.subr.bf16.mxu0 0
    %385 = vmatpush1.bf16.msra.mxu0 0
    %386 = vmatprep.subr.bf16.mxu0 0
    %387 = vmatpush1.bf16.msra.mxu0 0
    %388 = vmatprep.subr.bf16.mxu0 0
    %389 = vmatpush1.bf16.msra.mxu0 0
    %390 = vmatprep.subr.bf16.mxu0 0
    %391 = vmatpush1.bf16.msra.mxu0 0
    %392 = vmatprep.subr.bf16.mxu0 0
    %393 = vmatpush1.bf16.msra.mxu0 0
    %394 = vmatprep.subr.bf16.mxu0 0
    %395 = vmatpush1.bf16.msra.mxu0 0
    %396 = vmatprep.subr.bf16.mxu0 0
    %397 = vmatpush1.bf16.msra.mxu0 0
    %398 = vmatprep.mubr.bf16.mxu0 0
    %399 = vmatmul.mubr.bf16.gmra.mrb[0].mxu0 %v298
    %v400 = vpop.f32.mrb[0].mxu0
    %v401 = vadd.f32 %v352, %v400
    %v402 = vpop.f32.mrb[0].mxu0
    %v403 = vpop.f32.mrb[0].mxu0
    %v404 = vadd.f32 %v352, %v403
    %v405 = vpop.f32.mrb[0].mxu0
    %406 = vdwg.mxu0
    %s407 = scalar_lea.vmem %s6, 32
    %v408 = vld [vmem:[%s407] sm:$0xf]
    %v409 = vld [vmem:[%s407 + $0x4] sm:$0xf]
    %v410 = vld [vmem:[%s407 + $0x8] sm:$0xf]
    %v411 = vld [vmem:[%s407 + $0xc] sm:$0xf]
    %s412 = scalar_lea.vmem %s7, 2
    %v413 = vld [vmem:[%s412] sm:$0x1]
    %v415 = vlaneseq
    %v416 = vshrl.u32 %v415, 7
    %v417 = vsub.s32 0, %v416
    %v418 = vrot.slane %v413, %v417
    %v424 = vunpack.c.l.b16 %v408
    %v425 = vunpack.c.l.b16 %v409
    %v426 = vunpack.c.l.b16 %v410
    %v427 = vunpack.c.l.b16 %v411
    %v428 = vpack.c.b16 %v425, %v424
    %v429 = vpack.c.b16 %v427, %v426
    %432 = vmatprep.subr.bf16.mxu0 0
    %433 = vmatpush1.bf16.msra.mxu0 %v428
    %434 = vmatprep.subr.bf16.mxu0 0
    %435 = vmatpush1.bf16.msra.mxu0 %v429
    %436 = vmatprep.subr.bf16.mxu0 0
    %437 = vmatpush1.bf16.msra.mxu0 0
    %438 = vmatprep.subr.bf16.mxu0 0
    %439 = vmatpush1.bf16.msra.mxu0 0
    %440 = vmatprep.subr.bf16.mxu0 0
    %441 = vmatpush1.bf16.msra.mxu0 0
    %442 = vmatprep.subr.bf16.mxu0 0
    %443 = vmatpush1.bf16.msra.mxu0 0
    %444 = vmatprep.subr.bf16.mxu0 0
    %445 = vmatpush1.bf16.msra.mxu0 0
    %446 = vmatprep.subr.bf16.mxu0 0
    %447 = vmatpush1.bf16.msra.mxu0 0
    %448 = vmatprep.subr.bf16.mxu0 0
    %449 = vmatpush1.bf16.msra.mxu0 0
    %450 = vmatprep.subr.bf16.mxu0 0
    %451 = vmatpush1.bf16.msra.mxu0 0
    %452 = vmatprep.subr.bf16.mxu0 0
    %453 = vmatpush1.bf16.msra.mxu0 0
    %454 = vmatprep.subr.bf16.mxu0 0
    %455 = vmatpush1.bf16.msra.mxu0 0
    %456 = vmatprep.subr.bf16.mxu0 0
    %457 = vmatpush1.bf16.msra.mxu0 0
    %458 = vmatprep.subr.bf16.mxu0 0
    %459 = vmatpush1.bf16.msra.mxu0 0
    %460 = vmatprep.subr.bf16.mxu0 0
    %461 = vmatpush1.bf16.msra.mxu0 0
    %462 = vmatprep.subr.bf16.mxu0 0
    %463 = vmatpush1.bf16.msra.mxu0 0
    %464 = vmatprep.mubr.bf16.mxu0 0
    %465 = vmatmul.mubr.bf16.gmra.mrb[0].mxu0 %v298
    %v466 = vpop.f32.mrb[0].mxu0
    %v467 = vadd.f32 %v418, %v466
    %v468 = vpop.f32.mrb[0].mxu0
    %v469 = vpop.f32.mrb[0].mxu0
    %v470 = vadd.f32 %v418, %v469
    %v471 = vpop.f32.mrb[0].mxu0
    %472 = vdwg.mxu0
    %v473 = vpack.c.bf16 %v335, %v335
    %v474 = vpack.c.bf16 %v338, %v338
    %v475 = vpack.c.bf16 %v401, %v401
    %v476 = vpack.c.bf16 %v404, %v404
    %vm477 = vcmask 130048
    %v479 = vsel %vm477, %v473, 0
    %v482 = vsel %vm477, %v475, 0
    %484 = vmatprep.subr.bf16.mxu0 0
    %485 = vmatpush1.bf16.xpose.msra.mxu0 %v482
    %486 = vmatprep.subr.bf16.mxu0 0
    %487 = vmatpush1.bf16.xpose.msra.mxu0 0
    %488 = vmatprep.subr.bf16.mxu0 0
    %489 = vmatpush1.bf16.xpose.msra.mxu0 0
    %490 = vmatprep.subr.bf16.mxu0 0
    %491 = vmatpush1.bf16.xpose.msra.mxu0 0
    %492 = vmatprep.subr.bf16.mxu0 0
    %493 = vmatpush1.bf16.xpose.msra.mxu0 0
    %494 = vmatprep.subr.bf16.mxu0 0
    %495 = vmatpush1.bf16.xpose.msra.mxu0 0
    %496 = vmatprep.subr.bf16.mxu0 0
    %497 = vmatpush1.bf16.xpose.msra.mxu0 0
    %498 = vmatprep.subr.bf16.mxu0 0
    %499 = vmatpush1.bf16.xpose.msra.mxu0 0
    %500 = vmatprep.subr.bf16.mxu0 0
    %501 = vmatpush1.bf16.xpose.msra.mxu0 0
    %502 = vmatprep.subr.bf16.mxu0 0
    %503 = vmatpush1.bf16.xpose.msra.mxu0 0
    %504 = vmatprep.subr.bf16.mxu0 0
    %505 = vmatpush1.bf16.xpose.msra.mxu0 0
    %506 = vmatprep.subr.bf16.mxu0 0
    %507 = vmatpush1.bf16.xpose.msra.mxu0 0
    %508 = vmatprep.subr.bf16.mxu0 0
    %509 = vmatpush1.bf16.xpose.msra.mxu0 0
    %510 = vmatprep.subr.bf16.mxu0 0
    %511 = vmatpush1.bf16.xpose.msra.mxu0 0
    %512 = vmatprep.subr.bf16.mxu0 0
    %513 = vmatpush1.bf16.xpose.msra.mxu0 0
    %514 = vmatprep.subr.bf16.mxu0 0
    %515 = vmatpush1.bf16.xpose.msra.mxu0 0
    %516 = vmatprep.mubr.bf16.mxu0 0
    %517 = vmatmul.mubr.bf16.gmra.mrb[0].mxu0 %v479
    %v518 = vpop.f32.mrb[0].mxu0
    %v519 = vadd.f32 0.0, %v518
    %v520 = vpop.f32.mrb[0].mxu0
    %v521 = vpop.f32.mrb[0].mxu0
    %v522 = vpop.f32.mrb[0].mxu0
    %523 = vdwg.mxu0
    %v525 = vsel %vm477, %v474, 0
    %v528 = vsel %vm477, %v476, 0
    %530 = vmatprep.subr.bf16.mxu0 0
    %531 = vmatpush1.bf16.xpose.msra.mxu0 %v528
    %532 = vmatprep.subr.bf16.mxu0 0
    %533 = vmatpush1.bf16.xpose.msra.mxu0 0
    %534 = vmatprep.subr.bf16.mxu0 0
    %535 = vmatpush1.bf16.xpose.msra.mxu0 0
    %536 = vmatprep.subr.bf16.mxu0 0
    %537 = vmatpush1.bf16.xpose.msra.mxu0 0
    %538 = vmatprep.subr.bf16.mxu0 0
    %539 = vmatpush1.bf16.xpose.msra.mxu0 0
    %540 = vmatprep.subr.bf16.mxu0 0
    %541 = vmatpush1.bf16.xpose.msra.mxu0 0
    %542 = vmatprep.subr.bf16.mxu0 0
    %543 = vmatpush1.bf16.xpose.msra.mxu0 0
    %544 = vmatprep.subr.bf16.mxu0 0
    %545 = vmatpush1.bf16.xpose.msra.mxu0 0
    %546 = vmatprep.subr.bf16.mxu0 0
    %547 = vmatpush1.bf16.xpose.msra.mxu0 0
    %548 = vmatprep.subr.bf16.mxu0 0
    %549 = vmatpush1.bf16.xpose.msra.mxu0 0
    %550 = vmatprep.subr.bf16.mxu0 0
    %551 = vmatpush1.bf16.xpose.msra.mxu0 0
    %552 = vmatprep.subr.bf16.mxu0 0
    %553 = vmatpush1.bf16.xpose.msra.mxu0 0
    %554 = vmatprep.subr.bf16.mxu0 0
    %555 = vmatpush1.bf16.xpose.msra.mxu0 0
    %556 = vmatprep.subr.bf16.mxu0 0
    %557 = vmatpush1.bf16.xpose.msra.mxu0 0
    %558 = vmatprep.subr.bf16.mxu0 0
    %559 = vmatpush1.bf16.xpose.msra.mxu0 0
    %560 = vmatprep.subr.bf16.mxu0 0
    %561 = vmatpush1.bf16.xpose.msra.mxu0 0
    %562 = vmatprep.mubr.bf16.mxu0 0
    %563 = vmatmul.mubr.bf16.gmra.mrb[0].mxu0 %v525
    %v564 = vpop.f32.mrb[0].mxu0
    %v565 = vadd.f32 0.0, %v564
    %v566 = vpop.f32.mrb[0].mxu0
    %v567 = vpop.f32.mrb[0].mxu0
    %v568 = vpop.f32.mrb[0].mxu0
    %569 = vdwg.mxu0
    %v570 = vmul.f32 %v519, 0.25
    %v571 = vmul.f32 %v565, 0.25
    %v572 = vadd.f32 %v570, %v266
    %v573 = vadd.f32 %v571, %v270
    %vm574 = vcmask 64512
    %v575 = vsel %vm574, %v572, -inf
    %576 = vmax.xlane.f32.xlu0 %v575
    %v577 = vpop.xlane.xlu0 %576
    %v578 = vsel %vm574, %v573, -inf
    %579 = vmax.xlane.f32.xlu0 %v578
    %v580 = vpop.xlane.xlu0 %579
    %v581 = vsub.f32 %v572, %v577
    %v582 = vsub.f32 %v573, %v580
    %v583 = vmul.f32 %v581, 1.442695
    %v584 = vpow.pop %v583
    %v585 = vmul.f32 %v582, 1.442695
    %v586 = vpow.pop %v585
    %v587 = vsel %vm574, %v584, 0.0
    %588 = vadd.xlane.f32.xlu0 %v587
    %v589 = vpop.xlane.xlu0 %588
    %v590 = vsel %vm574, %v586, 0.0
    %591 = vadd.xlane.f32.xlu0 %v590
    %v592 = vpop.xlane.xlu0 %591
    %v593 = vrcp.pop %v589
    %v594 = vrcp.pop %v592
    %v595 = vmul.f32 %v584, %v593
    %v596 = vmul.f32 %v586, %v594
    %v597 = vpack.c.bf16 %v595, %v595
    %v598 = vpack.c.bf16 %v596, %v596
    %v599 = vpack.c.bf16 %v467, %v467
    %v600 = vpack.c.bf16 %v470, %v470
    %v602 = vsel %vm574, %v597, 0
    %vm604 = vcmask 1043456
    %v606 = vsel %vm604, %v599, 0
    %608 = vmatprep.subr.bf16.mxu0 0
    %609 = vmatpush1.bf16.msra.mxu0 %v606
    %610 = vmatprep.subr.bf16.mxu0 0
    %611 = vmatpush1.bf16.msra.mxu0 0
    %612 = vmatprep.subr.bf16.mxu0 0
    %613 = vmatpush1.bf16.msra.mxu0 0
    %614 = vmatprep.subr.bf16.mxu0 0
    %615 = vmatpush1.bf16.msra.mxu0 0
    %616 = vmatprep.subr.bf16.mxu0 0
    %617 = vmatpush1.bf16.msra.mxu0 0
    %618 = vmatprep.subr.bf16.mxu0 0
    %619 = vmatpush1.bf16.msra.mxu0 0
    %620 = vmatprep.subr.bf16.mxu0 0
    %621 = vmatpush1.bf16.msra.mxu0 0
    %622 = vmatprep.subr.bf16.mxu0 0
    %623 = vmatpush1.bf16.msra.mxu0 0
    %624 = vmatprep.subr.bf16.mxu0 0
    %625 = vmatpush1.bf16.msra.mxu0 0
    %626 = vmatprep.subr.bf16.mxu0 0
    %627 = vmatpush1.bf16.msra.mxu0 0
    %628 = vmatprep.subr.bf16.mxu0 0
    %629 = vmatpush1.bf16.msra.mxu0 0
    %630 = vmatprep.subr.bf16.mxu0 0
    %631 = vmatpush1.bf16.msra.mxu0 0
    %632 = vmatprep.subr.bf16.mxu0 0
    %633 = vmatpush1.bf16.msra.mxu0 0
    %634 = vmatprep.subr.bf16.mxu0 0
    %635 = vmatpush1.bf16.msra.mxu0 0
    %636 = vmatprep.subr.bf16.mxu0 0
    %637 = vmatpush1.bf16.msra.mxu0 0
    %638 = vmatprep.subr.bf16.mxu0 0
    %639 = vmatpush1.bf16.msra.mxu0 0
    %640 = vmatprep.mubr.bf16.mxu0 0
    %641 = vmatmul.mubr.bf16.gmra.mrb[0].mxu0 %v602
    %v642 = vpop.f32.mrb[0].mxu0
    %v643 = vadd.f32 0.0, %v642
    %v644 = vpop.f32.mrb[0].mxu0
    %v645 = vpop.f32.mrb[0].mxu0
    %v646 = vpop.f32.mrb[0].mxu0
    %647 = vdwg.mxu0
    %v649 = vsel %vm574, %v598, 0
    %v652 = vsel %vm604, %v600, 0
    %654 = vmatprep.subr.bf16.mxu0 0
    %655 = vmatpush1.bf16.msra.mxu0 %v652
    %656 = vmatprep.subr.bf16.mxu0 0
    %657 = vmatpush1.bf16.msra.mxu0 0
    %658 = vmatprep.subr.bf16.mxu0 0
    %659 = vmatpush1.bf16.msra.mxu0 0
    %660 = vmatprep.subr.bf16.mxu0 0
    %661 = vmatpush1.bf16.msra.mxu0 0
    %662 = vmatprep.subr.bf16.mxu0 0
    %663 = vmatpush1.bf16.msra.mxu0 0
    %664 = vmatprep.subr.bf16.mxu0 0
    %665 = vmatpush1.bf16.msra.mxu0 0
    %666 = vmatprep.subr.bf16.mxu0 0
    %667 = vmatpush1.bf16.msra.mxu0 0
    %668 = vmatprep.subr.bf16.mxu0 0
    %669 = vmatpush1.bf16.msra.mxu0 0
    %670 = vmatprep.subr.bf16.mxu0 0
    %671 = vmatpush1.bf16.msra.mxu0 0
    %672 = vmatprep.subr.bf16.mxu0 0
    %673 = vmatpush1.bf16.msra.mxu0 0
    %674 = vmatprep.subr.bf16.mxu0 0
    %675 = vmatpush1.bf16.msra.mxu0 0
    %676 = vmatprep.subr.bf16.mxu0 0
    %677 = vmatpush1.bf16.msra.mxu0 0
    %678 = vmatprep.subr.bf16.mxu0 0
    %679 = vmatpush1.bf16.msra.mxu0 0
    %680 = vmatprep.subr.bf16.mxu0 0
    %681 = vmatpush1.bf16.msra.mxu0 0
    %682 = vmatprep.subr.bf16.mxu0 0
    %683 = vmatpush1.bf16.msra.mxu0 0
    %684 = vmatprep.subr.bf16.mxu0 0
    %685 = vmatpush1.bf16.msra.mxu0 0
    %686 = vmatprep.mubr.bf16.mxu0 0
    %687 = vmatmul.mubr.bf16.gmra.mrb[0].mxu0 %v649
    %v688 = vpop.f32.mrb[0].mxu0
    %v689 = vadd.f32 0.0, %v688
    %v690 = vpop.f32.mrb[0].mxu0
    %v691 = vpop.f32.mrb[0].mxu0
    %v692 = vpop.f32.mrb[0].mxu0
    %693 = vdwg.mxu0
    %v694 = vld [vmem:[%s8] sm:$0xf]
    %v695 = vld [vmem:[%s8 + $0x4] sm:$0xf]
    %v696 = vpack.c.bf16 %v689, %v643
    %s697 = scalar_lea.vmem %s6, 48
    %v698 = vld [vmem:[%s697] sm:$0xf]
    %v699 = vld [vmem:[%s697 + $0x4] sm:$0xf]
    %v700 = vld [vmem:[%s697 + $0x8] sm:$0xf]
    %v701 = vld [vmem:[%s697 + $0xc] sm:$0xf]
    %s702 = scalar_lea.vmem %s7, 3
    %v703 = vld [vmem:[%s702] sm:$0x1]
    %v705 = vlaneseq
    %v706 = vshrl.u32 %v705, 7
    %v707 = vsub.s32 0, %v706
    %v708 = vrot.slane %v703, %v707
    %v714 = vunpack.c.l.b16 %v698
    %v715 = vunpack.c.l.b16 %v699
    %v716 = vunpack.c.l.b16 %v700
    %v717 = vunpack.c.l.b16 %v701
    %v718 = vpack.c.b16 %v715, %v714
    %v719 = vpack.c.b16 %v717, %v716
    %722 = vmatprep.subr.bf16.mxu0 0
    %723 = vmatpush1.bf16.msra.mxu0 %v718
    %724 = vmatprep.subr.bf16.mxu0 0
    %725 = vmatpush1.bf16.msra.mxu0 %v719
    %726 = vmatprep.subr.bf16.mxu0 0
    %727 = vmatpush1.bf16.msra.mxu0 0
    %728 = vmatprep.subr.bf16.mxu0 0
    %729 = vmatpush1.bf16.msra.mxu0 0
    %730 = vmatprep.subr.bf16.mxu0 0
    %731 = vmatpush1.bf16.msra.mxu0 0
    %732 = vmatprep.subr.bf16.mxu0 0
    %733 = vmatpush1.bf16.msra.mxu0 0
    %734 = vmatprep.subr.bf16.mxu0 0
    %735 = vmatpush1.bf16.msra.mxu0 0
    %736 = vmatprep.subr.bf16.mxu0 0
    %737 = vmatpush1.bf16.msra.mxu0 0
    %738 = vmatprep.subr.bf16.mxu0 0
    %739 = vmatpush1.bf16.msra.mxu0 0
    %740 = vmatprep.subr.bf16.mxu0 0
    %741 = vmatpush1.bf16.msra.mxu0 0
    %742 = vmatprep.subr.bf16.mxu0 0
    %743 = vmatpush1.bf16.msra.mxu0 0
    %744 = vmatprep.subr.bf16.mxu0 0
    %745 = vmatpush1.bf16.msra.mxu0 0
    %746 = vmatprep.subr.bf16.mxu0 0
    %747 = vmatpush1.bf16.msra.mxu0 0
    %748 = vmatprep.subr.bf16.mxu0 0
    %749 = vmatpush1.bf16.msra.mxu0 0
    %750 = vmatprep.subr.bf16.mxu0 0
    %751 = vmatpush1.bf16.msra.mxu0 0
    %752 = vmatprep.subr.bf16.mxu0 0
    %753 = vmatpush1.bf16.msra.mxu0 0
    %754 = vmatprep.mubr.bf16.mxu0 0
    %755 = vmatmul.mubr.bf16.gmra.mrb[0].mxu0 %v298
    %v756 = vpop.f32.mrb[0].mxu0
    %v757 = vadd.f32 %v708, %v756
    %v758 = vpop.f32.mrb[0].mxu0
    %v759 = vpop.f32.mrb[0].mxu0
    %v760 = vadd.f32 %v708, %v759
    %v761 = vpop.f32.mrb[0].mxu0
    %762 = vdwg.mxu0
    %s763 = scalar_lea.vmem %s6, 64
    %v764 = vld [vmem:[%s763] sm:$0xf]
    %v765 = vld [vmem:[%s763 + $0x4] sm:$0xf]
    %v766 = vld [vmem:[%s763 + $0x8] sm:$0xf]
    %v767 = vld [vmem:[%s763 + $0xc] sm:$0xf]
    %s768 = scalar_lea.vmem %s7, 4
    %v769 = vld [vmem:[%s768] sm:$0x1]
    %v771 = vlaneseq
    %v772 = vshrl.u32 %v771, 7
    %v773 = vsub.s32 0, %v772
    %v774 = vrot.slane %v769, %v773
    %v780 = vunpack.c.l.b16 %v764
    %v781 = vunpack.c.l.b16 %v765
    %v782 = vunpack.c.l.b16 %v766
    %v783 = vunpack.c.l.b16 %v767
    %v784 = vpack.c.b16 %v781, %v780
    %v785 = vpack.c.b16 %v783, %v782
    %788 = vmatprep.subr.bf16.mxu0 0
    %789 = vmatpush1.bf16.msra.mxu0 %v784
    %790 = vmatprep.subr.bf16.mxu0 0
    %791 = vmatpush1.bf16.msra.mxu0 %v785
    %792 = vmatprep.subr.bf16.mxu0 0
    %793 = vmatpush1.bf16.msra.mxu0 0
    %794 = vmatprep.subr.bf16.mxu0 0
    %795 = vmatpush1.bf16.msra.mxu0 0
    %796 = vmatprep.subr.bf16.mxu0 0
    %797 = vmatpush1.bf16.msra.mxu0 0
    %798 = vmatprep.subr.bf16.mxu0 0
    %799 = vmatpush1.bf16.msra.mxu0 0
    %800 = vmatprep.subr.bf16.mxu0 0
    %801 = vmatpush1.bf16.msra.mxu0 0
    %802 = vmatprep.subr.bf16.mxu0 0
    %803 = vmatpush1.bf16.msra.mxu0 0
    %804 = vmatprep.subr.bf16.mxu0 0
    %805 = vmatpush1.bf16.msra.mxu0 0
    %806 = vmatprep.subr.bf16.mxu0 0
    %807 = vmatpush1.bf16.msra.mxu0 0
    %808 = vmatprep.subr.bf16.mxu0 0
    %809 = vmatpush1.bf16.msra.mxu0 0
    %810 = vmatprep.subr.bf16.mxu0 0
    %811 = vmatpush1.bf16.msra.mxu0 0
    %812 = vmatprep.subr.bf16.mxu0 0
    %813 = vmatpush1.bf16.msra.mxu0 0
    %814 = vmatprep.subr.bf16.mxu0 0
    %815 = vmatpush1.bf16.msra.mxu0 0
    %816 = vmatprep.subr.bf16.mxu0 0
    %817 = vmatpush1.bf16.msra.mxu0 0
    %818 = vmatprep.subr.bf16.mxu0 0
    %819 = vmatpush1.bf16.msra.mxu0 0
    %820 = vmatprep.mubr.bf16.mxu0 0
    %821 = vmatmul.mubr.bf16.gmra.mrb[0].mxu0 %v298
    %v822 = vpop.f32.mrb[0].mxu0
    %v823 = vadd.f32 %v774, %v822
    %v824 = vpop.f32.mrb[0].mxu0
    %v825 = vpop.f32.mrb[0].mxu0
    %v826 = vadd.f32 %v774, %v825
    %v827 = vpop.f32.mrb[0].mxu0
    %828 = vdwg.mxu0
    %s829 = scalar_lea.vmem %s6, 80
    %v830 = vld [vmem:[%s829] sm:$0xf]
    %v831 = vld [vmem:[%s829 + $0x4] sm:$0xf]
    %v832 = vld [vmem:[%s829 + $0x8] sm:$0xf]
    %v833 = vld [vmem:[%s829 + $0xc] sm:$0xf]
    %s834 = scalar_lea.vmem %s7, 5
    %v835 = vld [vmem:[%s834] sm:$0x1]
    %v837 = vlaneseq
    %v838 = vshrl.u32 %v837, 7
    %v839 = vsub.s32 0, %v838
    %v840 = vrot.slane %v835, %v839
    %v846 = vunpack.c.l.b16 %v830
    %v847 = vunpack.c.l.b16 %v831
    %v848 = vunpack.c.l.b16 %v832
    %v849 = vunpack.c.l.b16 %v833
    %v850 = vpack.c.b16 %v847, %v846
    %v851 = vpack.c.b16 %v849, %v848
    %854 = vmatprep.subr.bf16.mxu0 0
    %855 = vmatpush1.bf16.msra.mxu0 %v850
    %856 = vmatprep.subr.bf16.mxu0 0
    %857 = vmatpush1.bf16.msra.mxu0 %v851
    %858 = vmatprep.subr.bf16.mxu0 0
    %859 = vmatpush1.bf16.msra.mxu0 0
    %860 = vmatprep.subr.bf16.mxu0 0
    %861 = vmatpush1.bf16.msra.mxu0 0
    %862 = vmatprep.subr.bf16.mxu0 0
    %863 = vmatpush1.bf16.msra.mxu0 0
    %864 = vmatprep.subr.bf16.mxu0 0
    %865 = vmatpush1.bf16.msra.mxu0 0
    %866 = vmatprep.subr.bf16.mxu0 0
    %867 = vmatpush1.bf16.msra.mxu0 0
    %868 = vmatprep.subr.bf16.mxu0 0
    %869 = vmatpush1.bf16.msra.mxu0 0
    %870 = vmatprep.subr.bf16.mxu0 0
    %871 = vmatpush1.bf16.msra.mxu0 0
    %872 = vmatprep.subr.bf16.mxu0 0
    %873 = vmatpush1.bf16.msra.mxu0 0
    %874 = vmatprep.subr.bf16.mxu0 0
    %875 = vmatpush1.bf16.msra.mxu0 0
    %876 = vmatprep.subr.bf16.mxu0 0
    %877 = vmatpush1.bf16.msra.mxu0 0
    %878 = vmatprep.subr.bf16.mxu0 0
    %879 = vmatpush1.bf16.msra.mxu0 0
    %880 = vmatprep.subr.bf16.mxu0 0
    %881 = vmatpush1.bf16.msra.mxu0 0
    %882 = vmatprep.subr.bf16.mxu0 0
    %883 = vmatpush1.bf16.msra.mxu0 0
    %884 = vmatprep.subr.bf16.mxu0 0
    %885 = vmatpush1.bf16.msra.mxu0 0
    %886 = vmatprep.mubr.bf16.mxu0 0
    %887 = vmatmul.mubr.bf16.gmra.mrb[0].mxu0 %v298
    %v888 = vpop.f32.mrb[0].mxu0
    %v889 = vadd.f32 %v840, %v888
    %v890 = vpop.f32.mrb[0].mxu0
    %v891 = vpop.f32.mrb[0].mxu0
    %v892 = vadd.f32 %v840, %v891
    %v893 = vpop.f32.mrb[0].mxu0
    %894 = vdwg.mxu0
    %v895 = vpack.c.bf16 %v757, %v757
    %v896 = vpack.c.bf16 %v760, %v760
    %v897 = vpack.c.bf16 %v823, %v823
    %v898 = vpack.c.bf16 %v826, %v826
    %v900 = vsel %vm477, %v895, 0
    %v903 = vsel %vm477, %v897, 0
    %905 = vmatprep.subr.bf16.mxu0 0
    %906 = vmatpush1.bf16.xpose.msra.mxu0 %v903
    %907 = vmatprep.subr.bf16.mxu0 0
    %908 = vmatpush1.bf16.xpose.msra.mxu0 0
    %909 = vmatprep.subr.bf16.mxu0 0
    %910 = vmatpush1.bf16.xpose.msra.mxu0 0
    %911 = vmatprep.subr.bf16.mxu0 0
    %912 = vmatpush1.bf16.xpose.msra.mxu0 0
    %913 = vmatprep.subr.bf16.mxu0 0
    %914 = vmatpush1.bf16.xpose.msra.mxu0 0
    %915 = vmatprep.subr.bf16.mxu0 0
    %916 = vmatpush1.bf16.xpose.msra.mxu0 0
    %917 = vmatprep.subr.bf16.mxu0 0
    %918 = vmatpush1.bf16.xpose.msra.mxu0 0
    %919 = vmatprep.subr.bf16.mxu0 0
    %920 = vmatpush1.bf16.xpose.msra.mxu0 0
    %921 = vmatprep.subr.bf16.mxu0 0
    %922 = vmatpush1.bf16.xpose.msra.mxu0 0
    %923 = vmatprep.subr.bf16.mxu0 0
    %924 = vmatpush1.bf16.xpose.msra.mxu0 0
    %925 = vmatprep.subr.bf16.mxu0 0
    %926 = vmatpush1.bf16.xpose.msra.mxu0 0
    %927 = vmatprep.subr.bf16.mxu0 0
    %928 = vmatpush1.bf16.xpose.msra.mxu0 0
    %929 = vmatprep.subr.bf16.mxu0 0
    %930 = vmatpush1.bf16.xpose.msra.mxu0 0
    %931 = vmatprep.subr.bf16.mxu0 0
    %932 = vmatpush1.bf16.xpose.msra.mxu0 0
    %933 = vmatprep.subr.bf16.mxu0 0
    %934 = vmatpush1.bf16.xpose.msra.mxu0 0
    %935 = vmatprep.subr.bf16.mxu0 0
    %936 = vmatpush1.bf16.xpose.msra.mxu0 0
    %937 = vmatprep.mubr.bf16.mxu0 0
    %938 = vmatmul.mubr.bf16.gmra.mrb[0].mxu0 %v900
    %v939 = vpop.f32.mrb[0].mxu0
    %v940 = vadd.f32 0.0, %v939
    %v941 = vpop.f32.mrb[0].mxu0
    %v942 = vpop.f32.mrb[0].mxu0
    %v943 = vpop.f32.mrb[0].mxu0
    %944 = vdwg.mxu0
    %v946 = vsel %vm477, %v896, 0
    %v949 = vsel %vm477, %v898, 0
    %951 = vmatprep.subr.bf16.mxu0 0
    %952 = vmatpush1.bf16.xpose.msra.mxu0 %v949
    %953 = vmatprep.subr.bf16.mxu0 0
    %954 = vmatpush1.bf16.xpose.msra.mxu0 0
    %955 = vmatprep.subr.bf16.mxu0 0
    %956 = vmatpush1.bf16.xpose.msra.mxu0 0
    %957 = vmatprep.subr.bf16.mxu0 0
    %958 = vmatpush1.bf16.xpose.msra.mxu0 0
    %959 = vmatprep.subr.bf16.mxu0 0
    %960 = vmatpush1.bf16.xpose.msra.mxu0 0
    %961 = vmatprep.subr.bf16.mxu0 0
    %962 = vmatpush1.bf16.xpose.msra.mxu0 0
    %963 = vmatprep.subr.bf16.mxu0 0
    %964 = vmatpush1.bf16.xpose.msra.mxu0 0
    %965 = vmatprep.subr.bf16.mxu0 0
    %966 = vmatpush1.bf16.xpose.msra.mxu0 0
    %967 = vmatprep.subr.bf16.mxu0 0
    %968 = vmatpush1.bf16.xpose.msra.mxu0 0
    %969 = vmatprep.subr.bf16.mxu0 0
    %970 = vmatpush1.bf16.xpose.msra.mxu0 0
    %971 = vmatprep.subr.bf16.mxu0 0
    %972 = vmatpush1.bf16.xpose.msra.mxu0 0
    %973 = vmatprep.subr.bf16.mxu0 0
    %974 = vmatpush1.bf16.xpose.msra.mxu0 0
    %975 = vmatprep.subr.bf16.mxu0 0
    %976 = vmatpush1.bf16.xpose.msra.mxu0 0
    %977 = vmatprep.subr.bf16.mxu0 0
    %978 = vmatpush1.bf16.xpose.msra.mxu0 0
    %979 = vmatprep.subr.bf16.mxu0 0
    %980 = vmatpush1.bf16.xpose.msra.mxu0 0
    %981 = vmatprep.subr.bf16.mxu0 0
    %982 = vmatpush1.bf16.xpose.msra.mxu0 0
    %983 = vmatprep.mubr.bf16.mxu0 0
    %984 = vmatmul.mubr.bf16.gmra.mrb[0].mxu0 %v946
    %v985 = vpop.f32.mrb[0].mxu0
    %v986 = vadd.f32 0.0, %v985
    %v987 = vpop.f32.mrb[0].mxu0
    %v988 = vpop.f32.mrb[0].mxu0
    %v989 = vpop.f32.mrb[0].mxu0
    %990 = vdwg.mxu0
    %v991 = vmul.f32 %v940, 0.25
    %v992 = vmul.f32 %v986, 0.25
    %v993 = vadd.f32 %v991, %v266
    %v994 = vadd.f32 %v992, %v270
    %v995 = vsel %vm574, %v993, -inf
    %996 = vmax.xlane.f32.xlu0 %v995
    %v997 = vpop.xlane.xlu0 %996
    %v998 = vsel %vm574, %v994, -inf
    %999 = vmax.xlane.f32.xlu0 %v998
    %v1000 = vpop.xlane.xlu0 %999
    %v1001 = vsub.f32 %v993, %v997
    %v1002 = vsub.f32 %v994, %v1000
    %v1003 = vmul.f32 %v1001, 1.442695
    %v1004 = vpow.pop %v1003
    %v1005 = vmul.f32 %v1002, 1.442695
    %v1006 = vpow.pop %v1005
    %v1007 = vsel %vm574, %v1004, 0.0
    %1008 = vadd.xlane.f32.xlu0 %v1007
    %v1009 = vpop.xlane.xlu0 %1008
    %v1010 = vsel %vm574, %v1006, 0.0
    %1011 = vadd.xlane.f32.xlu0 %v1010
    %v1012 = vpop.xlane.xlu0 %1011
    %v1013 = vrcp.pop %v1009
    %v1014 = vrcp.pop %v1012
    %v1015 = vmul.f32 %v1004, %v1013
    %v1016 = vmul.f32 %v1006, %v1014
    %v1017 = vpack.c.bf16 %v1015, %v1015
    %v1018 = vpack.c.bf16 %v1016, %v1016
    %v1019 = vpack.c.bf16 %v889, %v889
    %v1020 = vpack.c.bf16 %v892, %v892
    %v1022 = vsel %vm574, %v1017, 0
    %v1025 = vsel %vm604, %v1019, 0
    %1027 = vmatprep.subr.bf16.mxu0 0
    %1028 = vmatpush1.bf16.msra.mxu0 %v1025
    %1029 = vmatprep.subr.bf16.mxu0 0
    %1030 = vmatpush1.bf16.msra.mxu0 0
    %1031 = vmatprep.subr.bf16.mxu0 0
    %1032 = vmatpush1.bf16.msra.mxu0 0
    %1033 = vmatprep.subr.bf16.mxu0 0
    %1034 = vmatpush1.bf16.msra.mxu0 0
    %1035 = vmatprep.subr.bf16.mxu0 0
    %1036 = vmatpush1.bf16.msra.mxu0 0
    %1037 = vmatprep.subr.bf16.mxu0 0
    %1038 = vmatpush1.bf16.msra.mxu0 0
    %1039 = vmatprep.subr.bf16.mxu0 0
    %1040 = vmatpush1.bf16.msra.mxu0 0
    %1041 = vmatprep.subr.bf16.mxu0 0
    %1042 = vmatpush1.bf16.msra.mxu0 0
    %1043 = vmatprep.subr.bf16.mxu0 0
    %1044 = vmatpush1.bf16.msra.mxu0 0
    %1045 = vmatprep.subr.bf16.mxu0 0
    %1046 = vmatpush1.bf16.msra.mxu0 0
    %1047 = vmatprep.subr.bf16.mxu0 0
    %1048 = vmatpush1.bf16.msra.mxu0 0
    %1049 = vmatprep.subr.bf16.mxu0 0
    %1050 = vmatpush1.bf16.msra.mxu0 0
    %1051 = vmatprep.subr.bf16.mxu0 0
    %1052 = vmatpush1.bf16.msra.mxu0 0
    %1053 = vmatprep.subr.bf16.mxu0 0
    %1054 = vmatpush1.bf16.msra.mxu0 0
    %1055 = vmatprep.subr.bf16.mxu0 0
    %1056 = vmatpush1.bf16.msra.mxu0 0
    %1057 = vmatprep.subr.bf16.mxu0 0
    %1058 = vmatpush1.bf16.msra.mxu0 0
    %1059 = vmatprep.mubr.bf16.mxu0 0
    %1060 = vmatmul.mubr.bf16.gmra.mrb[0].mxu0 %v1022
    %v1061 = vpop.f32.mrb[0].mxu0
    %v1062 = vadd.f32 0.0, %v1061
    %v1063 = vpop.f32.mrb[0].mxu0
    %v1064 = vpop.f32.mrb[0].mxu0
    %v1065 = vpop.f32.mrb[0].mxu0
    %1066 = vdwg.mxu0
    %v1068 = vsel %vm574, %v1018, 0
    %v1071 = vsel %vm604, %v1020, 0
    %1073 = vmatprep.subr.bf16.mxu0 0
    %1074 = vmatpush1.bf16.msra.mxu0 %v1071
    %1075 = vmatprep.subr.bf16.mxu0 0
    %1076 = vmatpush1.bf16.msra.mxu0 0
    %1077 = vmatprep.subr.bf16.mxu0 0
    %1078 = vmatpush1.bf16.msra.mxu0 0
    %1079 = vmatprep.subr.bf16.mxu0 0
    %1080 = vmatpush1.bf16.msra.mxu0 0
    %1081 = vmatprep.subr.bf16.mxu0 0
    %1082 = vmatpush1.bf16.msra.mxu0 0
    %1083 = vmatprep.subr.bf16.mxu0 0
    %1084 = vmatpush1.bf16.msra.mxu0 0
    %1085 = vmatprep.subr.bf16.mxu0 0
    %1086 = vmatpush1.bf16.msra.mxu0 0
    %1087 = vmatprep.subr.bf16.mxu0 0
    %1088 = vmatpush1.bf16.msra.mxu0 0
    %1089 = vmatprep.subr.bf16.mxu0 0
    %1090 = vmatpush1.bf16.msra.mxu0 0
    %1091 = vmatprep.subr.bf16.mxu0 0
    %1092 = vmatpush1.bf16.msra.mxu0 0
    %1093 = vmatprep.subr.bf16.mxu0 0
    %1094 = vmatpush1.bf16.msra.mxu0 0
    %1095 = vmatprep.subr.bf16.mxu0 0
    %1096 = vmatpush1.bf16.msra.mxu0 0
    %1097 = vmatprep.subr.bf16.mxu0 0
    %1098 = vmatpush1.bf16.msra.mxu0 0
    %1099 = vmatprep.subr.bf16.mxu0 0
    %1100 = vmatpush1.bf16.msra.mxu0 0
    %1101 = vmatprep.subr.bf16.mxu0 0
    %1102 = vmatpush1.bf16.msra.mxu0 0
    %1103 = vmatprep.subr.bf16.mxu0 0
    %1104 = vmatpush1.bf16.msra.mxu0 0
    %1105 = vmatprep.mubr.bf16.mxu0 0
    %1106 = vmatmul.mubr.bf16.gmra.mrb[0].mxu0 %v1068
    %v1107 = vpop.f32.mrb[0].mxu0
    %v1108 = vadd.f32 0.0, %v1107
    %v1109 = vpop.f32.mrb[0].mxu0
    %v1110 = vpop.f32.mrb[0].mxu0
    %v1111 = vpop.f32.mrb[0].mxu0
    %1112 = vdwg.mxu0
    %s1113 = scalar_lea.vmem %s8, 8
    %v1114 = vld [vmem:[%s1113] sm:$0xf]
    %v1115 = vld [vmem:[%s1113 + $0x4] sm:$0xf]
    %v1116 = vpack.c.bf16 %v1108, %v1062
    %v1119 = vunpack.c.l.b16 %v1114
    %v1120 = vunpack.c.l.b16 %v1115
    %v1121 = vpack.c.b16 %v1120, %v1119
    %v1124 = vsel %vm477, %v1116, 0
    %1126 = vmatprep.subr.bf16.mxu0 0
    %1127 = vmatpush1.bf16.msra.mxu0 %v1121
    %1128 = vmatprep.subr.bf16.mxu0 0
    %1129 = vmatpush1.bf16.msra.mxu0 0
    %1130 = vmatprep.subr.bf16.mxu0 0
    %1131 = vmatpush1.bf16.msra.mxu0 0
    %1132 = vmatprep.subr.bf16.mxu0 0
    %1133 = vmatpush1.bf16.msra.mxu0 0
    %1134 = vmatprep.subr.bf16.mxu0 0
    %1135 = vmatpush1.bf16.msra.mxu0 0
    %1136 = vmatprep.subr.bf16.mxu0 0
    %1137 = vmatpush1.bf16.msra.mxu0 0
    %1138 = vmatprep.subr.bf16.mxu0 0
    %1139 = vmatpush1.bf16.msra.mxu0 0
    %1140 = vmatprep.subr.bf16.mxu0 0
    %1141 = vmatpush1.bf16.msra.mxu0 0
    %1142 = vmatprep.subr.bf16.mxu0 0
    %1143 = vmatpush1.bf16.msra.mxu0 0
    %1144 = vmatprep.subr.bf16.mxu0 0
    %1145 = vmatpush1.bf16.msra.mxu0 0
    %1146 = vmatprep.subr.bf16.mxu0 0
    %1147 = vmatpush1.bf16.msra.mxu0 0
    %1148 = vmatprep.subr.bf16.mxu0 0
    %1149 = vmatpush1.bf16.msra.mxu0 0
    %1150 = vmatprep.subr.bf16.mxu0 0
    %1151 = vmatpush1.bf16.msra.mxu0 0
    %1152 = vmatprep.subr.bf16.mxu0 0
    %1153 = vmatpush1.bf16.msra.mxu0 0
    %1154 = vmatprep.subr.bf16.mxu0 0
    %1155 = vmatpush1.bf16.msra.mxu0 0
    %1156 = vmatprep.subr.bf16.mxu0 0
    %1157 = vmatpush1.bf16.msra.mxu0 0
    %1158 = vmatprep.mubr.bf16.mxu0 0
    %1159 = vmatmul.mubr.bf16.gmra.mrb[0].mxu0 %v1124
    %v1160 = vpop.f32.mrb[0].mxu0
    %v1161 = vadd.f32 0.0, %v1160
    %v1162 = vpop.f32.mrb[0].mxu0
    %v1163 = vpop.f32.mrb[0].mxu0
    %v1164 = vadd.f32 0.0, %v1163
    %v1165 = vpop.f32.mrb[0].mxu0
    %1166 = vdwg.mxu0
    %v1169 = vunpack.c.l.b16 %v694
    %v1170 = vunpack.c.l.b16 %v695
    %v1171 = vpack.c.b16 %v1170, %v1169
    %v1174 = vsel %vm477, %v696, 0
    %1176 = vmatprep.subr.bf16.mxu0 0
    %1177 = vmatpush1.bf16.msra.mxu0 %v1171
    %1178 = vmatprep.subr.bf16.mxu0 0
    %1179 = vmatpush1.bf16.msra.mxu0 0
    %1180 = vmatprep.subr.bf16.mxu0 0
    %1181 = vmatpush1.bf16.msra.mxu0 0
    %1182 = vmatprep.subr.bf16.mxu0 0
    %1183 = vmatpush1.bf16.msra.mxu0 0
    %1184 = vmatprep.subr.bf16.mxu0 0
    %1185 = vmatpush1.bf16.msra.mxu0 0
    %1186 = vmatprep.subr.bf16.mxu0 0
    %1187 = vmatpush1.bf16.msra.mxu0 0
    %1188 = vmatprep.subr.bf16.mxu0 0
    %1189 = vmatpush1.bf16.msra.mxu0 0
    %1190 = vmatprep.subr.bf16.mxu0 0
    %1191 = vmatpush1.bf16.msra.mxu0 0
    %1192 = vmatprep.subr.bf16.mxu0 0
    %1193 = vmatpush1.bf16.msra.mxu0 0
    %1194 = vmatprep.subr.bf16.mxu0 0
    %1195 = vmatpush1.bf16.msra.mxu0 0
    %1196 = vmatprep.subr.bf16.mxu0 0
    %1197 = vmatpush1.bf16.msra.mxu0 0
    %1198 = vmatprep.subr.bf16.mxu0 0
    %1199 = vmatpush1.bf16.msra.mxu0 0
    %1200 = vmatprep.subr.bf16.mxu0 0
    %1201 = vmatpush1.bf16.msra.mxu0 0
    %1202 = vmatprep.subr.bf16.mxu0 0
    %1203 = vmatpush1.bf16.msra.mxu0 0
    %1204 = vmatprep.subr.bf16.mxu0 0
    %1205 = vmatpush1.bf16.msra.mxu0 0
    %1206 = vmatprep.subr.bf16.mxu0 0
    %1207 = vmatpush1.bf16.msra.mxu0 0
    %1208 = vmatprep.mubr.bf16.mxu0 0
    %1209 = vmatmul.mubr.bf16.gmra.mrb[0].mxu0 %v1174
    %v1210 = vpop.f32.mrb[0].mxu0
    %v1211 = vadd.f32 %v1161, %v1210
    %v1212 = vpop.f32.mrb[0].mxu0
    %v1213 = vpop.f32.mrb[0].mxu0
    %v1214 = vadd.f32 %v1164, %v1213
    %v1215 = vpop.f32.mrb[0].mxu0
    %1216 = vdwg.mxu0
    %v1217 = vld [vmem:[%s9] sm:$0x1]
    %v1219 = vlaneseq
    %v1220 = vshrl.u32 %v1219, 7
    %v1221 = vsub.s32 0, %v1220
    %v1222 = vrot.slane %v1217, %v1221
    %v1224 = vadd.f32 %v1211, %v1222
    %v1225 = vadd.f32 %v1214, %v1222
    %v1226 = vadd.f32 %v1224, %v235
    %v1227 = vadd.f32 %v1225, %v236
    %v1228 = vld [vmem:[%s10] sm:$0x1]
    %v1229 = vld [vmem:[%s11] sm:$0x1]
    %v1230 = vsel %vm193, %v1226, 0.0
    %1231 = vadd.xlane.f32.xlu0 %v1230
    %v1232 = vpop.xlane.xlu0 %1231
    %v1233 = vsel %vm193, %v1227, 0.0
    %1234 = vadd.xlane.f32.xlu0 %v1233
    %v1235 = vpop.xlane.xlu0 %1234
    %v1236 = vmul.f32 %v1232, %v200
    %v1237 = vmul.f32 %v1235, %v200
    %v1238 = vsub.f32 %v1226, %v1236
    %v1239 = vsub.f32 %v1227, %v1237
    %v1240 = vmul.f32 %v1238, %v1238
    %v1241 = vmul.f32 %v1239, %v1239
    %v1242 = vsel %vm193, %v1240, 0.0
    %1243 = vadd.xlane.f32.xlu0 %v1242
    %v1244 = vpop.xlane.xlu0 %1243
    %v1245 = vsel %vm193, %v1241, 0.0
    %1246 = vadd.xlane.f32.xlu0 %v1245
    %v1247 = vpop.xlane.xlu0 %1246
    %v1248 = vmul.f32 %v1244, %v200
    %v1249 = vmul.f32 %v1247, %v200
    %v1250 = vadd.f32 %v1248, 1e-12
    %v1251 = vadd.f32 %v1249, 1e-12
    %v1252 = vrsqrt.pop %v1250
    %v1253 = vrsqrt.pop %v1251
    %v1254 = vmul.f32 %v1238, %v1252
    %v1255 = vmul.f32 %v1239, %v1253
    %v1257 = vlaneseq
    %v1258 = vshrl.u32 %v1257, 7
    %v1259 = vsub.s32 0, %v1258
    %v1260 = vrot.slane %v1228, %v1259
    %v1262 = vmul.f32 %v1254, %v1260
    %v1263 = vmul.f32 %v1255, %v1260
    %v1265 = vlaneseq
    %v1266 = vshrl.u32 %v1265, 7
    %v1267 = vsub.s32 0, %v1266
    %v1268 = vrot.slane %v1229, %v1267
    %v1270 = vadd.f32 %v1262, %v1268
    %v1271 = vadd.f32 %v1263, %v1268
    %v1272 = vld [vmem:[%s12] sm:$0xf]
    %v1273 = vld [vmem:[%s12 + $0x4] sm:$0xf]
    %v1274 = vld [vmem:[%s12 + $0x8] sm:$0xf]
    %v1275 = vld [vmem:[%s12 + $0xc] sm:$0xf]
    %v1276 = vpack.c.bf16 %v1271, %v1270
    %v1277 = vld [vmem:[%s13] sm:$0x1]
    %v1279 = vlaneseq
    %v1280 = vshrl.u32 %v1279, 7
    %v1281 = vsub.s32 0, %v1280
    %v1282 = vrot.slane %v1277, %v1281
    %v1288 = vunpack.c.l.b16 %v1272
    %v1289 = vunpack.c.l.b16 %v1273
    %v1290 = vunpack.c.l.b16 %v1274
    %v1291 = vunpack.c.l.b16 %v1275
    %v1292 = vpack.c.b16 %v1289, %v1288
    %v1293 = vpack.c.b16 %v1291, %v1290
    %v1297 = vsel %vm193, %v1276, 0
    %1299 = vmatprep.subr.bf16.mxu0 0
    %1300 = vmatpush1.bf16.msra.mxu0 %v1292
    %1301 = vmatprep.subr.bf16.mxu0 0
    %1302 = vmatpush1.bf16.msra.mxu0 %v1293
    %1303 = vmatprep.subr.bf16.mxu0 0
    %1304 = vmatpush1.bf16.msra.mxu0 0
    %1305 = vmatprep.subr.bf16.mxu0 0
    %1306 = vmatpush1.bf16.msra.mxu0 0
    %1307 = vmatprep.subr.bf16.mxu0 0
    %1308 = vmatpush1.bf16.msra.mxu0 0
    %1309 = vmatprep.subr.bf16.mxu0 0
    %1310 = vmatpush1.bf16.msra.mxu0 0
    %1311 = vmatprep.subr.bf16.mxu0 0
    %1312 = vmatpush1.bf16.msra.mxu0 0
    %1313 = vmatprep.subr.bf16.mxu0 0
    %1314 = vmatpush1.bf16.msra.mxu0 0
    %1315 = vmatprep.subr.bf16.mxu0 0
    %1316 = vmatpush1.bf16.msra.mxu0 0
    %1317 = vmatprep.subr.bf16.mxu0 0
    %1318 = vmatpush1.bf16.msra.mxu0 0
    %1319 = vmatprep.subr.bf16.mxu0 0
    %1320 = vmatpush1.bf16.msra.mxu0 0
    %1321 = vmatprep.subr.bf16.mxu0 0
    %1322 = vmatpush1.bf16.msra.mxu0 0
    %1323 = vmatprep.subr.bf16.mxu0 0
    %1324 = vmatpush1.bf16.msra.mxu0 0
    %1325 = vmatprep.subr.bf16.mxu0 0
    %1326 = vmatpush1.bf16.msra.mxu0 0
    %1327 = vmatprep.subr.bf16.mxu0 0
    %1328 = vmatpush1.bf16.msra.mxu0 0
    %1329 = vmatprep.subr.bf16.mxu0 0
    %1330 = vmatpush1.bf16.msra.mxu0 0
    %1331 = vmatprep.mubr.bf16.mxu0 0
    %1332 = vmatmul.mubr.bf16.gmra.mrb[0].mxu0 %v1297
    %v1333 = vpop.f32.mrb[0].mxu0
    %v1334 = vadd.f32 %v1282, %v1333
    %v1335 = vpop.f32.mrb[0].mxu0
    %v1336 = vpop.f32.mrb[0].mxu0
    %v1337 = vadd.f32 %v1282, %v1336
    %v1338 = vpop.f32.mrb[0].mxu0
    %1339 = vdwg.mxu0
    %v1340 = vmul.f32 %v1334, 0.5
    %v1341 = vmul.f32 %v1337, 0.5
    %v1342 = vmul.f32 %v1334, 0.044715
    %v1343 = vmul.f32 %v1337, 0.044715
    %v1344 = vmul.f32 %v1342, %v1334
    %v1345 = vmul.f32 %v1343, %v1337
    %v1346 = vmul.f32 %v1344, %v1334
    %v1347 = vmul.f32 %v1345, %v1337
    %v1348 = vadd.f32 %v1334, %v1346
    %v1349 = vadd.f32 %v1337, %v1347
    %v1350 = vmul.f32 %v1348, 0.7978846
    %v1351 = vmul.f32 %v1349, 0.7978846
    %v1352 = vtanh.pop %v1350
    %v1353 = vtanh.pop %v1351
    %v1354 = vadd.f32 %v1352, 1.0
    %v1355 = vadd.f32 %v1353, 1.0
    %v1356 = vmul.f32 %v1340, %v1354
    %v1357 = vmul.f32 %v1341, %v1355
    %v1358 = vld [vmem:[%s14] sm:$0xf]
    %v1359 = vld [vmem:[%s14 + $0x4] sm:$0xf]
    %v1360 = vld [vmem:[%s14 + $0x8] sm:$0xf]
    %v1361 = vld [vmem:[%s14 + $0xc] sm:$0xf]
    %v1362 = vld [vmem:[%s14 + $0x10] sm:$0xf]
    %v1363 = vld [vmem:[%s14 + $0x14] sm:$0xf]
    %v1364 = vld [vmem:[%s14 + $0x18] sm:$0xf]
    %v1365 = vld [vmem:[%s14 + $0x1c] sm:$0xf]
    %v1366 = vpack.c.bf16 %v1357, %v1356
    %v1367 = vld [vmem:[%s15] sm:$0x1]
    %v1369 = vlaneseq
    %v1370 = vshrl.u32 %v1369, 7
    %v1371 = vsub.s32 0, %v1370
    %v1372 = vrot.slane %v1367, %v1371
    %v1382 = vunpack.c.l.b16 %v1358
    %v1383 = vunpack.c.l.b16 %v1359
    %v1384 = vunpack.c.l.b16 %v1360
    %v1385 = vunpack.c.l.b16 %v1361
    %v1386 = vunpack.c.l.b16 %v1362
    %v1387 = vunpack.c.l.b16 %v1363
    %v1388 = vunpack.c.l.b16 %v1364
    %v1389 = vunpack.c.l.b16 %v1365
    %v1390 = vpack.c.b16 %v1383, %v1382
    %v1391 = vpack.c.b16 %v1385, %v1384
    %v1392 = vpack.c.b16 %v1387, %v1386
    %v1393 = vpack.c.b16 %v1389, %v1388
    %vm1398 = vcmask 523264
    %v1400 = vsel %vm1398, %v1366, 0
    %1402 = vmatprep.subr.bf16.mxu0 0
    %1403 = vmatpush1.bf16.msra.mxu0 %v1390
    %1404 = vmatprep.subr.bf16.mxu0 0
    %1405 = vmatpush1.bf16.msra.mxu0 %v1391
    %1406 = vmatprep.subr.bf16.mxu0 0
    %1407 = vmatpush1.bf16.msra.mxu0 %v1392
    %1408 = vmatprep.subr.bf16.mxu0 0
    %1409 = vmatpush1.bf16.msra.mxu0 %v1393
    %1410 = vmatprep.subr.bf16.mxu0 0
    %1411 = vmatpush1.bf16.msra.mxu0 0
    %1412 = vmatprep.subr.bf16.mxu0 0
    %1413 = vmatpush1.bf16.msra.mxu0 0
    %1414 = vmatprep.subr.bf16.mxu0 0
    %1415 = vmatpush1.bf16.msra.mxu0 0
    %1416 = vmatprep.subr.bf16.mxu0 0
    %1417 = vmatpush1.bf16.msra.mxu0 0
    %1418 = vmatprep.subr.bf16.mxu0 0
    %1419 = vmatpush1.bf16.msra.mxu0 0
    %1420 = vmatprep.subr.bf16.mxu0 0
    %1421 = vmatpush1.bf16.msra.mxu0 0
    %1422 = vmatprep.subr.bf16.mxu0 0
    %1423 = vmatpush1.bf16.msra.mxu0 0
    %1424 = vmatprep.subr.bf16.mxu0 0
    %1425 = vmatpush1.bf16.msra.mxu0 0
    %1426 = vmatprep.subr.bf16.mxu0 0
    %1427 = vmatpush1.bf16.msra.mxu0 0
    %1428 = vmatprep.subr.bf16.mxu0 0
    %1429 = vmatpush1.bf16.msra.mxu0 0
    %1430 = vmatprep.subr.bf16.mxu0 0
    %1431 = vmatpush1.bf16.msra.mxu0 0
    %1432 = vmatprep.subr.bf16.mxu0 0
    %1433 = vmatpush1.bf16.msra.mxu0 0
    %1434 = vmatprep.mubr.bf16.mxu0 0
    %1435 = vmatmul.mubr.bf16.gmra.mrb[0].mxu0 %v1400
    %v1436 = vpop.f32.mrb[0].mxu0
    %v1437 = vadd.f32 %v1372, %v1436
    %v1438 = vpop.f32.mrb[0].mxu0
    %v1439 = vpop.f32.mrb[0].mxu0
    %v1440 = vadd.f32 %v1372, %v1439
    %v1441 = vpop.f32.mrb[0].mxu0
    %1442 = vdwg.mxu0
    %v1443 = vadd.f32 %v1437, %v1270
    %v1444 = vadd.f32 %v1440, %v1271
    %v1445 = vld [vmem:[%s16] sm:$0x1]
    %v1446 = vld [vmem:[%s17] sm:$0x1]
    %v1447 = vsel %vm193, %v1443, 0.0
    %1448 = vadd.xlane.f32.xlu0 %v1447
    %v1449 = vpop.xlane.xlu0 %1448
    %v1450 = vsel %vm193, %v1444, 0.0
    %1451 = vadd.xlane.f32.xlu0 %v1450
    %v1452 = vpop.xlane.xlu0 %1451
    %v1453 = vmul.f32 %v1449, %v200
    %v1454 = vmul.f32 %v1452, %v200
    %v1455 = vsub.f32 %v1443, %v1453
    %v1456 = vsub.f32 %v1444, %v1454
    %v1457 = vmul.f32 %v1455, %v1455
    %v1458 = vmul.f32 %v1456, %v1456
    %v1459 = vsel %vm193, %v1457, 0.0
    %1460 = vadd.xlane.f32.xlu0 %v1459
    %v1461 = vpop.xlane.xlu0 %1460
    %v1462 = vsel %vm193, %v1458, 0.0
    %1463 = vadd.xlane.f32.xlu0 %v1462
    %v1464 = vpop.xlane.xlu0 %1463
    %v1465 = vmul.f32 %v1461, %v200
    %v1466 = vmul.f32 %v1464, %v200
    %v1467 = vadd.f32 %v1465, 1e-12
    %v1468 = vadd.f32 %v1466, 1e-12
    %v1469 = vrsqrt.pop %v1467
    %v1470 = vrsqrt.pop %v1468
    %v1471 = vmul.f32 %v1455, %v1469
    %v1472 = vmul.f32 %v1456, %v1470
    %v1474 = vlaneseq
    %v1475 = vshrl.u32 %v1474, 7
    %v1476 = vsub.s32 0, %v1475
    %v1477 = vrot.slane %v1445, %v1476
    %v1479 = vmul.f32 %v1471, %v1477
    %v1480 = vmul.f32 %v1472, %v1477
    %v1482 = vlaneseq
    %v1483 = vshrl.u32 %v1482, 7
    %v1484 = vsub.s32 0, %v1483
    %v1485 = vrot.slane %v1446, %v1484
    %v1487 = vadd.f32 %v1479, %v1485
    %v1488 = vadd.f32 %v1480, %v1485
    %s1489 = scalar_lea.vmem %s6, 96
    %v1490 = vld [vmem:[%s1489] sm:$0xf]
    %v1491 = vld [vmem:[%s1489 + $0x4] sm:$0xf]
    %v1492 = vld [vmem:[%s1489 + $0x8] sm:$0xf]
    %v1493 = vld [vmem:[%s1489 + $0xc] sm:$0xf]
    %v1494 = vpack.c.bf16 %v1488, %v1487
    %s1495 = scalar_lea.vmem %s7, 6
    %v1496 = vld [vmem:[%s1495] sm:$0x1]
    %v1498 = vlaneseq
    %v1499 = vshrl.u32 %v1498, 7
    %v1500 = vsub.s32 0, %v1499
    %v1501 = vrot.slane %v1496, %v1500
    %v1507 = vunpack.c.l.b16 %v1490
    %v1508 = vunpack.c.l.b16 %v1491
    %v1509 = vunpack.c.l.b16 %v1492
    %v1510 = vunpack.c.l.b16 %v1493
    %v1511 = vpack.c.b16 %v1508, %v1507
    %v1512 = vpack.c.b16 %v1510, %v1509
    %v1516 = vsel %vm193, %v1494, 0
    %1518 = vmatprep.subr.bf16.mxu0 0
    %1519 = vmatpush1.bf16.msra.mxu0 %v1511
    %1520 = vmatprep.subr.bf16.mxu0 0
    %1521 = vmatpush1.bf16.msra.mxu0 %v1512
    %1522 = vmatprep.subr.bf16.mxu0 0
    %1523 = vmatpush1.bf16.msra.mxu0 0
    %1524 = vmatprep.subr.bf16.mxu0 0
    %1525 = vmatpush1.bf16.msra.mxu0 0
    %1526 = vmatprep.subr.bf16.mxu0 0
    %1527 = vmatpush1.bf16.msra.mxu0 0
    %1528 = vmatprep.subr.bf16.mxu0 0
    %1529 = vmatpush1.bf16.msra.mxu0 0
    %1530 = vmatprep.subr.bf16.mxu0 0
    %1531 = vmatpush1.bf16.msra.mxu0 0
    %1532 = vmatprep.subr.bf16.mxu0 0
    %1533 = vmatpush1.bf16.msra.mxu0 0
    %1534 = vmatprep.subr.bf16.mxu0 0
    %1535 = vmatpush1.bf16.msra.mxu0 0
    %1536 = vmatprep.subr.bf16.mxu0 0
    %1537 = vmatpush1.bf16.msra.mxu0 0
    %1538 = vmatprep.subr.bf16.mxu0 0
    %1539 = vmatpush1.bf16.msra.mxu0 0
    %1540 = vmatprep.subr.bf16.mxu0 0
    %1541 = vmatpush1.bf16.msra.mxu0 0
    %1542 = vmatprep.subr.bf16.mxu0 0
    %1543 = vmatpush1.bf16.msra.mxu0 0
    %1544 = vmatprep.subr.bf16.mxu0 0
    %1545 = vmatpush1.bf16.msra.mxu0 0
    %1546 = vmatprep.subr.bf16.mxu0 0
    %1547 = vmatpush1.bf16.msra.mxu0 0
    %1548 = vmatprep.subr.bf16.mxu0 0
    %1549 = vmatpush1.bf16.msra.mxu0 0
    %1550 = vmatprep.mubr.bf16.mxu0 0
    %1551 = vmatmul.mubr.bf16.gmra.mrb[0].mxu0 %v1516
    %v1552 = vpop.f32.mrb[0].mxu0
    %v1553 = vadd.f32 %v1501, %v1552
    %v1554 = vpop.f32.mrb[0].mxu0
    %v1555 = vpop.f32.mrb[0].mxu0
    %v1556 = vadd.f32 %v1501, %v1555
    %v1557 = vpop.f32.mrb[0].mxu0
    %1558 = vdwg.mxu0
    %s1559 = scalar_lea.vmem %s6, 112
    %v1560 = vld [vmem:[%s1559] sm:$0xf]
    %v1561 = vld [vmem:[%s1559 + $0x4] sm:$0xf]
    %v1562 = vld [vmem:[%s1559 + $0x8] sm:$0xf]
    %v1563 = vld [vmem:[%s1559 + $0xc] sm:$0xf]
    %s1564 = scalar_lea.vmem %s7, 7
    %v1565 = vld [vmem:[%s1564] sm:$0x1]
    %v1567 = vlaneseq
    %v1568 = vshrl.u32 %v1567, 7
    %v1569 = vsub.s32 0, %v1568
    %v1570 = vrot.slane %v1565, %v1569
    %v1576 = vunpack.c.l.b16 %v1560
    %v1577 = vunpack.c.l.b16 %v1561
    %v1578 = vunpack.c.l.b16 %v1562
    %v1579 = vunpack.c.l.b16 %v1563
    %v1580 = vpack.c.b16 %v1577, %v1576
    %v1581 = vpack.c.b16 %v1579, %v1578
    %1584 = vmatprep.subr.bf16.mxu0 0
    %1585 = vmatpush1.bf16.msra.mxu0 %v1580
    %1586 = vmatprep.subr.bf16.mxu0 0
    %1587 = vmatpush1.bf16.msra.mxu0 %v1581
    %1588 = vmatprep.subr.bf16.mxu0 0
    %1589 = vmatpush1.bf16.msra.mxu0 0
    %1590 = vmatprep.subr.bf16.mxu0 0
    %1591 = vmatpush1.bf16.msra.mxu0 0
    %1592 = vmatprep.subr.bf16.mxu0 0
    %1593 = vmatpush1.bf16.msra.mxu0 0
    %1594 = vmatprep.subr.bf16.mxu0 0
    %1595 = vmatpush1.bf16.msra.mxu0 0
    %1596 = vmatprep.subr.bf16.mxu0 0
    %1597 = vmatpush1.bf16.msra.mxu0 0
    %1598 = vmatprep.subr.bf16.mxu0 0
    %1599 = vmatpush1.bf16.msra.mxu0 0
    %1600 = vmatprep.subr.bf16.mxu0 0
    %1601 = vmatpush1.bf16.msra.mxu0 0
    %1602 = vmatprep.subr.bf16.mxu0 0
    %1603 = vmatpush1.bf16.msra.mxu0 0
    %1604 = vmatprep.subr.bf16.mxu0 0
    %1605 = vmatpush1.bf16.msra.mxu0 0
    %1606 = vmatprep.subr.bf16.mxu0 0
    %1607 = vmatpush1.bf16.msra.mxu0 0
    %1608 = vmatprep.subr.bf16.mxu0 0
    %1609 = vmatpush1.bf16.msra.mxu0 0
    %1610 = vmatprep.subr.bf16.mxu0 0
    %1611 = vmatpush1.bf16.msra.mxu0 0
    %1612 = vmatprep.subr.bf16.mxu0 0
    %1613 = vmatpush1.bf16.msra.mxu0 0
    %1614 = vmatprep.subr.bf16.mxu0 0
    %1615 = vmatpush1.bf16.msra.mxu0 0
    %1616 = vmatprep.mubr.bf16.mxu0 0
    %1617 = vmatmul.mubr.bf16.gmra.mrb[0].mxu0 %v1516
    %v1618 = vpop.f32.mrb[0].mxu0
    %v1619 = vadd.f32 %v1570, %v1618
    %v1620 = vpop.f32.mrb[0].mxu0
    %v1621 = vpop.f32.mrb[0].mxu0
    %v1622 = vadd.f32 %v1570, %v1621
    %v1623 = vpop.f32.mrb[0].mxu0
    %1624 = vdwg.mxu0
    %s1625 = scalar_lea.vmem %s6, 128
    %v1626 = vld [vmem:[%s1625] sm:$0xf]
    %v1627 = vld [vmem:[%s1625 + $0x4] sm:$0xf]
    %v1628 = vld [vmem:[%s1625 + $0x8] sm:$0xf]
    %v1629 = vld [vmem:[%s1625 + $0xc] sm:$0xf]
    %s1630 = scalar_lea.vmem %s7, 8
    %v1631 = vld [vmem:[%s1630] sm:$0x1]
    %v1633 = vlaneseq
    %v1634 = vshrl.u32 %v1633, 7
    %v1635 = vsub.s32 0, %v1634
    %v1636 = vrot.slane %v1631, %v1635
    %v1642 = vunpack.c.l.b16 %v1626
    %v1643 = vunpack.c.l.b16 %v1627
    %v1644 = vunpack.c.l.b16 %v1628
    %v1645 = vunpack.c.l.b16 %v1629
    %v1646 = vpack.c.b16 %v1643, %v1642
    %v1647 = vpack.c.b16 %v1645, %v1644
    %1650 = vmatprep.subr.bf16.mxu0 0
    %1651 = vmatpush1.bf16.msra.mxu0 %v1646
    %1652 = vmatprep.subr.bf16.mxu0 0
    %1653 = vmatpush1.bf16.msra.mxu0 %v1647
    %1654 = vmatprep.subr.bf16.mxu0 0
    %1655 = vmatpush1.bf16.msra.mxu0 0
    %1656 = vmatprep.subr.bf16.mxu0 0
    %1657 = vmatpush1.bf16.msra.mxu0 0
    %1658 = vmatprep.subr.bf16.mxu0 0
    %1659 = vmatpush1.bf16.msra.mxu0 0
    %1660 = vmatprep.subr.bf16.mxu0 0
    %1661 = vmatpush1.bf16.msra.mxu0 0
    %1662 = vmatprep.subr.bf16.mxu0 0
    %1663 = vmatpush1.bf16.msra.mxu0 0
    %1664 = vmatprep.subr.bf16.mxu0 0
    %1665 = vmatpush1.bf16.msra.mxu0 0
    %1666 = vmatprep.subr.bf16.mxu0 0
    %1667 = vmatpush1.bf16.msra.mxu0 0
    %1668 = vmatprep.subr.bf16.mxu0 0
    %1669 = vmatpush1.bf16.msra.mxu0 0
    %1670 = vmatprep.subr.bf16.mxu0 0
    %1671 = vmatpush1.bf16.msra.mxu0 0
    %1672 = vmatprep.subr.bf16.mxu0 0
    %1673 = vmatpush1.bf16.msra.mxu0 0
    %1674 = vmatprep.subr.bf16.mxu0 0
    %1675 = vmatpush1.bf16.msra.mxu0 0
    %1676 = vmatprep.subr.bf16.mxu0 0
    %1677 = vmatpush1.bf16.msra.mxu0 0
    %1678 = vmatprep.subr.bf16.mxu0 0
    %1679 = vmatpush1.bf16.msra.mxu0 0
    %1680 = vmatprep.subr.bf16.mxu0 0
    %1681 = vmatpush1.bf16.msra.mxu0 0
    %1682 = vmatprep.mubr.bf16.mxu0 0
    %1683 = vmatmul.mubr.bf16.gmra.mrb[0].mxu0 %v1516
    %v1684 = vpop.f32.mrb[0].mxu0
    %v1685 = vadd.f32 %v1636, %v1684
    %v1686 = vpop.f32.mrb[0].mxu0
    %v1687 = vpop.f32.mrb[0].mxu0
    %v1688 = vadd.f32 %v1636, %v1687
    %v1689 = vpop.f32.mrb[0].mxu0
    %1690 = vdwg.mxu0
    %v1691 = vpack.c.bf16 %v1553, %v1553
    %v1692 = vpack.c.bf16 %v1556, %v1556
    %v1693 = vpack.c.bf16 %v1619, %v1619
    %v1694 = vpack.c.bf16 %v1622, %v1622
    %v1696 = vsel %vm477, %v1691, 0
    %v1699 = vsel %vm477, %v1693, 0
    %1701 = vmatprep.subr.bf16.mxu0 0
    %1702 = vmatpush1.bf16.xpose.msra.mxu0 %v1699
    %1703 = vmatprep.subr.bf16.mxu0 0
    %1704 = vmatpush1.bf16.xpose.msra.mxu0 0
    %1705 = vmatprep.subr.bf16.mxu0 0
    %1706 = vmatpush1.bf16.xpose.msra.mxu0 0
    %1707 = vmatprep.subr.bf16.mxu0 0
    %1708 = vmatpush1.bf16.xpose.msra.mxu0 0
    %1709 = vmatprep.subr.bf16.mxu0 0
    %1710 = vmatpush1.bf16.xpose.msra.mxu0 0
    %1711 = vmatprep.subr.bf16.mxu0 0
    %1712 = vmatpush1.bf16.xpose.msra.mxu0 0
    %1713 = vmatprep.subr.bf16.mxu0 0
    %1714 = vmatpush1.bf16.xpose.msra.mxu0 0
    %1715 = vmatprep.subr.bf16.mxu0 0
    %1716 = vmatpush1.bf16.xpose.msra.mxu0 0
    %1717 = vmatprep.subr.bf16.mxu0 0
    %1718 = vmatpush1.bf16.xpose.msra.mxu0 0
    %1719 = vmatprep.subr.bf16.mxu0 0
    %1720 = vmatpush1.bf16.xpose.msra.mxu0 0
    %1721 = vmatprep.subr.bf16.mxu0 0
    %1722 = vmatpush1.bf16.xpose.msra.mxu0 0
    %1723 = vmatprep.subr.bf16.mxu0 0
    %1724 = vmatpush1.bf16.xpose.msra.mxu0 0
    %1725 = vmatprep.subr.bf16.mxu0 0
    %1726 = vmatpush1.bf16.xpose.msra.mxu0 0
    %1727 = vmatprep.subr.bf16.mxu0 0
    %1728 = vmatpush1.bf16.xpose.msra.mxu0 0
    %1729 = vmatprep.subr.bf16.mxu0 0
    %1730 = vmatpush1.bf16.xpose.msra.mxu0 0
    %1731 = vmatprep.subr.bf16.mxu0 0
    %1732 = vmatpush1.bf16.xpose.msra.mxu0 0
    %1733 = vmatprep.mubr.bf16.mxu0 0
    %1734 = vmatmul.mubr.bf16.gmra.mrb[0].mxu0 %v1696
    %v1735 = vpop.f32.mrb[0].mxu0
    %v1736 = vadd.f32 0.0, %v1735
    %v1737 = vpop.f32.mrb[0].mxu0
    %v1738 = vpop.f32.mrb[0].mxu0
    %v1739 = vpop.f32.mrb[0].mxu0
    %1740 = vdwg.mxu0
    %v1742 = vsel %vm477, %v1692, 0
    %v1745 = vsel %vm477, %v1694, 0
    %1747 = vmatprep.subr.bf16.mxu0 0
    %1748 = vmatpush1.bf16.xpose.msra.mxu0 %v1745
    %1749 = vmatprep.subr.bf16.mxu0 0
    %1750 = vmatpush1.bf16.xpose.msra.mxu0 0
    %1751 = vmatprep.subr.bf16.mxu0 0
    %1752 = vmatpush1.bf16.xpose.msra.mxu0 0
    %1753 = vmatprep.subr.bf16.mxu0 0
    %1754 = vmatpush1.bf16.xpose.msra.mxu0 0
    %1755 = vmatprep.subr.bf16.mxu0 0
    %1756 = vmatpush1.bf16.xpose.msra.mxu0 0
    %1757 = vmatprep.subr.bf16.mxu0 0
    %1758 = vmatpush1.bf16.xpose.msra.mxu0 0
    %1759 = vmatprep.subr.bf16.mxu0 0
    %1760 = vmatpush1.bf16.xpose.msra.mxu0 0
    %1761 = vmatprep.subr.bf16.mxu0 0
    %1762 = vmatpush1.bf16.xpose.msra.mxu0 0
    %1763 = vmatprep.subr.bf16.mxu0 0
    %1764 = vmatpush1.bf16.xpose.msra.mxu0 0
    %1765 = vmatprep.subr.bf16.mxu0 0
    %1766 = vmatpush1.bf16.xpose.msra.mxu0 0
    %1767 = vmatprep.subr.bf16.mxu0 0
    %1768 = vmatpush1.bf16.xpose.msra.mxu0 0
    %1769 = vmatprep.subr.bf16.mxu0 0
    %1770 = vmatpush1.bf16.xpose.msra.mxu0 0
    %1771 = vmatprep.subr.bf16.mxu0 0
    %1772 = vmatpush1.bf16.xpose.msra.mxu0 0
    %1773 = vmatprep.subr.bf16.mxu0 0
    %1774 = vmatpush1.bf16.xpose.msra.mxu0 0
    %1775 = vmatprep.subr.bf16.mxu0 0
    %1776 = vmatpush1.bf16.xpose.msra.mxu0 0
    %1777 = vmatprep.subr.bf16.mxu0 0
    %1778 = vmatpush1.bf16.xpose.msra.mxu0 0
    %1779 = vmatprep.mubr.bf16.mxu0 0
    %1780 = vmatmul.mubr.bf16.gmra.mrb[0].mxu0 %v1742
    %v1781 = vpop.f32.mrb[0].mxu0
    %v1782 = vadd.f32 0.0, %v1781
    %v1783 = vpop.f32.mrb[0].mxu0
    %v1784 = vpop.f32.mrb[0].mxu0
    %v1785 = vpop.f32.mrb[0].mxu0
    %1786 = vdwg.mxu0
    %v1787 = vmul.f32 %v1736, 0.25
    %v1788 = vmul.f32 %v1782, 0.25
    %v1789 = vadd.f32 %v1787, %v266
    %v1790 = vadd.f32 %v1788, %v270
    %v1791 = vsel %vm574, %v1789, -inf
    %1792 = vmax.xlane.f32.xlu0 %v1791
    %v1793 = vpop.xlane.xlu0 %1792
    %v1794 = vsel %vm574, %v1790, -inf
    %1795 = vmax.xlane.f32.xlu0 %v1794
    %v1796 = vpop.xlane.xlu0 %1795
    %v1797 = vsub.f32 %v1789, %v1793
    %v1798 = vsub.f32 %v1790, %v1796
    %v1799 = vmul.f32 %v1797, 1.442695
    %v1800 = vpow.pop %v1799
    %v1801 = vmul.f32 %v1798, 1.442695
    %v1802 = vpow.pop %v1801
    %v1803 = vsel %vm574, %v1800, 0.0
    %1804 = vadd.xlane.f32.xlu0 %v1803
    %v1805 = vpop.xlane.xlu0 %1804
    %v1806 = vsel %vm574, %v1802, 0.0
    %1807 = vadd.xlane.f32.xlu0 %v1806
    %v1808 = vpop.xlane.xlu0 %1807
    %v1809 = vrcp.pop %v1805
    %v1810 = vrcp.pop %v1808
    %v1811 = vmul.f32 %v1800, %v1809
    %v1812 = vmul.f32 %v1802, %v1810
    %v1813 = vpack.c.bf16 %v1811, %v1811
    %v1814 = vpack.c.bf16 %v1812, %v1812
    %v1815 = vpack.c.bf16 %v1685, %v1685
    %v1816 = vpack.c.bf16 %v1688, %v1688
    %v1818 = vsel %vm574, %v1813, 0
    %v1821 = vsel %vm604, %v1815, 0
    %1823 = vmatprep.subr.bf16.mxu0 0
    %1824 = vmatpush1.bf16.msra.mxu0 %v1821
    %1825 = vmatprep.subr.bf16.mxu0 0
    %1826 = vmatpush1.bf16.msra.mxu0 0
    %1827 = vmatprep.subr.bf16.mxu0 0
    %1828 = vmatpush1.bf16.msra.mxu0 0
    %1829 = vmatprep.subr.bf16.mxu0 0
    %1830 = vmatpush1.bf16.msra.mxu0 0
    %1831 = vmatprep.subr.bf16.mxu0 0
    %1832 = vmatpush1.bf16.msra.mxu0 0
    %1833 = vmatprep.subr.bf16.mxu0 0
    %1834 = vmatpush1.bf16.msra.mxu0 0
    %1835 = vmatprep.subr.bf16.mxu0 0
    %1836 = vmatpush1.bf16.msra.mxu0 0
    %1837 = vmatprep.subr.bf16.mxu0 0
    %1838 = vmatpush1.bf16.msra.mxu0 0
    %1839 = vmatprep.subr.bf16.mxu0 0
    %1840 = vmatpush1.bf16.msra.mxu0 0
    %1841 = vmatprep.subr.bf16.mxu0 0
    %1842 = vmatpush1.bf16.msra.mxu0 0
    %1843 = vmatprep.subr.bf16.mxu0 0
    %1844 = vmatpush1.bf16.msra.mxu0 0
    %1845 = vmatprep.subr.bf16.mxu0 0
    %1846 = vmatpush1.bf16.msra.mxu0 0
    %1847 = vmatprep.subr.bf16.mxu0 0
    %1848 = vmatpush1.bf16.msra.mxu0 0
    %1849 = vmatprep.subr.bf16.mxu0 0
    %1850 = vmatpush1.bf16.msra.mxu0 0
    %1851 = vmatprep.subr.bf16.mxu0 0
    %1852 = vmatpush1.bf16.msra.mxu0 0
    %1853 = vmatprep.subr.bf16.mxu0 0
    %1854 = vmatpush1.bf16.msra.mxu0 0
    %1855 = vmatprep.mubr.bf16.mxu0 0
    %1856 = vmatmul.mubr.bf16.gmra.mrb[0].mxu0 %v1818
    %v1857 = vpop.f32.mrb[0].mxu0
    %v1858 = vadd.f32 0.0, %v1857
    %v1859 = vpop.f32.mrb[0].mxu0
    %v1860 = vpop.f32.mrb[0].mxu0
    %v1861 = vpop.f32.mrb[0].mxu0
    %1862 = vdwg.mxu0
    %v1864 = vsel %vm574, %v1814, 0
    %v1867 = vsel %vm604, %v1816, 0
    %1869 = vmatprep.subr.bf16.mxu0 0
    %1870 = vmatpush1.bf16.msra.mxu0 %v1867
    %1871 = vmatprep.subr.bf16.mxu0 0
    %1872 = vmatpush1.bf16.msra.mxu0 0
    %1873 = vmatprep.subr.bf16.mxu0 0
    %1874 = vmatpush1.bf16.msra.mxu0 0
    %1875 = vmatprep.subr.bf16.mxu0 0
    %1876 = vmatpush1.bf16.msra.mxu0 0
    %1877 = vmatprep.subr.bf16.mxu0 0
    %1878 = vmatpush1.bf16.msra.mxu0 0
    %1879 = vmatprep.subr.bf16.mxu0 0
    %1880 = vmatpush1.bf16.msra.mxu0 0
    %1881 = vmatprep.subr.bf16.mxu0 0
    %1882 = vmatpush1.bf16.msra.mxu0 0
    %1883 = vmatprep.subr.bf16.mxu0 0
    %1884 = vmatpush1.bf16.msra.mxu0 0
    %1885 = vmatprep.subr.bf16.mxu0 0
    %1886 = vmatpush1.bf16.msra.mxu0 0
    %1887 = vmatprep.subr.bf16.mxu0 0
    %1888 = vmatpush1.bf16.msra.mxu0 0
    %1889 = vmatprep.subr.bf16.mxu0 0
    %1890 = vmatpush1.bf16.msra.mxu0 0
    %1891 = vmatprep.subr.bf16.mxu0 0
    %1892 = vmatpush1.bf16.msra.mxu0 0
    %1893 = vmatprep.subr.bf16.mxu0 0
    %1894 = vmatpush1.bf16.msra.mxu0 0
    %1895 = vmatprep.subr.bf16.mxu0 0
    %1896 = vmatpush1.bf16.msra.mxu0 0
    %1897 = vmatprep.subr.bf16.mxu0 0
    %1898 = vmatpush1.bf16.msra.mxu0 0
    %1899 = vmatprep.subr.bf16.mxu0 0
    %1900 = vmatpush1.bf16.msra.mxu0 0
    %1901 = vmatprep.mubr.bf16.mxu0 0
    %1902 = vmatmul.mubr.bf16.gmra.mrb[0].mxu0 %v1864
    %v1903 = vpop.f32.mrb[0].mxu0
    %v1904 = vadd.f32 0.0, %v1903
    %v1905 = vpop.f32.mrb[0].mxu0
    %v1906 = vpop.f32.mrb[0].mxu0
    %v1907 = vpop.f32.mrb[0].mxu0
    %1908 = vdwg.mxu0
    %s1909 = scalar_lea.vmem %s8, 16
    %v1910 = vld [vmem:[%s1909] sm:$0xf]
    %v1911 = vld [vmem:[%s1909 + $0x4] sm:$0xf]
    %v1912 = vpack.c.bf16 %v1904, %v1858
    %s1913 = scalar_lea.vmem %s6, 144
    %v1914 = vld [vmem:[%s1913] sm:$0xf]
    %v1915 = vld [vmem:[%s1913 + $0x4] sm:$0xf]
    %v1916 = vld [vmem:[%s1913 + $0x8] sm:$0xf]
    %v1917 = vld [vmem:[%s1913 + $0xc] sm:$0xf]
    %s1918 = scalar_lea.vmem %s7, 9
    %v1919 = vld [vmem:[%s1918] sm:$0x1]
    %v1921 = vlaneseq
    %v1922 = vshrl.u32 %v1921, 7
    %v1923 = vsub.s32 0, %v1922
    %v1924 = vrot.slane %v1919, %v1923
    %v1930 = vunpack.c.l.b16 %v1914
    %v1931 = vunpack.c.l.b16 %v1915
    %v1932 = vunpack.c.l.b16 %v1916
    %v1933 = vunpack.c.l.b16 %v1917
    %v1934 = vpack.c.b16 %v1931, %v1930
    %v1935 = vpack.c.b16 %v1933, %v1932
    %1938 = vmatprep.subr.bf16.mxu0 0
    %1939 = vmatpush1.bf16.msra.mxu0 %v1934
    %1940 = vmatprep.subr.bf16.mxu0 0
    %1941 = vmatpush1.bf16.msra.mxu0 %v1935
    %1942 = vmatprep.subr.bf16.mxu0 0
    %1943 = vmatpush1.bf16.msra.mxu0 0
    %1944 = vmatprep.subr.bf16.mxu0 0
    %1945 = vmatpush1.bf16.msra.mxu0 0
    %1946 = vmatprep.subr.bf16.mxu0 0
    %1947 = vmatpush1.bf16.msra.mxu0 0
    %1948 = vmatprep.subr.bf16.mxu0 0
    %1949 = vmatpush1.bf16.msra.mxu0 0
    %1950 = vmatprep.subr.bf16.mxu0 0
    %1951 = vmatpush1.bf16.msra.mxu0 0
    %1952 = vmatprep.subr.bf16.mxu0 0
    %1953 = vmatpush1.bf16.msra.mxu0 0
    %1954 = vmatprep.subr.bf16.mxu0 0
    %1955 = vmatpush1.bf16.msra.mxu0 0
    %1956 = vmatprep.subr.bf16.mxu0 0
    %1957 = vmatpush1.bf16.msra.mxu0 0
    %1958 = vmatprep.subr.bf16.mxu0 0
    %1959 = vmatpush1.bf16.msra.mxu0 0
    %1960 = vmatprep.subr.bf16.mxu0 0
    %1961 = vmatpush1.bf16.msra.mxu0 0
    %1962 = vmatprep.subr.bf16.mxu0 0
    %1963 = vmatpush1.bf16.msra.mxu0 0
    %1964 = vmatprep.subr.bf16.mxu0 0
    %1965 = vmatpush1.bf16.msra.mxu0 0
    %1966 = vmatprep.subr.bf16.mxu0 0
    %1967 = vmatpush1.bf16.msra.mxu0 0
    %1968 = vmatprep.subr.bf16.mxu0 0
    %1969 = vmatpush1.bf16.msra.mxu0 0
    %1970 = vmatprep.mubr.bf16.mxu0 0
    %1971 = vmatmul.mubr.bf16.gmra.mrb[0].mxu0 %v1516
    %v1972 = vpop.f32.mrb[0].mxu0
    %v1973 = vadd.f32 %v1924, %v1972
    %v1974 = vpop.f32.mrb[0].mxu0
    %v1975 = vpop.f32.mrb[0].mxu0
    %v1976 = vadd.f32 %v1924, %v1975
    %v1977 = vpop.f32.mrb[0].mxu0
    %1978 = vdwg.mxu0
    %s1979 = scalar_lea.vmem %s6, 160
    %v1980 = vld [vmem:[%s1979] sm:$0xf]
    %v1981 = vld [vmem:[%s1979 + $0x4] sm:$0xf]
    %v1982 = vld [vmem:[%s1979 + $0x8] sm:$0xf]
    %v1983 = vld [vmem:[%s1979 + $0xc] sm:$0xf]
    %s1984 = scalar_lea.vmem %s7, 10
    %v1985 = vld [vmem:[%s1984] sm:$0x1]
    %v1987 = vlaneseq
    %v1988 = vshrl.u32 %v1987, 7
    %v1989 = vsub.s32 0, %v1988
    %v1990 = vrot.slane %v1985, %v1989
    %v1996 = vunpack.c.l.b16 %v1980
    %v1997 = vunpack.c.l.b16 %v1981
    %v1998 = vunpack.c.l.b16 %v1982
    %v1999 = vunpack.c.l.b16 %v1983
    %v2000 = vpack.c.b16 %v1997, %v1996
    %v2001 = vpack.c.b16 %v1999, %v1998
    %2004 = vmatprep.subr.bf16.mxu0 0
    %2005 = vmatpush1.bf16.msra.mxu0 %v2000
    %2006 = vmatprep.subr.bf16.mxu0 0
    %2007 = vmatpush1.bf16.msra.mxu0 %v2001
    %2008 = vmatprep.subr.bf16.mxu0 0
    %2009 = vmatpush1.bf16.msra.mxu0 0
    %2010 = vmatprep.subr.bf16.mxu0 0
    %2011 = vmatpush1.bf16.msra.mxu0 0
    %2012 = vmatprep.subr.bf16.mxu0 0
    %2013 = vmatpush1.bf16.msra.mxu0 0
    %2014 = vmatprep.subr.bf16.mxu0 0
    %2015 = vmatpush1.bf16.msra.mxu0 0
    %2016 = vmatprep.subr.bf16.mxu0 0
    %2017 = vmatpush1.bf16.msra.mxu0 0
    %2018 = vmatprep.subr.bf16.mxu0 0
    %2019 = vmatpush1.bf16.msra.mxu0 0
    %2020 = vmatprep.subr.bf16.mxu0 0
    %2021 = vmatpush1.bf16.msra.mxu0 0
    %2022 = vmatprep.subr.bf16.mxu0 0
    %2023 = vmatpush1.bf16.msra.mxu0 0
    %2024 = vmatprep.subr.bf16.mxu0 0
    %2025 = vmatpush1.bf16.msra.mxu0 0
    %2026 = vmatprep.subr.bf16.mxu0 0
    %2027 = vmatpush1.bf16.msra.mxu0 0
    %2028 = vmatprep.subr.bf16.mxu0 0
    %2029 = vmatpush1.bf16.msra.mxu0 0
    %2030 = vmatprep.subr.bf16.mxu0 0
    %2031 = vmatpush1.bf16.msra.mxu0 0
    %2032 = vmatprep.subr.bf16.mxu0 0
    %2033 = vmatpush1.bf16.msra.mxu0 0
    %2034 = vmatprep.subr.bf16.mxu0 0
    %2035 = vmatpush1.bf16.msra.mxu0 0
    %2036 = vmatprep.mubr.bf16.mxu0 0
    %2037 = vmatmul.mubr.bf16.gmra.mrb[0].mxu0 %v1516
    %v2038 = vpop.f32.mrb[0].mxu0
    %v2039 = vadd.f32 %v1990, %v2038
    %v2040 = vpop.f32.mrb[0].mxu0
    %v2041 = vpop.f32.mrb[0].mxu0
    %v2042 = vadd.f32 %v1990, %v2041
    %v2043 = vpop.f32.mrb[0].mxu0
    %2044 = vdwg.mxu0
    %s2045 = scalar_lea.vmem %s6, 176
    %v2046 = vld [vmem:[%s2045] sm:$0xf]
    %v2047 = vld [vmem:[%s2045 + $0x4] sm:$0xf]
    %v2048 = vld [vmem:[%s2045 + $0x8] sm:$0xf]
    %v2049 = vld [vmem:[%s2045 + $0xc] sm:$0xf]
    %s2050 = scalar_lea.vmem %s7, 11
    %v2051 = vld [vmem:[%s2050] sm:$0x1]
    %v2053 = vlaneseq
    %v2054 = vshrl.u32 %v2053, 7
    %v2055 = vsub.s32 0, %v2054
    %v2056 = vrot.slane %v2051, %v2055
    %v2062 = vunpack.c.l.b16 %v2046
    %v2063 = vunpack.c.l.b16 %v2047
    %v2064 = vunpack.c.l.b16 %v2048
    %v2065 = vunpack.c.l.b16 %v2049
    %v2066 = vpack.c.b16 %v2063, %v2062
    %v2067 = vpack.c.b16 %v2065, %v2064
    %2070 = vmatprep.subr.bf16.mxu0 0
    %2071 = vmatpush1.bf16.msra.mxu0 %v2066
    %2072 = vmatprep.subr.bf16.mxu0 0
    %2073 = vmatpush1.bf16.msra.mxu0 %v2067
    %2074 = vmatprep.subr.bf16.mxu0 0
    %2075 = vmatpush1.bf16.msra.mxu0 0
    %2076 = vmatprep.subr.bf16.mxu0 0
    %2077 = vmatpush1.bf16.msra.mxu0 0
    %2078 = vmatprep.subr.bf16.mxu0 0
    %2079 = vmatpush1.bf16.msra.mxu0 0
    %2080 = vmatprep.subr.bf16.mxu0 0
    %2081 = vmatpush1.bf16.msra.mxu0 0
    %2082 = vmatprep.subr.bf16.mxu0 0
    %2083 = vmatpush1.bf16.msra.mxu0 0
    %2084 = vmatprep.subr.bf16.mxu0 0
    %2085 = vmatpush1.bf16.msra.mxu0 0
    %2086 = vmatprep.subr.bf16.mxu0 0
    %2087 = vmatpush1.bf16.msra.mxu0 0
    %2088 = vmatprep.subr.bf16.mxu0 0
    %2089 = vmatpush1.bf16.msra.mxu0 0
    %2090 = vmatprep.subr.bf16.mxu0 0
    %2091 = vmatpush1.bf16.msra.mxu0 0
    %2092 = vmatprep.subr.bf16.mxu0 0
    %2093 = vmatpush1.bf16.msra.mxu0 0
    %2094 = vmatprep.subr.bf16.mxu0 0
    %2095 = vmatpush1.bf16.msra.mxu0 0
    %2096 = vmatprep.subr.bf16.mxu0 0
    %2097 = vmatpush1.bf16.msra.mxu0 0
    %2098 = vmatprep.subr.bf16.mxu0 0
    %2099 = vmatpush1.bf16.msra.mxu0 0
    %2100 = vmatprep.subr.bf16.mxu0 0
    %2101 = vmatpush1.bf16.msra.mxu0 0
    %2102 = vmatprep.mubr.bf16.mxu0 0
    %2103 = vmatmul.mubr.bf16.gmra.mrb[0].mxu0 %v1516
    %v2104 = vpop.f32.mrb[0].mxu0
    %v2105 = vadd.f32 %v2056, %v2104
    %v2106 = vpop.f32.mrb[0].mxu0
    %v2107 = vpop.f32.mrb[0].mxu0
    %v2108 = vadd.f32 %v2056, %v2107
    %v2109 = vpop.f32.mrb[0].mxu0
    %2110 = vdwg.mxu0
    %v2111 = vpack.c.bf16 %v1973, %v1973
    %v2112 = vpack.c.bf16 %v1976, %v1976
    %v2113 = vpack.c.bf16 %v2039, %v2039
    %v2114 = vpack.c.bf16 %v2042, %v2042
    %v2116 = vsel %vm477, %v2111, 0
    %v2119 = vsel %vm477, %v2113, 0
    %2121 = vmatprep.subr.bf16.mxu0 0
    %2122 = vmatpush1.bf16.xpose.msra.mxu0 %v2119
    %2123 = vmatprep.subr.bf16.mxu0 0
    %2124 = vmatpush1.bf16.xpose.msra.mxu0 0
    %2125 = vmatprep.subr.bf16.mxu0 0
    %2126 = vmatpush1.bf16.xpose.msra.mxu0 0
    %2127 = vmatprep.subr.bf16.mxu0 0
    %2128 = vmatpush1.bf16.xpose.msra.mxu0 0
    %2129 = vmatprep.subr.bf16.mxu0 0
    %2130 = vmatpush1.bf16.xpose.msra.mxu0 0
    %2131 = vmatprep.subr.bf16.mxu0 0
    %2132 = vmatpush1.bf16.xpose.msra.mxu0 0
    %2133 = vmatprep.subr.bf16.mxu0 0
    %2134 = vmatpush1.bf16.xpose.msra.mxu0 0
    %2135 = vmatprep.subr.bf16.mxu0 0
    %2136 = vmatpush1.bf16.xpose.msra.mxu0 0
    %2137 = vmatprep.subr.bf16.mxu0 0
    %2138 = vmatpush1.bf16.xpose.msra.mxu0 0
    %2139 = vmatprep.subr.bf16.mxu0 0
    %2140 = vmatpush1.bf16.xpose.msra.mxu0 0
    %2141 = vmatprep.subr.bf16.mxu0 0
    %2142 = vmatpush1.bf16.xpose.msra.mxu0 0
    %2143 = vmatprep.subr.bf16.mxu0 0
    %2144 = vmatpush1.bf16.xpose.msra.mxu0 0
    %2145 = vmatprep.subr.bf16.mxu0 0
    %2146 = vmatpush1.bf16.xpose.msra.mxu0 0
    %2147 = vmatprep.subr.bf16.mxu0 0
    %2148 = vmatpush1.bf16.xpose.msra.mxu0 0
    %2149 = vmatprep.subr.bf16.mxu0 0
    %2150 = vmatpush1.bf16.xpose.msra.mxu0 0
    %2151 = vmatprep.subr.bf16.mxu0 0
    %2152 = vmatpush1.bf16.xpose.msra.mxu0 0
    %2153 = vmatprep.mubr.bf16.mxu0 0
    %2154 = vmatmul.mubr.bf16.gmra.mrb[0].mxu0 %v2116
    %v2155 = vpop.f32.mrb[0].mxu0
    %v2156 = vadd.f32 0.0, %v2155
    %v2157 = vpop.f32.mrb[0].mxu0
    %v2158 = vpop.f32.mrb[0].mxu0
    %v2159 = vpop.f32.mrb[0].mxu0
    %2160 = vdwg.mxu0
    %v2162 = vsel %vm477, %v2112, 0
    %v2165 = vsel %vm477, %v2114, 0
    %2167 = vmatprep.subr.bf16.mxu0 0
    %2168 = vmatpush1.bf16.xpose.msra.mxu0 %v2165
    %2169 = vmatprep.subr.bf16.mxu0 0
    %2170 = vmatpush1.bf16.xpose.msra.mxu0 0
    %2171 = vmatprep.subr.bf16.mxu0 0
    %2172 = vmatpush1.bf16.xpose.msra.mxu0 0
    %2173 = vmatprep.subr.bf16.mxu0 0
    %2174 = vmatpush1.bf16.xpose.msra.mxu0 0
    %2175 = vmatprep.subr.bf16.mxu0 0
    %2176 = vmatpush1.bf16.xpose.msra.mxu0 0
    %2177 = vmatprep.subr.bf16.mxu0 0
    %2178 = vmatpush1.bf16.xpose.msra.mxu0 0
    %2179 = vmatprep.subr.bf16.mxu0 0
    %2180 = vmatpush1.bf16.xpose.msra.mxu0 0
    %2181 = vmatprep.subr.bf16.mxu0 0
    %2182 = vmatpush1.bf16.xpose.msra.mxu0 0
    %2183 = vmatprep.subr.bf16.mxu0 0
    %2184 = vmatpush1.bf16.xpose.msra.mxu0 0
    %2185 = vmatprep.subr.bf16.mxu0 0
    %2186 = vmatpush1.bf16.xpose.msra.mxu0 0
    %2187 = vmatprep.subr.bf16.mxu0 0
    %2188 = vmatpush1.bf16.xpose.msra.mxu0 0
    %2189 = vmatprep.subr.bf16.mxu0 0
    %2190 = vmatpush1.bf16.xpose.msra.mxu0 0
    %2191 = vmatprep.subr.bf16.mxu0 0
    %2192 = vmatpush1.bf16.xpose.msra.mxu0 0
    %2193 = vmatprep.subr.bf16.mxu0 0
    %2194 = vmatpush1.bf16.xpose.msra.mxu0 0
    %2195 = vmatprep.subr.bf16.mxu0 0
    %2196 = vmatpush1.bf16.xpose.msra.mxu0 0
    %2197 = vmatprep.subr.bf16.mxu0 0
    %2198 = vmatpush1.bf16.xpose.msra.mxu0 0
    %2199 = vmatprep.mubr.bf16.mxu0 0
    %2200 = vmatmul.mubr.bf16.gmra.mrb[0].mxu0 %v2162
    %v2201 = vpop.f32.mrb[0].mxu0
    %v2202 = vadd.f32 0.0, %v2201
    %v2203 = vpop.f32.mrb[0].mxu0
    %v2204 = vpop.f32.mrb[0].mxu0
    %v2205 = vpop.f32.mrb[0].mxu0
    %2206 = vdwg.mxu0
    %v2207 = vmul.f32 %v2156, 0.25
    %v2208 = vmul.f32 %v2202, 0.25
    %v2209 = vadd.f32 %v2207, %v266
    %v2210 = vadd.f32 %v2208, %v270
    %v2211 = vsel %vm574, %v2209, -inf
    %2212 = vmax.xlane.f32.xlu0 %v2211
    %v2213 = vpop.xlane.xlu0 %2212
    %v2214 = vsel %vm574, %v2210, -inf
    %2215 = vmax.xlane.f32.xlu0 %v2214
    %v2216 = vpop.xlane.xlu0 %2215
    %v2217 = vsub.f32 %v2209, %v2213
    %v2218 = vsub.f32 %v2210, %v2216
    %v2219 = vmul.f32 %v2217, 1.442695
    %v2220 = vpow.pop %v2219
    %v2221 = vmul.f32 %v2218, 1.442695
    %v2222 = vpow.pop %v2221
    %v2223 = vsel %vm574, %v2220, 0.0
    %2224 = vadd.xlane.f32.xlu0 %v2223
    %v2225 = vpop.xlane.xlu0 %2224
    %v2226 = vsel %vm574, %v2222, 0.0
    %2227 = vadd.xlane.f32.xlu0 %v2226
    %v2228 = vpop.xlane.xlu0 %2227
    %v2229 = vrcp.pop %v2225
    %v2230 = vrcp.pop %v2228
    %v2231 = vmul.f32 %v2220, %v2229
    %v2232 = vmul.f32 %v2222, %v2230
    %v2233 = vpack.c.bf16 %v2231, %v2231
    %v2234 = vpack.c.bf16 %v2232, %v2232
    %v2235 = vpack.c.bf16 %v2105, %v2105
    %v2236 = vpack.c.bf16 %v2108, %v2108
    %v2238 = vsel %vm574, %v2233, 0
    %v2241 = vsel %vm604, %v2235, 0
    %2243 = vmatprep.subr.bf16.mxu0 0
    %2244 = vmatpush1.bf16.msra.mxu0 %v2241
    %2245 = vmatprep.subr.bf16.mxu0 0
    %2246 = vmatpush1.bf16.msra.mxu0 0
    %2247 = vmatprep.subr.bf16.mxu0 0
    %2248 = vmatpush1.bf16.msra.mxu0 0
    %2249 = vmatprep.subr.bf16.mxu0 0
    %2250 = vmatpush1.bf16.msra.mxu0 0
    %2251 = vmatprep.subr.bf16.mxu0 0
    %2252 = vmatpush1.bf16.msra.mxu0 0
    %2253 = vmatprep.subr.bf16.mxu0 0
    %2254 = vmatpush1.bf16.msra.mxu0 0
    %2255 = vmatprep.subr.bf16.mxu0 0
    %2256 = vmatpush1.bf16.msra.mxu0 0
    %2257 = vmatprep.subr.bf16.mxu0 0
    %2258 = vmatpush1.bf16.msra.mxu0 0
    %2259 = vmatprep.subr.bf16.mxu0 0
    %2260 = vmatpush1.bf16.msra.mxu0 0
    %2261 = vmatprep.subr.bf16.mxu0 0
    %2262 = vmatpush1.bf16.msra.mxu0 0
    %2263 = vmatprep.subr.bf16.mxu0 0
    %2264 = vmatpush1.bf16.msra.mxu0 0
    %2265 = vmatprep.subr.bf16.mxu0 0
    %2266 = vmatpush1.bf16.msra.mxu0 0
    %2267 = vmatprep.subr.bf16.mxu0 0
    %2268 = vmatpush1.bf16.msra.mxu0 0
    %2269 = vmatprep.subr.bf16.mxu0 0
    %2270 = vmatpush1.bf16.msra.mxu0 0
    %2271 = vmatprep.subr.bf16.mxu0 0
    %2272 = vmatpush1.bf16.msra.mxu0 0
    %2273 = vmatprep.subr.bf16.mxu0 0
    %2274 = vmatpush1.bf16.msra.mxu0 0
    %2275 = vmatprep.mubr.bf16.mxu0 0
    %2276 = vmatmul.mubr.bf16.gmra.mrb[0].mxu0 %v2238
    %v2277 = vpop.f32.mrb[0].mxu0
    %v2278 = vadd.f32 0.0, %v2277
    %v2279 = vpop.f32.mrb[0].mxu0
    %v2280 = vpop.f32.mrb[0].mxu0
    %v2281 = vpop.f32.mrb[0].mxu0
    %2282 = vdwg.mxu0
    %v2284 = vsel %vm574, %v2234, 0
    %v2287 = vsel %vm604, %v2236, 0
    %2289 = vmatprep.subr.bf16.mxu0 0
    %2290 = vmatpush1.bf16.msra.mxu0 %v2287
    %2291 = vmatprep.subr.bf16.mxu0 0
    %2292 = vmatpush1.bf16.msra.mxu0 0
    %2293 = vmatprep.subr.bf16.mxu0 0
    %2294 = vmatpush1.bf16.msra.mxu0 0
    %2295 = vmatprep.subr.bf16.mxu0 0
    %2296 = vmatpush1.bf16.msra.mxu0 0
    %2297 = vmatprep.subr.bf16.mxu0 0
    %2298 = vmatpush1.bf16.msra.mxu0 0
    %2299 = vmatprep.subr.bf16.mxu0 0
    %2300 = vmatpush1.bf16.msra.mxu0 0
    %2301 = vmatprep.subr.bf16.mxu0 0
    %2302 = vmatpush1.bf16.msra.mxu0 0
    %2303 = vmatprep.subr.bf16.mxu0 0
    %2304 = vmatpush1.bf16.msra.mxu0 0
    %2305 = vmatprep.subr.bf16.mxu0 0
    %2306 = vmatpush1.bf16.msra.mxu0 0
    %2307 = vmatprep.subr.bf16.mxu0 0
    %2308 = vmatpush1.bf16.msra.mxu0 0
    %2309 = vmatprep.subr.bf16.mxu0 0
    %2310 = vmatpush1.bf16.msra.mxu0 0
    %2311 = vmatprep.subr.bf16.mxu0 0
    %2312 = vmatpush1.bf16.msra.mxu0 0
    %2313 = vmatprep.subr.bf16.mxu0 0
    %2314 = vmatpush1.bf16.msra.mxu0 0
    %2315 = vmatprep.subr.bf16.mxu0 0
    %2316 = vmatpush1.bf16.msra.mxu0 0
    %2317 = vmatprep.subr.bf16.mxu0 0
    %2318 = vmatpush1.bf16.msra.mxu0 0
    %2319 = vmatprep.subr.bf16.mxu0 0
    %2320 = vmatpush1.bf16.msra.mxu0 0
    %2321 = vmatprep.mubr.bf16.mxu0 0
    %2322 = vmatmul.mubr.bf16.gmra.mrb[0].mxu0 %v2284
    %v2323 = vpop.f32.mrb[0].mxu0
    %v2324 = vadd.f32 0.0, %v2323
    %v2325 = vpop.f32.mrb[0].mxu0
    %v2326 = vpop.f32.mrb[0].mxu0
    %v2327 = vpop.f32.mrb[0].mxu0
    %2328 = vdwg.mxu0
    %s2329 = scalar_lea.vmem %s8, 24
    %v2330 = vld [vmem:[%s2329] sm:$0xf]
    %v2331 = vld [vmem:[%s2329 + $0x4] sm:$0xf]
    %v2332 = vpack.c.bf16 %v2324, %v2278
    %v2335 = vunpack.c.l.b16 %v2330
    %v2336 = vunpack.c.l.b16 %v2331
    %v2337 = vpack.c.b16 %v2336, %v2335
    %v2340 = vsel %vm477, %v2332, 0
    %2342 = vmatprep.subr.bf16.mxu0 0
    %2343 = vmatpush1.bf16.msra.mxu0 %v2337
    %2344 = vmatprep.subr.bf16.mxu0 0
    %2345 = vmatpush1.bf16.msra.mxu0 0
    %2346 = vmatprep.subr.bf16.mxu0 0
    %2347 = vmatpush1.bf16.msra.mxu0 0
    %2348 = vmatprep.subr.bf16.mxu0 0
    %2349 = vmatpush1.bf16.msra.mxu0 0
    %2350 = vmatprep.subr.bf16.mxu0 0
    %2351 = vmatpush1.bf16.msra.mxu0 0
    %2352 = vmatprep.subr.bf16.mxu0 0
    %2353 = vmatpush1.bf16.msra.mxu0 0
    %2354 = vmatprep.subr.bf16.mxu0 0
    %2355 = vmatpush1.bf16.msra.mxu0 0
    %2356 = vmatprep.subr.bf16.mxu0 0
    %2357 = vmatpush1.bf16.msra.mxu0 0
    %2358 = vmatprep.subr.bf16.mxu0 0
    %2359 = vmatpush1.bf16.msra.mxu0 0
    %2360 = vmatprep.subr.bf16.mxu0 0
    %2361 = vmatpush1.bf16.msra.mxu0 0
    %2362 = vmatprep.subr.bf16.mxu0 0
    %2363 = vmatpush1.bf16.msra.mxu0 0
    %2364 = vmatprep.subr.bf16.mxu0 0
    %2365 = vmatpush1.bf16.msra.mxu0 0
    %2366 = vmatprep.subr.bf16.mxu0 0
    %2367 = vmatpush1.bf16.msra.mxu0 0
    %2368 = vmatprep.subr.bf16.mxu0 0
    %2369 = vmatpush1.bf16.msra.mxu0 0
    %2370 = vmatprep.subr.bf16.mxu0 0
    %2371 = vmatpush1.bf16.msra.mxu0 0
    %2372 = vmatprep.subr.bf16.mxu0 0
    %2373 = vmatpush1.bf16.msra.mxu0 0
    %2374 = vmatprep.mubr.bf16.mxu0 0
    %2375 = vmatmul.mubr.bf16.gmra.mrb[0].mxu0 %v2340
    %v2376 = vpop.f32.mrb[0].mxu0
    %v2377 = vadd.f32 0.0, %v2376
    %v2378 = vpop.f32.mrb[0].mxu0
    %v2379 = vpop.f32.mrb[0].mxu0
    %v2380 = vadd.f32 0.0, %v2379
    %v2381 = vpop.f32.mrb[0].mxu0
    %2382 = vdwg.mxu0
    %v2385 = vunpack.c.l.b16 %v1910
    %v2386 = vunpack.c.l.b16 %v1911
    %v2387 = vpack.c.b16 %v2386, %v2385
    %v2390 = vsel %vm477, %v1912, 0
    %2392 = vmatprep.subr.bf16.mxu0 0
    %2393 = vmatpush1.bf16.msra.mxu0 %v2387
    %2394 = vmatprep.subr.bf16.mxu0 0
    %2395 = vmatpush1.bf16.msra.mxu0 0
    %2396 = vmatprep.subr.bf16.mxu0 0
    %2397 = vmatpush1.bf16.msra.mxu0 0
    %2398 = vmatprep.subr.bf16.mxu0 0
    %2399 = vmatpush1.bf16.msra.mxu0 0
    %2400 = vmatprep.subr.bf16.mxu0 0
    %2401 = vmatpush1.bf16.msra.mxu0 0
    %2402 = vmatprep.subr.bf16.mxu0 0
    %2403 = vmatpush1.bf16.msra.mxu0 0
    %2404 = vmatprep.subr.bf16.mxu0 0
    %2405 = vmatpush1.bf16.msra.mxu0 0
    %2406 = vmatprep.subr.bf16.mxu0 0
    %2407 = vmatpush1.bf16.msra.mxu0 0
    %2408 = vmatprep.subr.bf16.mxu0 0
    %2409 = vmatpush1.bf16.msra.mxu0 0
    %2410 = vmatprep.subr.bf16.mxu0 0
    %2411 = vmatpush1.bf16.msra.mxu0 0
    %2412 = vmatprep.subr.bf16.mxu0 0
    %2413 = vmatpush1.bf16.msra.mxu0 0
    %2414 = vmatprep.subr.bf16.mxu0 0
    %2415 = vmatpush1.bf16.msra.mxu0 0
    %2416 = vmatprep.subr.bf16.mxu0 0
    %2417 = vmatpush1.bf16.msra.mxu0 0
    %2418 = vmatprep.subr.bf16.mxu0 0
    %2419 = vmatpush1.bf16.msra.mxu0 0
    %2420 = vmatprep.subr.bf16.mxu0 0
    %2421 = vmatpush1.bf16.msra.mxu0 0
    %2422 = vmatprep.subr.bf16.mxu0 0
    %2423 = vmatpush1.bf16.msra.mxu0 0
    %2424 = vmatprep.mubr.bf16.mxu0 0
    %2425 = vmatmul.mubr.bf16.gmra.mrb[0].mxu0 %v2390
    %v2426 = vpop.f32.mrb[0].mxu0
    %v2427 = vadd.f32 %v2377, %v2426
    %v2428 = vpop.f32.mrb[0].mxu0
    %v2429 = vpop.f32.mrb[0].mxu0
    %v2430 = vadd.f32 %v2380, %v2429
    %v2431 = vpop.f32.mrb[0].mxu0
    %2432 = vdwg.mxu0
    %s2433 = scalar_lea.vmem %s9, 1
    %v2434 = vld [vmem:[%s2433] sm:$0x1]
    %v2436 = vlaneseq
    %v2437 = vshrl.u32 %v2436, 7
    %v2438 = vsub.s32 0, %v2437
    %v2439 = vrot.slane %v2434, %v2438
    %v2441 = vadd.f32 %v2427, %v2439
    %v2442 = vadd.f32 %v2430, %v2439
    %v2443 = vadd.f32 %v2441, %v1487
    %v2444 = vadd.f32 %v2442, %v1488
    %s2445 = scalar_lea.vmem %s10, 1
    %v2446 = vld [vmem:[%s2445] sm:$0x1]
    %s2447 = scalar_lea.vmem %s11, 1
    %v2448 = vld [vmem:[%s2447] sm:$0x1]
    %v2449 = vsel %vm193, %v2443, 0.0
    %2450 = vadd.xlane.f32.xlu0 %v2449
    %v2451 = vpop.xlane.xlu0 %2450
    %v2452 = vsel %vm193, %v2444, 0.0
    %2453 = vadd.xlane.f32.xlu0 %v2452
    %v2454 = vpop.xlane.xlu0 %2453
    %v2455 = vmul.f32 %v2451, %v200
    %v2456 = vmul.f32 %v2454, %v200
    %v2457 = vsub.f32 %v2443, %v2455
    %v2458 = vsub.f32 %v2444, %v2456
    %v2459 = vmul.f32 %v2457, %v2457
    %v2460 = vmul.f32 %v2458, %v2458
    %v2461 = vsel %vm193, %v2459, 0.0
    %2462 = vadd.xlane.f32.xlu0 %v2461
    %v2463 = vpop.xlane.xlu0 %2462
    %v2464 = vsel %vm193, %v2460, 0.0
    %2465 = vadd.xlane.f32.xlu0 %v2464
    %v2466 = vpop.xlane.xlu0 %2465
    %v2467 = vmul.f32 %v2463, %v200
    %v2468 = vmul.f32 %v2466, %v200
    %v2469 = vadd.f32 %v2467, 1e-12
    %v2470 = vadd.f32 %v2468, 1e-12
    %v2471 = vrsqrt.pop %v2469
    %v2472 = vrsqrt.pop %v2470
    %v2473 = vmul.f32 %v2457, %v2471
    %v2474 = vmul.f32 %v2458, %v2472
    %v2476 = vlaneseq
    %v2477 = vshrl.u32 %v2476, 7
    %v2478 = vsub.s32 0, %v2477
    %v2479 = vrot.slane %v2446, %v2478
    %v2481 = vmul.f32 %v2473, %v2479
    %v2482 = vmul.f32 %v2474, %v2479
    %v2484 = vlaneseq
    %v2485 = vshrl.u32 %v2484, 7
    %v2486 = vsub.s32 0, %v2485
    %v2487 = vrot.slane %v2448, %v2486
    %v2489 = vadd.f32 %v2481, %v2487
    %v2490 = vadd.f32 %v2482, %v2487
    %s2491 = scalar_lea.vmem %s12, 16
    %v2492 = vld [vmem:[%s2491] sm:$0xf]
    %v2493 = vld [vmem:[%s2491 + $0x4] sm:$0xf]
    %v2494 = vld [vmem:[%s2491 + $0x8] sm:$0xf]
    %v2495 = vld [vmem:[%s2491 + $0xc] sm:$0xf]
    %v2496 = vpack.c.bf16 %v2490, %v2489
    %s2497 = scalar_lea.vmem %s13, 1
    %v2498 = vld [vmem:[%s2497] sm:$0x1]
    %v2500 = vlaneseq
    %v2501 = vshrl.u32 %v2500, 7
    %v2502 = vsub.s32 0, %v2501
    %v2503 = vrot.slane %v2498, %v2502
    %v2509 = vunpack.c.l.b16 %v2492
    %v2510 = vunpack.c.l.b16 %v2493
    %v2511 = vunpack.c.l.b16 %v2494
    %v2512 = vunpack.c.l.b16 %v2495
    %v2513 = vpack.c.b16 %v2510, %v2509
    %v2514 = vpack.c.b16 %v2512, %v2511
    %v2518 = vsel %vm193, %v2496, 0
    %2520 = vmatprep.subr.bf16.mxu0 0
    %2521 = vmatpush1.bf16.msra.mxu0 %v2513
    %2522 = vmatprep.subr.bf16.mxu0 0
    %2523 = vmatpush1.bf16.msra.mxu0 %v2514
    %2524 = vmatprep.subr.bf16.mxu0 0
    %2525 = vmatpush1.bf16.msra.mxu0 0
    %2526 = vmatprep.subr.bf16.mxu0 0
    %2527 = vmatpush1.bf16.msra.mxu0 0
    %2528 = vmatprep.subr.bf16.mxu0 0
    %2529 = vmatpush1.bf16.msra.mxu0 0
    %2530 = vmatprep.subr.bf16.mxu0 0
    %2531 = vmatpush1.bf16.msra.mxu0 0
    %2532 = vmatprep.subr.bf16.mxu0 0
    %2533 = vmatpush1.bf16.msra.mxu0 0
    %2534 = vmatprep.subr.bf16.mxu0 0
    %2535 = vmatpush1.bf16.msra.mxu0 0
    %2536 = vmatprep.subr.bf16.mxu0 0
    %2537 = vmatpush1.bf16.msra.mxu0 0
    %2538 = vmatprep.subr.bf16.mxu0 0
    %2539 = vmatpush1.bf16.msra.mxu0 0
    %2540 = vmatprep.subr.bf16.mxu0 0
    %2541 = vmatpush1.bf16.msra.mxu0 0
    %2542 = vmatprep.subr.bf16.mxu0 0
    %2543 = vmatpush1.bf16.msra.mxu0 0
    %2544 = vmatprep.subr.bf16.mxu0 0
    %2545 = vmatpush1.bf16.msra.mxu0 0
    %2546 = vmatprep.subr.bf16.mxu0 0
    %2547 = vmatpush1.bf16.msra.mxu0 0
    %2548 = vmatprep.subr.bf16.mxu0 0
    %2549 = vmatpush1.bf16.msra.mxu0 0
    %2550 = vmatprep.subr.bf16.mxu0 0
    %2551 = vmatpush1.bf16.msra.mxu0 0
    %2552 = vmatprep.mubr.bf16.mxu0 0
    %2553 = vmatmul.mubr.bf16.gmra.mrb[0].mxu0 %v2518
    %v2554 = vpop.f32.mrb[0].mxu0
    %v2555 = vadd.f32 %v2503, %v2554
    %v2556 = vpop.f32.mrb[0].mxu0
    %v2557 = vpop.f32.mrb[0].mxu0
    %v2558 = vadd.f32 %v2503, %v2557
    %v2559 = vpop.f32.mrb[0].mxu0
    %2560 = vdwg.mxu0
    %v2561 = vmul.f32 %v2555, 0.5
    %v2562 = vmul.f32 %v2558, 0.5
    %v2563 = vmul.f32 %v2555, 0.044715
    %v2564 = vmul.f32 %v2558, 0.044715
    %v2565 = vmul.f32 %v2563, %v2555
    %v2566 = vmul.f32 %v2564, %v2558
    %v2567 = vmul.f32 %v2565, %v2555
    %v2568 = vmul.f32 %v2566, %v2558
    %v2569 = vadd.f32 %v2555, %v2567
    %v2570 = vadd.f32 %v2558, %v2568
    %v2571 = vmul.f32 %v2569, 0.7978846
    %v2572 = vmul.f32 %v2570, 0.7978846
    %v2573 = vtanh.pop %v2571
    %v2574 = vtanh.pop %v2572
    %v2575 = vadd.f32 %v2573, 1.0
    %v2576 = vadd.f32 %v2574, 1.0
    %v2577 = vmul.f32 %v2561, %v2575
    %v2578 = vmul.f32 %v2562, %v2576
    %s2579 = scalar_lea.vmem %s14, 32
    %v2580 = vld [vmem:[%s2579] sm:$0xf]
    %v2581 = vld [vmem:[%s2579 + $0x4] sm:$0xf]
    %v2582 = vld [vmem:[%s2579 + $0x8] sm:$0xf]
    %v2583 = vld [vmem:[%s2579 + $0xc] sm:$0xf]
    %v2584 = vld [vmem:[%s2579 + $0x10] sm:$0xf]
    %v2585 = vld [vmem:[%s2579 + $0x14] sm:$0xf]
    %v2586 = vld [vmem:[%s2579 + $0x18] sm:$0xf]
    %v2587 = vld [vmem:[%s2579 + $0x1c] sm:$0xf]
    %v2588 = vpack.c.bf16 %v2578, %v2577
    %s2589 = scalar_lea.vmem %s15, 1
    %v2590 = vld [vmem:[%s2589] sm:$0x1]
    %v2592 = vlaneseq
    %v2593 = vshrl.u32 %v2592, 7
    %v2594 = vsub.s32 0, %v2593
    %v2595 = vrot.slane %v2590, %v2594
    %v2605 = vunpack.c.l.b16 %v2580
    %v2606 = vunpack.c.l.b16 %v2581
    %v2607 = vunpack.c.l.b16 %v2582
    %v2608 = vunpack.c.l.b16 %v2583
    %v2609 = vunpack.c.l.b16 %v2584
    %v2610 = vunpack.c.l.b16 %v2585
    %v2611 = vunpack.c.l.b16 %v2586
    %v2612 = vunpack.c.l.b16 %v2587
    %v2613 = vpack.c.b16 %v2606, %v2605
    %v2614 = vpack.c.b16 %v2608, %v2607
    %v2615 = vpack.c.b16 %v2610, %v2609
    %v2616 = vpack.c.b16 %v2612, %v2611
    %v2622 = vsel %vm1398, %v2588, 0
    %2624 = vmatprep.subr.bf16.mxu0 0
    %2625 = vmatpush1.bf16.msra.mxu0 %v2613
    %2626 = vmatprep.subr.bf16.mxu0 0
    %2627 = vmatpush1.bf16.msra.mxu0 %v2614
    %2628 = vmatprep.subr.bf16.mxu0 0
    %2629 = vmatpush1.bf16.msra.mxu0 %v2615
    %2630 = vmatprep.subr.bf16.mxu0 0
    %2631 = vmatpush1.bf16.msra.mxu0 %v2616
    %2632 = vmatprep.subr.bf16.mxu0 0
    %2633 = vmatpush1.bf16.msra.mxu0 0
    %2634 = vmatprep.subr.bf16.mxu0 0
    %2635 = vmatpush1.bf16.msra.mxu0 0
    %2636 = vmatprep.subr.bf16.mxu0 0
    %2637 = vmatpush1.bf16.msra.mxu0 0
    %2638 = vmatprep.subr.bf16.mxu0 0
    %2639 = vmatpush1.bf16.msra.mxu0 0
    %2640 = vmatprep.subr.bf16.mxu0 0
    %2641 = vmatpush1.bf16.msra.mxu0 0
    %2642 = vmatprep.subr.bf16.mxu0 0
    %2643 = vmatpush1.bf16.msra.mxu0 0
    %2644 = vmatprep.subr.bf16.mxu0 0
    %2645 = vmatpush1.bf16.msra.mxu0 0
    %2646 = vmatprep.subr.bf16.mxu0 0
    %2647 = vmatpush1.bf16.msra.mxu0 0
    %2648 = vmatprep.subr.bf16.mxu0 0
    %2649 = vmatpush1.bf16.msra.mxu0 0
    %2650 = vmatprep.subr.bf16.mxu0 0
    %2651 = vmatpush1.bf16.msra.mxu0 0
    %2652 = vmatprep.subr.bf16.mxu0 0
    %2653 = vmatpush1.bf16.msra.mxu0 0
    %2654 = vmatprep.subr.bf16.mxu0 0
    %2655 = vmatpush1.bf16.msra.mxu0 0
    %2656 = vmatprep.mubr.bf16.mxu0 0
    %2657 = vmatmul.mubr.bf16.gmra.mrb[0].mxu0 %v2622
    %v2658 = vpop.f32.mrb[0].mxu0
    %v2659 = vadd.f32 %v2595, %v2658
    %v2660 = vpop.f32.mrb[0].mxu0
    %v2661 = vpop.f32.mrb[0].mxu0
    %v2662 = vadd.f32 %v2595, %v2661
    %v2663 = vpop.f32.mrb[0].mxu0
    %2664 = vdwg.mxu0
    %v2665 = vadd.f32 %v2659, %v2489
    %v2666 = vadd.f32 %v2662, %v2490
    %s2667 = scalar_lea.vmem %s16, 1
    %v2668 = vld [vmem:[%s2667] sm:$0x1]
    %s2669 = scalar_lea.vmem %s17, 1
    %v2670 = vld [vmem:[%s2669] sm:$0x1]
    %v2671 = vsel %vm193, %v2665, 0.0
    %2672 = vadd.xlane.f32.xlu0 %v2671
    %v2673 = vpop.xlane.xlu0 %2672
    %v2674 = vsel %vm193, %v2666, 0.0
    %2675 = vadd.xlane.f32.xlu0 %v2674
    %v2676 = vpop.xlane.xlu0 %2675
    %v2677 = vmul.f32 %v2673, %v200
    %v2678 = vmul.f32 %v2676, %v200
    %v2679 = vsub.f32 %v2665, %v2677
    %v2680 = vsub.f32 %v2666, %v2678
    %v2681 = vmul.f32 %v2679, %v2679
    %v2682 = vmul.f32 %v2680, %v2680
    %v2683 = vsel %vm193, %v2681, 0.0
    %2684 = vadd.xlane.f32.xlu0 %v2683
    %v2685 = vpop.xlane.xlu0 %2684
    %v2686 = vsel %vm193, %v2682, 0.0
    %2687 = vadd.xlane.f32.xlu0 %v2686
    %v2688 = vpop.xlane.xlu0 %2687
    %v2689 = vmul.f32 %v2685, %v200
    %v2690 = vmul.f32 %v2688, %v200
    %v2691 = vadd.f32 %v2689, 1e-12
    %v2692 = vadd.f32 %v2690, 1e-12
    %v2693 = vrsqrt.pop %v2691
    %v2694 = vrsqrt.pop %v2692
    %v2695 = vmul.f32 %v2679, %v2693
    %v2696 = vmul.f32 %v2680, %v2694
    %v2698 = vlaneseq
    %v2699 = vshrl.u32 %v2698, 7
    %v2700 = vsub.s32 0, %v2699
    %v2701 = vrot.slane %v2668, %v2700
    %v2703 = vmul.f32 %v2695, %v2701
    %v2704 = vmul.f32 %v2696, %v2701
    %v2706 = vlaneseq
    %v2707 = vshrl.u32 %v2706, 7
    %v2708 = vsub.s32 0, %v2707
    %v2709 = vrot.slane %v2670, %v2708
    %v2711 = vadd.f32 %v2703, %v2709
    %v2712 = vadd.f32 %v2704, %v2709
    %v2713 = vmax.f32 %v2711, 0.0
    %v2714 = vmax.f32 %v2712, 0.0
    %v2715 = vld [vmem:[%s18] sm:$0xf]
    %v2716 = vld [vmem:[%s18 + $0x4] sm:$0xf]
    %v2717 = vld [vmem:[%s18 + $0x8] sm:$0xf]
    %v2718 = vld [vmem:[%s18 + $0xc] sm:$0xf]
    %v2719 = vpack.c.bf16 %v2713, %v2713
    %v2720 = vpack.c.bf16 %v2714, %v2714
    %v2721 = vld [vmem:[%s19] sm:$0x1]
    %v2723 = vlaneseq
    %v2724 = vshrl.u32 %v2723, 7
    %v2725 = vsub.s32 0, %v2724
    %v2726 = vrot.slane %v2721, %v2725
    %v2730 = vunpack.c.l.b16 %v2719
    %v2731 = vunpack.c.l.b16 %v2720
    %v2732 = vrot.slane %v2731, 7
    %vm2733 = vcmask 1041409
    %v2734 = vsel %vm2733, %v2732, %v2730
    %v2735 = vpack.c.b16 %v2734, %v2734
    %v2740 = vunpack.c.l.b16 %v2715
    %v2741 = vunpack.c.l.b16 %v2716
    %v2742 = vunpack.c.l.b16 %v2717
    %v2743 = vunpack.c.l.b16 %v2718
    %v2744 = vpack.c.b16 %v2741, %v2740
    %v2745 = vpack.c.b16 %v2743, %v2742
    %v2749 = vsel %vm193, %v2735, 0
    %2751 = vmatprep.subr.bf16.mxu0 0
    %2752 = vmatpush1.bf16.msra.mxu0 %v2744
    %2753 = vmatprep.subr.bf16.mxu0 0
    %2754 = vmatpush1.bf16.msra.mxu0 %v2745
    %2755 = vmatprep.subr.bf16.mxu0 0
    %2756 = vmatpush1.bf16.msra.mxu0 0
    %2757 = vmatprep.subr.bf16.mxu0 0
    %2758 = vmatpush1.bf16.msra.mxu0 0
    %2759 = vmatprep.subr.bf16.mxu0 0
    %2760 = vmatpush1.bf16.msra.mxu0 0
    %2761 = vmatprep.subr.bf16.mxu0 0
    %2762 = vmatpush1.bf16.msra.mxu0 0
    %2763 = vmatprep.subr.bf16.mxu0 0
    %2764 = vmatpush1.bf16.msra.mxu0 0
    %2765 = vmatprep.subr.bf16.mxu0 0
    %2766 = vmatpush1.bf16.msra.mxu0 0
    %2767 = vmatprep.subr.bf16.mxu0 0
    %2768 = vmatpush1.bf16.msra.mxu0 0
    %2769 = vmatprep.subr.bf16.mxu0 0
    %2770 = vmatpush1.bf16.msra.mxu0 0
    %2771 = vmatprep.subr.bf16.mxu0 0
    %2772 = vmatpush1.bf16.msra.mxu0 0
    %2773 = vmatprep.subr.bf16.mxu0 0
    %2774 = vmatpush1.bf16.msra.mxu0 0
    %2775 = vmatprep.subr.bf16.mxu0 0
    %2776 = vmatpush1.bf16.msra.mxu0 0
    %2777 = vmatprep.subr.bf16.mxu0 0
    %2778 = vmatpush1.bf16.msra.mxu0 0
    %2779 = vmatprep.subr.bf16.mxu0 0
    %2780 = vmatpush1.bf16.msra.mxu0 0
    %2781 = vmatprep.subr.bf16.mxu0 0
    %2782 = vmatpush1.bf16.msra.mxu0 0
    %2783 = vmatprep.mubr.bf16.mxu0 0
    %2784 = vmatmul.mubr.bf16.gmra.mrb[0].mxu0 %v2749
    %v2785 = vpop.f32.mrb[0].mxu0
    %v2786 = vadd.f32 %v2726, %v2785
    %v2787 = vpop.f32.mrb[0].mxu0
    %v2788 = vpop.f32.mrb[0].mxu0
    %v2789 = vpop.f32.mrb[0].mxu0
    %2790 = vdwg.mxu0
    %v2791 = vmax.f32 %v2786, 0.0
    %v2792 = vld [vmem:[%s20] sm:$0xf]
    %v2793 = vld [vmem:[%s20 + $0x4] sm:$0xf]
    %v2794 = vld [vmem:[%s20 + $0x8] sm:$0xf]
    %v2795 = vld [vmem:[%s20 + $0xc] sm:$0xf]
    %v2796 = vpack.c.bf16 %v2791, %v2791
    %v2797 = vld [vmem:[%s21] sm:$0x1]
    %v2799 = vlaneseq
    %v2800 = vshrl.u32 %v2799, 7
    %v2801 = vsub.s32 0, %v2800
    %v2802 = vrot.slane %v2797, %v2801
    %v2808 = vunpack.c.l.b16 %v2792
    %v2809 = vunpack.c.l.b16 %v2793
    %v2810 = vunpack.c.l.b16 %v2794
    %v2811 = vunpack.c.l.b16 %v2795
    %v2812 = vpack.c.b16 %v2809, %v2808
    %v2813 = vpack.c.b16 %v2811, %v2810
    %v2817 = vsel %vm193, %v2796, 0
    %2819 = vmatprep.subr.bf16.mxu0 0
    %2820 = vmatpush1.bf16.msra.mxu0 %v2812
    %2821 = vmatprep.subr.bf16.mxu0 0
    %2822 = vmatpush1.bf16.msra.mxu0 %v2813
    %2823 = vmatprep.subr.bf16.mxu0 0
    %2824 = vmatpush1.bf16.msra.mxu0 0
    %2825 = vmatprep.subr.bf16.mxu0 0
    %2826 = vmatpush1.bf16.msra.mxu0 0
    %2827 = vmatprep.subr.bf16.mxu0 0
    %2828 = vmatpush1.bf16.msra.mxu0 0
    %2829 = vmatprep.subr.bf16.mxu0 0
    %2830 = vmatpush1.bf16.msra.mxu0 0
    %2831 = vmatprep.subr.bf16.mxu0 0
    %2832 = vmatpush1.bf16.msra.mxu0 0
    %2833 = vmatprep.subr.bf16.mxu0 0
    %2834 = vmatpush1.bf16.msra.mxu0 0
    %2835 = vmatprep.subr.bf16.mxu0 0
    %2836 = vmatpush1.bf16.msra.mxu0 0
    %2837 = vmatprep.subr.bf16.mxu0 0
    %2838 = vmatpush1.bf16.msra.mxu0 0
    %2839 = vmatprep.subr.bf16.mxu0 0
    %2840 = vmatpush1.bf16.msra.mxu0 0
    %2841 = vmatprep.subr.bf16.mxu0 0
    %2842 = vmatpush1.bf16.msra.mxu0 0
    %2843 = vmatprep.subr.bf16.mxu0 0
    %2844 = vmatpush1.bf16.msra.mxu0 0
    %2845 = vmatprep.subr.bf16.mxu0 0
    %2846 = vmatpush1.bf16.msra.mxu0 0
    %2847 = vmatprep.subr.bf16.mxu0 0
    %2848 = vmatpush1.bf16.msra.mxu0 0
    %2849 = vmatprep.subr.bf16.mxu0 0
    %2850 = vmatpush1.bf16.msra.mxu0 0
    %2851 = vmatprep.mubr.bf16.mxu0 0
    %2852 = vmatmul.mubr.bf16.gmra.mrb[0].mxu0 %v2817
    %v2853 = vpop.f32.mrb[0].mxu0
    %v2854 = vadd.f32 %v2802, %v2853
    %v2855 = vpop.f32.mrb[0].mxu0
    %v2856 = vpop.f32.mrb[0].mxu0
    %v2857 = vpop.f32.mrb[0].mxu0
    %2858 = vdwg.mxu0
    %2859 = vst [vmem:[#allocation2] sm:$0x3] %v2854
    // Predicated region
    $region90: #{bert_binary_classifier_forward.1} parent=1 // pred_check
      _
    $region91: #{bert_binary_classifier_forward.1} parent=1 // pred_check_branch
      %2861 = sbr.rel (0) target = $region93
    $region92: #{bert_binary_classifier_forward.1} parent=1 // pred_region
      %s2863 = ssub.s32 32, 32
      %2864 = vsyncadd [#allocation3], %s2863
      %s2866 = sshll.u32 [#allocation2], 4
      %s2867 = int_to_ptr.vmem [resolvable:$true] %s2866
      %2869 = dma.vmem_to_hbm [thread:$0]  %s2867, 32, %s22, [#allocation3]
    $region93: #{bert_binary_classifier_forward.1} parent=1 // pred_fallthru
      _
    // Predicated region
    $region94: #{bert_binary_classifier_forward.1} parent=1 // pred_check
      _
    $region95: #{bert_binary_classifier_forward.1} parent=1 // pred_check_branch
      %2871 = sbr.rel (0) target = $region97
    $region96: #{bert_binary_classifier_forward.1} parent=1 // pred_region
      %2872 = dma.done [#allocation3], 32
    $region97: #{bert_binary_classifier_forward.1} parent=1 // pred_fallthru
      _
    %2873 = vsyncpa [#allocation3], 1

</llo_original>
